<compile_context>
chip_gen: v7x
topology: tpu7x:2x2x1
jax: 0.10.0
libtpu: 0.0.40
codegen_flags: <defaults>
</compile_context>

<pallas_src>
import functools

import jax
import jax.numpy as jnp
from jax.experimental import pallas as pl
from jax.experimental.pallas import tpu as pltpu

LANE = 128


def _round_up(x, m):
    return (x + m - 1) // m * m


def _largest_divisor_tile(dim, target, mult):
    """dim is a multiple of `mult`; largest t = k*mult with t | dim, t <= target."""
    q = dim // mult
    best = 1
    for d in range(1, q + 1):
        if q % d == 0 and d * mult <= target:
            best = d
    return best * mult


# ----------------------------- Pallas kernels ------------------------------ #

def _gemm_kernel(a_ref, b_ref, o_ref, acc_ref, *, act):
    """Tiled bf16 GEMM with f32 accumulator; optional fused LeakyReLU epilogue."""
    @pl.when(pl.program_id(2) == 0)
    def _():
        acc_ref[...] = jnp.zeros_like(acc_ref)

    acc_ref[...] += jnp.dot(a_ref[...], b_ref[...],
                            preferred_element_type=jnp.float32)

    @pl.when(pl.program_id(2) == pl.num_programs(2) - 1)
    def _():
        y = acc_ref[...]
        if act == "lrelu":
            y = jnp.where(y > 0, y, 0.2 * y)
        o_ref[...] = y.astype(o_ref.dtype)


def _conv3x3_kernel(a_hbm, w_ref, o_ref, abuf, sem, *, offs):
    """3x3 stride-1 conv as 9 shifted GEMMs over one VMEM-resident row slab.

    a_hbm : [rows, Cin_p] f32 in HBM (flattened zero-padded NHWC activation,
            plus a zero halo at the end).
    w_ref : [9, Cin_p, tn] bf16 weight taps.
    o_ref : [tm, tn] f32 output tile (rows indexed in padded coordinates).
    abuf  : [tm + halo, Cin_p] f32 VMEM scratch (persists across the tn axis).
    """
    i = pl.program_id(0)
    tm = o_ref.shape[0]
    rows = abuf.shape[0]

    # One slab DMA per M-tile (j == 0); reused for every output-channel tile.
    @pl.when(pl.program_id(1) == 0)
    def _():
        cp = pltpu.make_async_copy(a_hbm.at[pl.ds(i * tm, rows), :], abuf, sem)
        cp.start()
        cp.wait()

    o_ref[...] = jnp.zeros_like(o_ref)
    for t, off in enumerate(offs):            # 9 static taps, unrolled
        a_tap = abuf[off:off + tm, :].astype(jnp.bfloat16)
        o_ref[...] += jnp.dot(a_tap, w_ref[t],
                              preferred_element_type=jnp.float32)


def _bn_stats_kernel(x_ref, s_ref, s2_ref):
    """Accumulate per-channel sum / sum-of-squares over tiled rows."""
    @pl.when(pl.program_id(0) == 0)
    def _():
        s_ref[...] = jnp.zeros_like(s_ref)
        s2_ref[...] = jnp.zeros_like(s2_ref)
    x = x_ref[...]
    s_ref[...] += jnp.sum(x, axis=0, keepdims=True)
    s2_ref[...] += jnp.sum(x * x, axis=0, keepdims=True)


def _bn_apply_lrelu_kernel(x_ref, s_ref, s2_ref, g_ref, b_ref, o_ref, *, count):
    inv = 1.0 / count
    mean = s_ref[...] * inv
    var = jnp.maximum(s2_ref[...] * inv - mean * mean, 0.0)
    y = (x_ref[...] - mean) * jax.lax.rsqrt(var + 1e-5) * g_ref[...] + b_ref[...]
    o_ref[...] = jnp.where(y > 0, y, 0.2 * y)


def _in_stats_kernel(x_ref, s_ref, s2_ref):
    """Per-sample per-channel sum / sum-of-squares over tiled spatial positions."""
    @pl.when(pl.program_id(1) == 0)
    def _():
        s_ref[...] = jnp.zeros_like(s_ref)
        s2_ref[...] = jnp.zeros_like(s2_ref)
    x = x_ref[...]
    s_ref[...] += jnp.sum(x, axis=1, keepdims=True)
    s2_ref[...] += jnp.sum(x * x, axis=1, keepdims=True)


def _in_normalize(x, s, s2, g, b, count):
    inv = 1.0 / count
    mean = s * inv
    var = jnp.maximum(s2 * inv - mean * mean, 0.0)
    return (x - mean) * jax.lax.rsqrt(var + 1e-5) * g + b


def _in_apply_kernel(x_ref, s_ref, s2_ref, g_ref, b_ref, o_ref, *, count, relu):
    y = _in_normalize(x_ref[...], s_ref[...], s2_ref[...],
                      g_ref[...], b_ref[...], count)
    if relu:
        y = jnp.maximum(y, 0.0)
    o_ref[...] = y


def _in_apply_add_kernel(x_ref, res_ref, s_ref, s2_ref, g_ref, b_ref, o_ref,
                         *, count):
    y = _in_normalize(x_ref[...], s_ref[...], s2_ref[...],
                      g_ref[...], b_ref[...], count)
    o_ref[...] = res_ref[...] + y


# ----------------------------- Pallas wrappers ----------------------------- #

def pallas_matmul(a_bf16, b_bf16, act="none"):
    """a: [M, Kp] bf16, b: [Kp, Np] bf16 (Kp, Np multiples of 128) -> [M, Np] f32."""
    M, Kp = a_bf16.shape
    Kp2, Np = b_bf16.shape
    assert Kp == Kp2
    tm = min(256, _round_up(M, 16))
    Mp = _round_up(M, tm)
    tn = _largest_divisor_tile(Np, 256, LANE)
    tk = _largest_divisor_tile(Kp, 512, LANE)
    if Mp != M:
        a_bf16 = jnp.pad(a_bf16, ((0, Mp - M), (0, 0)))
    out = pl.pallas_call(
        functools.partial(_gemm_kernel, act=act),
        out_shape=jax.ShapeDtypeStruct((Mp, Np), jnp.float32),
        grid=(Mp // tm, Np // tn, Kp // tk),
        in_specs=[pl.BlockSpec((tm, tk), lambda i, j, k: (i, k)),
                  pl.BlockSpec((tk, tn), lambda i, j, k: (k, j))],
        out_specs=pl.BlockSpec((tm, tn), lambda i, j, k: (i, j)),
        scratch_shapes=[pltpu.VMEM((tm, tn), jnp.float32)],
        compiler_params=pltpu.CompilerParams(
            dimension_semantics=("parallel", "parallel", "arbitrary")),
    )(a_bf16, b_bf16)
    return out[:M] if Mp != M else out


def conv4x4_down(x_real, wmat, act):
    """Conv2d(k=4, s=2, p=1, bias=False) via im2col (glue) + tiled Pallas GEMM.

    x_real: [N, H, W, Cin_real] f32 (real, unpadded channels).
    wmat  : [Kp, Cout_pad] bf16, Kp = round_up(16*Cin_real, 128).
    """
    N, H, W, Cin = x_real.shape
    Ho = (H + 2 - 4) // 2 + 1
    Wo = (W + 2 - 4) // 2 + 1
    xp = jnp.pad(x_real, ((0, 0), (1, 1), (1, 1), (0, 0)))
    cols = []
    for i in range(4):
        for j in range(4):
            cols.append(xp[:, i:i + 2 * Ho:2, j:j + 2 * Wo:2, :])
    patches = jnp.stack(cols, axis=3).reshape(N * Ho * Wo, 16 * Cin)
    Kp, Cout_p = wmat.shape
    if Kp > 16 * Cin:
        patches = jnp.pad(patches, ((0, 0), (0, Kp - 16 * Cin)))
    out = pallas_matmul(patches.astype(jnp.bfloat16), wmat, act=act)
    return out.reshape(N, Ho, Wo, Cout_p)


def conv3x3(x, w9):
    """Conv2d(k=3, s=1, p=1, bias=False) without materializing im2col.

    x : [N, H, W, Cin_p] f32 (channel-padded, padding channels == 0).
    w9: [9, Cin_p, Cout_p] bf16.
    """
    N, H, W, Cp = x.shape
    Cout_p = w9.shape[2]
    Hp, Wp = H + 2, W + 2
    M = N * Hp * Wp                       # outputs at all padded positions
    tm = min(256, _round_up(M, 16))
    Mp = _round_up(M, tm)
    tn = _largest_divisor_tile(Cout_p, 256, LANE)
    maxoff = 2 * Wp + 2                   # largest tap offset (rows)
    abuf_rows = tm + _round_up(maxoff, 8)
    rows_total = Mp - tm + abuf_rows      # covers the last tile's halo reads

    xpad = jnp.pad(x, ((0, 0), (1, 1), (1, 1), (0, 0)))
    a_flat = xpad.reshape(M, Cp)
    a_flat = jnp.pad(a_flat, ((0, rows_total - M), (0, 0)))

    offs = tuple(dy * Wp + dx for dy in range(3) for dx in range(3))
    out = pl.pallas_call(
        functools.partial(_conv3x3_kernel, offs=offs),
        out_shape=jax.ShapeDtypeStruct((Mp, Cout_p), jnp.float32),
        grid=(Mp // tm, Cout_p // tn),
        in_specs=[pl.BlockSpec(memory_space=pl.ANY),
                  pl.BlockSpec((9, Cp, tn), lambda i, j: (0, 0, j))],
        out_specs=pl.BlockSpec((tm, tn), lambda i, j: (i, j)),
        scratch_shapes=[pltpu.VMEM((abuf_rows, Cp), jnp.float32),
                        pltpu.SemaphoreType.DMA(())],
        compiler_params=pltpu.CompilerParams(
            dimension_semantics=("parallel", "arbitrary")),
    )(a_flat, w9)
    # Valid outputs live in the top-left HxW corner of each padded HpxWp grid.
    return out[:M].reshape(N, Hp, Wp, Cout_p)[:, :H, :W, :]


def batchnorm_lrelu(x2d, gamma, beta):
    """Training-mode BatchNorm2d (+LeakyReLU 0.2) over flattened [M, C] rows."""
    M, C = x2d.shape
    tm = min(512, _round_up(M, 8))
    Mp = _round_up(M, tm)
    xp = jnp.pad(x2d, ((0, Mp - M), (0, 0))) if Mp != M else x2d
    grid = (Mp // tm,)
    x_spec = pl.BlockSpec((tm, C), lambda i: (i, 0))
    v_spec = pl.BlockSpec((1, C), lambda i: (0, 0))

    s_sum, s_sq = pl.pallas_call(
        _bn_stats_kernel,
        out_shape=(jax.ShapeDtypeStruct((1, C), jnp.float32),
                   jax.ShapeDtypeStruct((1, C), jnp.float32)),
        grid=grid,
        in_specs=[x_spec],
        out_specs=(v_spec, v_spec),
        compiler_params=pltpu.CompilerParams(
            dimension_semantics=("arbitrary",)),
    )(xp)

    out = pl.pallas_call(
        functools.partial(_bn_apply_lrelu_kernel, count=float(M)),
        out_shape=jax.ShapeDtypeStruct((Mp, C), jnp.float32),
        grid=grid,
        in_specs=[x_spec, v_spec, v_spec, v_spec, v_spec],
        out_specs=x_spec,
        compiler_params=pltpu.CompilerParams(
            dimension_semantics=("parallel",)),
    )(xp, s_sum, s_sq, gamma, beta)
    return out[:M] if Mp != M else out


def instnorm(x3d, gamma, beta, *, relu, res=None):
    """InstanceNorm2d(affine=True) on [N, HW, C]; optional ReLU or residual add."""
    N, HW, C = x3d.shape
    thw = min(512, _round_up(HW, 8))
    HWp = _round_up(HW, thw)
    xp = jnp.pad(x3d, ((0, 0), (0, HWp - HW), (0, 0))) if HWp != HW else x3d
    grid = (N, HWp // thw)
    x_spec = pl.BlockSpec((1, thw, C), lambda n, h: (n, h, 0))
    s_spec = pl.BlockSpec((1, 1, C), lambda n, h: (n, 0, 0))
    p_spec = pl.BlockSpec((1, 1, C), lambda n, h: (0, 0, 0))

    s_sum, s_sq = pl.pallas_call(
        _in_stats_kernel,
        out_shape=(jax.ShapeDtypeStruct((N, 1, C), jnp.float32),
                   jax.ShapeDtypeStruct((N, 1, C), jnp.float32)),
        grid=grid,
        in_specs=[x_spec],
        out_specs=(s_spec, s_spec),
        compiler_params=pltpu.CompilerParams(
            dimension_semantics=("parallel", "arbitrary")),
    )(xp)

    count = float(HW)
    if res is None:
        out = pl.pallas_call(
            functools.partial(_in_apply_kernel, count=count, relu=relu),
            out_shape=jax.ShapeDtypeStruct((N, HWp, C), jnp.float32),
            grid=grid,
            in_specs=[x_spec, s_spec, s_spec, p_spec, p_spec],
            out_specs=x_spec,
            compiler_params=pltpu.CompilerParams(
                dimension_semantics=("parallel", "parallel")),
        )(xp, s_sum, s_sq, gamma, beta)
    else:
        resp = (jnp.pad(res, ((0, 0), (0, HWp - HW), (0, 0)))
                if HWp != HW else res)
        out = pl.pallas_call(
            functools.partial(_in_apply_add_kernel, count=count),
            out_shape=jax.ShapeDtypeStruct((N, HWp, C), jnp.float32),
            grid=grid,
            in_specs=[x_spec, x_spec, s_spec, s_spec, p_spec, p_spec],
            out_specs=x_spec,
            compiler_params=pltpu.CompilerParams(
                dimension_semantics=("parallel", "parallel")),
        )(xp, resp, s_sum, s_sq, gamma, beta)
    return out[:, :HW, :] if HWp != HW else out


# -------------------------------- Parameters ------------------------------- #

def init_params(key, input_channel, conv_dims):
    """Random weights, pre-laid-out for the Pallas kernels (bf16, 128-padded)."""
    keys = jax.random.split(key, len(conv_dims) + 2 * 6)
    ki = 0
    params = {"convs": [], "resblocks": []}
    prev = input_channel
    for i, d in enumerate(conv_dims):
        w = 0.05 * jax.random.normal(keys[ki], (d, prev, 4, 4), jnp.float32)
        ki += 1
        k_real = 16 * prev
        kp = _round_up(k_real, LANE)
        cout_p = _round_up(d, LANE)
        wmat = jnp.transpose(w, (2, 3, 1, 0)).reshape(k_real, d)      # (kh,kw,ci,co)
        wmat = jnp.pad(wmat, ((0, kp - k_real), (0, cout_p - d)))
        entry = {"wmat": wmat.astype(jnp.bfloat16),
                 "cin_real": prev, "cout_real": d}
        if i > 0:  # BatchNorm affine params (default init gamma=1, beta=0)
            entry["gamma"] = jnp.ones((1, cout_p), jnp.float32)
            entry["beta"] = jnp.zeros((1, cout_p), jnp.float32)
        params["convs"].append(entry)
        prev = d

    C = conv_dims[-1]
    Cp = _round_up(C, LANE)

    def make_w9(k):
        w = 0.05 * jax.random.normal(k, (C, C, 3, 3), jnp.float32)
        w9 = jnp.transpose(w, (2, 3, 1, 0)).reshape(9, C, C)          # (tap,ci,co)
        w9 = jnp.pad(w9, ((0, 0), (0, Cp - C), (0, Cp - C)))
        return w9.astype(jnp.bfloat16)

    for _ in range(6):
        w1 = make_w9(keys[ki]); ki += 1
        w2 = make_w9(keys[ki]); ki += 1
        params["resblocks"].append({
            "w1": w1,
            "g1": jnp.ones((1, 1, Cp), jnp.float32),
            "b1": jnp.zeros((1, 1, Cp), jnp.float32),
            "w2": w2,
            "g2": jnp.ones((1, 1, Cp), jnp.float32),
            "b2": jnp.zeros((1, 1, Cp), jnp.float32),
        })
    return params


# ------------------------------ Forward pass ------------------------------- #

def encoder_forward(x_nchw, params):
    x = jnp.transpose(x_nchw, (0, 2, 3, 1)).astype(jnp.float32)   # NCHW -> NHWC
    convs = params["convs"]

    # First downsampling conv with fused LeakyReLU(0.2) epilogue.
    p0 = convs[0]
    x = conv4x4_down(x[..., :p0["cin_real"]], p0["wmat"], act="lrelu")

    # Remaining downsampling convs: conv -> (tiled two-pass) BN -> LeakyReLU.
    for p in convs[1:]:
        x = conv4x4_down(x[..., :p["cin_real"]], p["wmat"], act="none")
        N, Ho, Wo, Cp = x.shape
        x = batchnorm_lrelu(x.reshape(N * Ho * Wo, Cp),
                            p["gamma"], p["beta"]).reshape(N, Ho, Wo, Cp)

    # 6 residual blocks: x + IN(conv3x3(ReLU(IN(conv3x3(x)))))
    for rb in params["resblocks"]:
        N, H, W, Cp = x.shape
        res = x
        h = conv3x3(x, rb["w1"])
        h = instnorm(h.reshape(N, H * W, Cp), rb["g1"], rb["b1"],
                     relu=True).reshape(N, H, W, Cp)
        h = conv3x3(h, rb["w2"])
        x = instnorm(h.reshape(N, H * W, Cp), rb["g2"], rb["b2"], relu=False,
                     res=res.reshape(N, H * W, Cp)).reshape(N, H, W, Cp)

    c_real = convs[-1]["cout_real"]
    return jnp.transpose(x[..., :c_real], (0, 3, 1, 2))           # NHWC -> NCHW


# ---------------------------------- Main ----------------------------------- #

if __name__ == "__main__":
    key = jax.random.PRNGKey(0)
    k_x, k_p = jax.random.split(key)

    batch, in_ch, H, W = 2, 4, 16, 16
    conv_dims = [8, 16]

    x = jax.random.normal(k_x, (batch, in_ch, H, W), jnp.float32)
    params = init_params(k_p, in_ch, conv_dims)

    fwd = jax.jit(lambda inp: encoder_forward(inp, params))
    out = fwd(x)
    jax.block_until_ready(out)

    expected = (batch, conv_dims[-1],
                H // (2 ** len(conv_dims)), W // (2 ** len(conv_dims)))
    assert out.shape == expected, (out.shape, expected)
    assert bool(jnp.all(jnp.isfinite(out)))
    print("KERNEL_OK")
</pallas_src>

<mosaic_0001>
module attributes {stable_mosaic.version = 11 : i64} {
  func.func @_gemm_kernel(%arg0: i32, %arg1: i32, %arg2: i32, %arg3: memref<128x128xbf16, #tpu.memory_space<vmem>>, %arg4: memref<128x128xbf16, #tpu.memory_space<vmem>>, %arg5: memref<128x128xf32, #tpu.memory_space<vmem>>, %arg6: memref<128x128xf32, #tpu.memory_space<vmem>>) attributes {dimension_semantics = [#tpu.dimension_semantics<parallel>, #tpu.dimension_semantics<parallel>, #tpu.dimension_semantics<arbitrary>], iteration_bounds = array<i64: 1, 1, 1>, scalar_prefetch = 0 : i64, scratch_operands = 1 : i64, tpu.core_type = #tpu.core_type<tc>, window_params = [{transform_indices = @transform_0, window_bounds = array<i64: 128, 128>}, {transform_indices = @transform_1, window_bounds = array<i64: 128, 128>}, {transform_indices = @transform_2, window_bounds = array<i64: 128, 128>}]} {
    %c0_i32 = arith.constant 0 : i32
    %0 = arith.cmpi eq, %arg2, %c0_i32 : i32
    %1 = arith.extui %0 : i1 to i32
    %c0_i32_0 = arith.constant 0 : i32
    %2 = arith.cmpi ne, %1, %c0_i32_0 : i32
    scf.if %2 {
      %cst_10 = arith.constant 0.000000e+00 : f32
      %12 = vector.broadcast %cst_10 : f32 to vector<128x128xf32>
      %c0_11 = arith.constant 0 : index
      %c0_12 = arith.constant 0 : index
      %13 = vector.load %arg6[%c0_11, %c0_12] : memref<128x128xf32, #tpu.memory_space<vmem>>, vector<128x128xf32>
      tpu.vector_store %arg6[%c0_11, %c0_12], %12 {strides = array<i32>} : memref<128x128xf32, #tpu.memory_space<vmem>>, vector<128x128xf32>,
    } else {
    }
    %c0 = arith.constant 0 : index
    %c0_1 = arith.constant 0 : index
    %3 = vector.load %arg6[%c0, %c0_1] : memref<128x128xf32, #tpu.memory_space<vmem>>, vector<128x128xf32>
    %c0_2 = arith.constant 0 : index
    %c0_3 = arith.constant 0 : index
    %4 = vector.load %arg3[%c0_2, %c0_3] : memref<128x128xbf16, #tpu.memory_space<vmem>>, vector<128x128xbf16>
    %c0_4 = arith.constant 0 : index
    %c0_5 = arith.constant 0 : index
    %5 = vector.load %arg4[%c0_4, %c0_5] : memref<128x128xbf16, #tpu.memory_space<vmem>>, vector<128x128xbf16>
    %cst = arith.constant dense<0.000000e+00> : vector<128x128xf32>
    %6 = tpu.matmul %4, %5, %cst {dimension_numbers = #tpu.dot_dimension_numbers<[1], [0], [0], [1], [0, 0, 1, 1], [], []>} : vector<128x128xbf16>, vector<128x128xbf16>, vector<128x128xf32> -> vector<128x128xf32>
    %7 = arith.addf %3, %6 : vector<128x128xf32>
    %c0_6 = arith.constant 0 : index
    %c0_7 = arith.constant 0 : index
    %8 = vector.load %arg6[%c0_6, %c0_7] : memref<128x128xf32, #tpu.memory_space<vmem>>, vector<128x128xf32>
    tpu.vector_store %arg6[%c0_6, %c0_7], %7 {strides = array<i32>} : memref<128x128xf32, #tpu.memory_space<vmem>>, vector<128x128xf32>,
    %c0_i32_8 = arith.constant 0 : i32
    %9 = arith.cmpi eq, %arg2, %c0_i32_8 : i32
    %10 = arith.extui %9 : i1 to i32
    %c0_i32_9 = arith.constant 0 : i32
    %11 = arith.cmpi ne, %10, %c0_i32_9 : i32
    scf.if %11 {
      %c0_10 = arith.constant 0 : index
      %c0_11 = arith.constant 0 : index
      %12 = vector.load %arg6[%c0_10, %c0_11] : memref<128x128xf32, #tpu.memory_space<vmem>>, vector<128x128xf32>
      %cst_12 = arith.constant 0.000000e+00 : f32
      %13 = vector.broadcast %cst_12 : f32 to vector<128x128xf32>
      %14 = arith.cmpf ogt, %12, %13 : vector<128x128xf32>
      %cst_13 = arith.constant 2.000000e-01 : f32
      %15 = vector.broadcast %cst_13 : f32 to vector<128x128xf32>
      %16 = arith.mulf %15, %12 : vector<128x128xf32>
      %17 = arith.select %14, %12, %16 : vector<128x128xi1>, vector<128x128xf32>
      %c0_14 = arith.constant 0 : index
      %c0_15 = arith.constant 0 : index
      %18 = vector.load %arg5[%c0_14, %c0_15] : memref<128x128xf32, #tpu.memory_space<vmem>>, vector<128x128xf32>
      tpu.vector_store %arg5[%c0_14, %c0_15], %17 {strides = array<i32>} : memref<128x128xf32, #tpu.memory_space<vmem>>, vector<128x128xf32>,
    } else {
    }
    return
  }
  func.func @transform_0(%arg0: i32, %arg1: i32, %arg2: i32) -> (i32, i32) {
    %c0_i32 = arith.constant 0 : i32
    return %arg0, %arg2 : i32, i32
  }
  func.func @transform_1(%arg0: i32, %arg1: i32, %arg2: i32) -> (i32, i32) {
    %c0_i32 = arith.constant 0 : i32
    return %arg2, %arg1 : i32, i32
  }
  func.func @transform_2(%arg0: i32, %arg1: i32, %arg2: i32) -> (i32, i32) {
    %c0_i32 = arith.constant 0 : i32
    return %arg0, %arg1 : i32, i32
  }
}

module attributes {stable_mosaic.version = 11 : i64} {
  func.func @_bn_stats_kernel(%arg0: i32, %arg1: memref<32x128xf32, #tpu.memory_space<vmem>>, %arg2: memref<1x128xf32, #tpu.memory_space<vmem>>, %arg3: memref<1x128xf32, #tpu.memory_space<vmem>>) attributes {dimension_semantics = [#tpu.dimension_semantics<arbitrary>], iteration_bounds = array<i64: 1>, scalar_prefetch = 0 : i64, scratch_operands = 0 : i64, tpu.core_type = #tpu.core_type<tc>, window_params = [{transform_indices = @transform_0, window_bounds = array<i64: 32, 128>}, {pipeline_mode = #tpu.pipeline_mode<synchronous>, transform_indices = @transform_1, window_bounds = array<i64: 1, 128>}, {pipeline_mode = #tpu.pipeline_mode<synchronous>, transform_indices = @transform_2, window_bounds = array<i64: 1, 128>}]} {
    %c0_i32 = arith.constant 0 : i32
    %0 = arith.cmpi eq, %arg0, %c0_i32 : i32
    %1 = arith.extui %0 : i1 to i32
    %c0_i32_0 = arith.constant 0 : i32
    %2 = arith.cmpi ne, %1, %c0_i32_0 : i32
    scf.if %2 {
      %cst_11 = arith.constant 0.000000e+00 : f32
      %15 = vector.broadcast %cst_11 : f32 to vector<1x128xf32>
      %c0_12 = arith.constant 0 : index
      %c0_13 = arith.constant 0 : index
      %16 = vector.load %arg2[%c0_12, %c0_13] : memref<1x128xf32, #tpu.memory_space<vmem>>, vector<1x128xf32>
      tpu.vector_store %arg2[%c0_12, %c0_13], %15 {strides = array<i32>} : memref<1x128xf32, #tpu.memory_space<vmem>>, vector<1x128xf32>,
      %cst_14 = arith.constant 0.000000e+00 : f32
      %17 = vector.broadcast %cst_14 : f32 to vector<1x128xf32>
      %c0_15 = arith.constant 0 : index
      %c0_16 = arith.constant 0 : index
      %18 = vector.load %arg3[%c0_15, %c0_16] : memref<1x128xf32, #tpu.memory_space<vmem>>, vector<1x128xf32>
      tpu.vector_store %arg3[%c0_15, %c0_16], %17 {strides = array<i32>} : memref<1x128xf32, #tpu.memory_space<vmem>>, vector<1x128xf32>,
    } else {
    }
    %c0 = arith.constant 0 : index
    %c0_1 = arith.constant 0 : index
    %3 = vector.load %arg1[%c0, %c0_1] : memref<32x128xf32, #tpu.memory_space<vmem>>, vector<32x128xf32>
    %c0_2 = arith.constant 0 : index
    %c0_3 = arith.constant 0 : index
    %4 = vector.load %arg2[%c0_2, %c0_3] : memref<1x128xf32, #tpu.memory_space<vmem>>, vector<1x128xf32>
    %cst = arith.constant dense<0.000000e+00> : vector<128xf32>
    %5 = vector.multi_reduction <add>, %3, %cst [0] : vector<32x128xf32> to vector<128xf32>
    %6 = vector.shape_cast %5 : vector<128xf32> to vector<1x128xf32>
    %7 = arith.addf %4, %6 : vector<1x128xf32>
    %c0_4 = arith.constant 0 : index
    %c0_5 = arith.constant 0 : index
    %8 = vector.load %arg2[%c0_4, %c0_5] : memref<1x128xf32, #tpu.memory_space<vmem>>, vector<1x128xf32>
    tpu.vector_store %arg2[%c0_4, %c0_5], %7 {strides = array<i32>} : memref<1x128xf32, #tpu.memory_space<vmem>>, vector<1x128xf32>,
    %c0_6 = arith.constant 0 : index
    %c0_7 = arith.constant 0 : index
    %9 = vector.load %arg3[%c0_6, %c0_7] : memref<1x128xf32, #tpu.memory_space<vmem>>, vector<1x128xf32>
    %10 = arith.mulf %3, %3 : vector<32x128xf32>
    %cst_8 = arith.constant dense<0.000000e+00> : vector<128xf32>
    %11 = vector.multi_reduction <add>, %10, %cst_8 [0] : vector<32x128xf32> to vector<128xf32>
    %12 = vector.shape_cast %11 : vector<128xf32> to vector<1x128xf32>
    %13 = arith.addf %9, %12 : vector<1x128xf32>
    %c0_9 = arith.constant 0 : index
    %c0_10 = arith.constant 0 : index
    %14 = vector.load %arg3[%c0_9, %c0_10] : memref<1x128xf32, #tpu.memory_space<vmem>>, vector<1x128xf32>
    tpu.vector_store %arg3[%c0_9, %c0_10], %13 {strides = array<i32>} : memref<1x128xf32, #tpu.memory_space<vmem>>, vector<1x128xf32>,
    return
  }
  func.func @transform_0(%arg0: i32) -> (i32, i32) {
    %c0_i32 = arith.constant 0 : i32
    %c0_i32_0 = arith.constant 0 : i32
    return %arg0, %c0_i32 : i32, i32
  }
  func.func @transform_1(%arg0: i32) -> (i32, i32) {
    %c0_i32 = arith.constant 0 : i32
    %c0_i32_0 = arith.constant 0 : i32
    %c0_i32_1 = arith.constant 0 : i32
    return %c0_i32, %c0_i32_0 : i32, i32
  }
  func.func @transform_2(%arg0: i32) -> (i32, i32) {
    %c0_i32 = arith.constant 0 : i32
    %c0_i32_0 = arith.constant 0 : i32
    %c0_i32_1 = arith.constant 0 : i32
    return %c0_i32, %c0_i32_0 : i32, i32
  }
}

module attributes {stable_mosaic.version = 11 : i64} {
  func.func @_gemm_kernel(%arg0: i32, %arg1: i32, %arg2: i32, %arg3: memref<32x128xbf16, #tpu.memory_space<vmem>>, %arg4: memref<128x128xbf16, #tpu.memory_space<vmem>>, %arg5: memref<32x128xf32, #tpu.memory_space<vmem>>, %arg6: memref<32x128xf32, #tpu.memory_space<vmem>>) attributes {dimension_semantics = [#tpu.dimension_semantics<parallel>, #tpu.dimension_semantics<parallel>, #tpu.dimension_semantics<arbitrary>], iteration_bounds = array<i64: 1, 1, 1>, scalar_prefetch = 0 : i64, scratch_operands = 1 : i64, tpu.core_type = #tpu.core_type<tc>, window_params = [{transform_indices = @transform_0, window_bounds = array<i64: 32, 128>}, {transform_indices = @transform_1, window_bounds = array<i64: 128, 128>}, {transform_indices = @transform_2, window_bounds = array<i64: 32, 128>}]} {
    %c0_i32 = arith.constant 0 : i32
    %0 = arith.cmpi eq, %arg2, %c0_i32 : i32
    %1 = arith.extui %0 : i1 to i32
    %c0_i32_0 = arith.constant 0 : i32
    %2 = arith.cmpi ne, %1, %c0_i32_0 : i32
    scf.if %2 {
      %cst_10 = arith.constant 0.000000e+00 : f32
      %12 = vector.broadcast %cst_10 : f32 to vector<32x128xf32>
      %c0_11 = arith.constant 0 : index
      %c0_12 = arith.constant 0 : index
      %13 = vector.load %arg6[%c0_11, %c0_12] : memref<32x128xf32, #tpu.memory_space<vmem>>, vector<32x128xf32>
      tpu.vector_store %arg6[%c0_11, %c0_12], %12 {strides = array<i32>} : memref<32x128xf32, #tpu.memory_space<vmem>>, vector<32x128xf32>,
    } else {
    }
    %c0 = arith.constant 0 : index
    %c0_1 = arith.constant 0 : index
    %3 = vector.load %arg6[%c0, %c0_1] : memref<32x128xf32, #tpu.memory_space<vmem>>, vector<32x128xf32>
    %c0_2 = arith.constant 0 : index
    %c0_3 = arith.constant 0 : index
    %4 = vector.load %arg3[%c0_2, %c0_3] : memref<32x128xbf16, #tpu.memory_space<vmem>>, vector<32x128xbf16>
    %c0_4 = arith.constant 0 : index
    %c0_5 = arith.constant 0 : index
    %5 = vector.load %arg4[%c0_4, %c0_5] : memref<128x128xbf16, #tpu.memory_space<vmem>>, vector<128x128xbf16>
    %cst = arith.constant dense<0.000000e+00> : vector<32x128xf32>
    %6 = tpu.matmul %4, %5, %cst {dimension_numbers = #tpu.dot_dimension_numbers<[1], [0], [0], [1], [0, 0, 1, 1], [], []>} : vector<32x128xbf16>, vector<128x128xbf16>, vector<32x128xf32> -> vector<32x128xf32>
    %7 = arith.addf %3, %6 : vector<32x128xf32>
    %c0_6 = arith.constant 0 : index
    %c0_7 = arith.constant 0 : index
    %8 = vector.load %arg6[%c0_6, %c0_7] : memref<32x128xf32, #tpu.memory_space<vmem>>, vector<32x128xf32>
    tpu.vector_store %arg6[%c0_6, %c0_7], %7 {strides = array<i32>} : memref<32x128xf32, #tpu.memory_space<vmem>>, vector<32x128xf32>,
    %c0_i32_8 = arith.constant 0 : i32
    %9 = arith.cmpi eq, %arg2, %c0_i32_8 : i32
    %10 = arith.extui %9 : i1 to i32
    %c0_i32_9 = arith.constant 0 : i32
    %11 = arith.cmpi ne, %10, %c0_i32_9 : i32
    scf.if %11 {
      %c0_10 = arith.constant 0 : index
      %c0_11 = arith.constant 0 : index
      %12 = vector.load %arg6[%c0_10, %c0_11] : memref<32x128xf32, #tpu.memory_space<vmem>>, vector<32x128xf32>
      %c0_12 = arith.constant 0 : index
      %c0_13 = arith.constant 0 : index
      %13 = vector.load %arg5[%c0_12, %c0_13] : memref<32x128xf32, #tpu.memory_space<vmem>>, vector<32x128xf32>
      tpu.vector_store %arg5[%c0_12, %c0_13], %12 {strides = array<i32>} : memref<32x128xf32, #tpu.memory_space<vmem>>, vector<32x128xf32>,
    } else {
    }
    return
  }
  func.func @transform_0(%arg0: i32, %arg1: i32, %arg2: i32) -> (i32, i32) {
    %c0_i32 = arith.constant 0 : i32
    return %arg0, %arg2 : i32, i32
  }
  func.func @transform_1(%arg0: i32, %arg1: i32, %arg2: i32) -> (i32, i32) {
    %c0_i32 = arith.constant 0 : i32
    return %arg2, %arg1 : i32, i32
  }
  func.func @transform_2(%arg0: i32, %arg1: i32, %arg2: i32) -> (i32, i32) {
    %c0_i32 = arith.constant 0 : i32
    return %arg0, %arg1 : i32, i32
  }
}

module attributes {stable_mosaic.version = 11 : i64} {
  func.func @_bn_apply_lrelu_kernel(%arg0: i32, %arg1: memref<32x128xf32, #tpu.memory_space<vmem>>, %arg2: memref<1x128xf32, #tpu.memory_space<vmem>>, %arg3: memref<1x128xf32, #tpu.memory_space<vmem>>, %arg4: memref<1x128xf32, #tpu.memory_space<vmem>>, %arg5: memref<1x128xf32, #tpu.memory_space<vmem>>, %arg6: memref<32x128xf32, #tpu.memory_space<vmem>>) attributes {dimension_semantics = [#tpu.dimension_semantics<parallel>], iteration_bounds = array<i64: 1>, scalar_prefetch = 0 : i64, scratch_operands = 0 : i64, tpu.core_type = #tpu.core_type<tc>, window_params = [{transform_indices = @transform_0, window_bounds = array<i64: 32, 128>}, {pipeline_mode = #tpu.pipeline_mode<synchronous>, transform_indices = @transform_1, window_bounds = array<i64: 1, 128>}, {pipeline_mode = #tpu.pipeline_mode<synchronous>, transform_indices = @transform_2, window_bounds = array<i64: 1, 128>}, {pipeline_mode = #tpu.pipeline_mode<synchronous>, transform_indices = @transform_3, window_bounds = array<i64: 1, 128>}, {pipeline_mode = #tpu.pipeline_mode<synchronous>, transform_indices = @transform_4, window_bounds = array<i64: 1, 128>}, {transform_indices = @transform_5, window_bounds = array<i64: 32, 128>}]} {
    %c0 = arith.constant 0 : index
    %c0_0 = arith.constant 0 : index
    %0 = vector.load %arg2[%c0, %c0_0] : memref<1x128xf32, #tpu.memory_space<vmem>>, vector<1x128xf32>
    %cst = arith.constant 3.125000e-02 : f32
    %1 = vector.broadcast %cst : f32 to vector<1x128xf32>
    %2 = arith.mulf %0, %1 : vector<1x128xf32>
    %c0_1 = arith.constant 0 : index
    %c0_2 = arith.constant 0 : index
    %3 = vector.load %arg3[%c0_1, %c0_2] : memref<1x128xf32, #tpu.memory_space<vmem>>, vector<1x128xf32>
    %cst_3 = arith.constant 3.125000e-02 : f32
    %4 = vector.broadcast %cst_3 : f32 to vector<1x128xf32>
    %5 = arith.mulf %3, %4 : vector<1x128xf32>
    %6 = arith.mulf %2, %2 : vector<1x128xf32>
    %7 = arith.subf %5, %6 : vector<1x128xf32>
    %cst_4 = arith.constant 0.000000e+00 : f32
    %8 = vector.broadcast %cst_4 : f32 to vector<1x128xf32>
    %9 = arith.maximumf %7, %8 : vector<1x128xf32>
    %c0_5 = arith.constant 0 : index
    %c0_6 = arith.constant 0 : index
    %10 = vector.load %arg1[%c0_5, %c0_6] : memref<32x128xf32, #tpu.memory_space<vmem>>, vector<32x128xf32>
    %11 = vector.broadcast %2 : vector<1x128xf32> to vector<32x128xf32>
    %12 = arith.subf %10, %11 : vector<32x128xf32>
    %cst_7 = arith.constant 9.99999974E-6 : f32
    %13 = vector.broadcast %cst_7 : f32 to vector<1x128xf32>
    %14 = arith.addf %9, %13 : vector<1x128xf32>
    %15 = math.rsqrt %14 : vector<1x128xf32>
    %16 = vector.broadcast %15 : vector<1x128xf32> to vector<32x128xf32>
    %17 = arith.mulf %12, %16 : vector<32x128xf32>
    %c0_8 = arith.constant 0 : index
    %c0_9 = arith.constant 0 : index
    %18 = vector.load %arg4[%c0_8, %c0_9] : memref<1x128xf32, #tpu.memory_space<vmem>>, vector<1x128xf32>
    %19 = vector.broadcast %18 : vector<1x128xf32> to vector<32x128xf32>
    %20 = arith.mulf %17, %19 : vector<32x128xf32>
    %c0_10 = arith.constant 0 : index
    %c0_11 = arith.constant 0 : index
    %21 = vector.load %arg5[%c0_10, %c0_11] : memref<1x128xf32, #tpu.memory_space<vmem>>, vector<1x128xf32>
    %22 = vector.broadcast %21 : vector<1x128xf32> to vector<32x128xf32>
    %23 = arith.addf %20, %22 : vector<32x128xf32>
    %cst_12 = arith.constant 0.000000e+00 : f32
    %24 = vector.broadcast %cst_12 : f32 to vector<32x128xf32>
    %25 = arith.cmpf ogt, %23, %24 : vector<32x128xf32>
    %cst_13 = arith.constant 2.000000e-01 : f32
    %26 = vector.broadcast %cst_13 : f32 to vector<32x128xf32>
    %27 = arith.mulf %26, %23 : vector<32x128xf32>
    %28 = arith.select %25, %23, %27 : vector<32x128xi1>, vector<32x128xf32>
    %c0_14 = arith.constant 0 : index
    %c0_15 = arith.constant 0 : index
    %29 = vector.load %arg6[%c0_14, %c0_15] : memref<32x128xf32, #tpu.memory_space<vmem>>, vector<32x128xf32>
    tpu.vector_store %arg6[%c0_14, %c0_15], %28 {strides = array<i32>} : memref<32x128xf32, #tpu.memory_space<vmem>>, vector<32x128xf32>,
    return
  }
  func.func @transform_0(%arg0: i32) -> (i32, i32) {
    %c0_i32 = arith.constant 0 : i32
    %c0_i32_0 = arith.constant 0 : i32
    return %arg0, %c0_i32 : i32, i32
  }
  func.func @transform_1(%arg0: i32) -> (i32, i32) {
    %c0_i32 = arith.constant 0 : i32
    %c0_i32_0 = arith.constant 0 : i32
    %c0_i32_1 = arith.constant 0 : i32
    return %c0_i32, %c0_i32_0 : i32, i32
  }
  func.func @transform_2(%arg0: i32) -> (i32, i32) {
    %c0_i32 = arith.constant 0 : i32
    %c0_i32_0 = arith.constant 0 : i32
    %c0_i32_1 = arith.constant 0 : i32
    return %c0_i32, %c0_i32_0 : i32, i32
  }
  func.func @transform_3(%arg0: i32) -> (i32, i32) {
    %c0_i32 = arith.constant 0 : i32
    %c0_i32_0 = arith.constant 0 : i32
    %c0_i32_1 = arith.constant 0 : i32
    return %c0_i32, %c0_i32_0 : i32, i32
  }
  func.func @transform_4(%arg0: i32) -> (i32, i32) {
    %c0_i32 = arith.constant 0 : i32
    %c0_i32_0 = arith.constant 0 : i32
    %c0_i32_1 = arith.constant 0 : i32
    return %c0_i32, %c0_i32_0 : i32, i32
  }
  func.func @transform_5(%arg0: i32) -> (i32, i32) {
    %c0_i32 = arith.constant 0 : i32
    %c0_i32_0 = arith.constant 0 : i32
    return %arg0, %c0_i32 : i32, i32
  }
}

module attributes {stable_mosaic.version = 11 : i64} {
  func.func @_conv3x3_kernel(%arg0: i32, %arg1: i32, %arg2: memref<96x128xf32, #tpu.memory_space<any>>, %arg3: memref<9x128x128xbf16, #tpu.memory_space<vmem>>, %arg4: memref<80x128xf32, #tpu.memory_space<vmem>>, %arg5: memref<96x128xf32, #tpu.memory_space<vmem>>, %arg6: memref<!tpu.dma_semaphore, #tpu.memory_space<semaphore_mem>>) attributes {dimension_semantics = [#tpu.dimension_semantics<parallel>, #tpu.dimension_semantics<arbitrary>], iteration_bounds = array<i64: 1, 1>, scalar_prefetch = 0 : i64, scratch_operands = 2 : i64, tpu.core_type = #tpu.core_type<tc>, window_params = [{}, {transform_indices = @transform_1, window_bounds = array<i64: 9, 128, 128>}, {transform_indices = @transform_2, window_bounds = array<i64: 80, 128>}]} {
    %c0_i32 = arith.constant 0 : i32
    %0 = arith.cmpi eq, %arg1, %c0_i32 : i32
    %1 = arith.extui %0 : i1 to i32
    %c0_i32_0 = arith.constant 0 : i32
    %2 = arith.cmpi ne, %1, %c0_i32_0 : i32
    scf.if %2 {
      %c80_i32 = arith.constant 80 : i32
      %77 = arith.muli %arg0, %c80_i32 : i32
      %c0_i32_81 = arith.constant 0 : i32
      %78 = tpu.memref_slice %arg2[%77, %c0_i32_81] : memref<96x128xf32, #tpu.memory_space<any>> -> memref<96x128xf32, #tpu.memory_space<any>>
      tpu.enqueue_dma source(%78 : memref<96x128xf32, #tpu.memory_space<any>>) target(%arg5 : memref<96x128xf32, #tpu.memory_space<vmem>>) target_semaphore(%arg6 : memref<!tpu.dma_semaphore, #tpu.memory_space<semaphore_mem>>)
      %c0_i32_82 = arith.constant 0 : i32
      %79 = tpu.memref_slice %arg2[%77, %c0_i32_82] : memref<96x128xf32, #tpu.memory_space<any>> -> memref<96x128xf32, #tpu.memory_space<any>>
      tpu.wait_dma2 semaphore(%arg6 : memref<!tpu.dma_semaphore, #tpu.memory_space<semaphore_mem>>) src(%79 : memref<96x128xf32, #tpu.memory_space<any>>) dst(%arg5 : memref<96x128xf32, #tpu.memory_space<vmem>>)
    } else {
    }
    %cst = arith.constant 0.000000e+00 : f32
    %3 = vector.broadcast %cst : f32 to vector<80x128xf32>
    %c0 = arith.constant 0 : index
    %c0_1 = arith.constant 0 : index
    %4 = vector.load %arg4[%c0, %c0_1] : memref<80x128xf32, #tpu.memory_space<vmem>>, vector<80x128xf32>
    tpu.vector_store %arg4[%c0, %c0_1], %3 {strides = array<i32>} : memref<80x128xf32, #tpu.memory_space<vmem>>, vector<80x128xf32>,
    %c0_2 = arith.constant 0 : index
    %c0_3 = arith.constant 0 : index
    %5 = vector.load %arg5[%c0_2, %c0_3] : memref<96x128xf32, #tpu.memory_space<vmem>>, vector<80x128xf32>
    %6 = arith.truncf %5 : vector<80x128xf32> to vector<80x128xbf16>
    %c0_4 = arith.constant 0 : index
    %c0_5 = arith.constant 0 : index
    %7 = vector.load %arg4[%c0_4, %c0_5] : memref<80x128xf32, #tpu.memory_space<vmem>>, vector<80x128xf32>
    %c0_6 = arith.constant 0 : index
    %c0_7 = arith.constant 0 : index
    %c0_8 = arith.constant 0 : index
    %8 = vector.load %arg3[%c0_6, %c0_7, %c0_8] : memref<9x128x128xbf16, #tpu.memory_space<vmem>>, vector<1x128x128xbf16>
    %9 = vector.shape_cast %8 : vector<1x128x128xbf16> to vector<128x128xbf16>
    %cst_9 = arith.constant dense<0.000000e+00> : vector<80x128xf32>
    %10 = tpu.matmul %6, %9, %cst_9 {dimension_numbers = #tpu.dot_dimension_numbers<[1], [0], [0], [1], [0, 0, 1, 1], [], []>} : vector<80x128xbf16>, vector<128x128xbf16>, vector<80x128xf32> -> vector<80x128xf32>
    %11 = arith.addf %7, %10 : vector<80x128xf32>
    %c0_10 = arith.constant 0 : index
    %c0_11 = arith.constant 0 : index
    %12 = vector.load %arg4[%c0_10, %c0_11] : memref<80x128xf32, #tpu.memory_space<vmem>>, vector<80x128xf32>
    tpu.vector_store %arg4[%c0_10, %c0_11], %11 {strides = array<i32>} : memref<80x128xf32, #tpu.memory_space<vmem>>, vector<80x128xf32>,
    %c1 = arith.constant 1 : index
    %c0_12 = arith.constant 0 : index
    %13 = vector.load %arg5[%c1, %c0_12] : memref<96x128xf32, #tpu.memory_space<vmem>>, vector<80x128xf32>
    %14 = arith.truncf %13 : vector<80x128xf32> to vector<80x128xbf16>
    %c0_13 = arith.constant 0 : index
    %c0_14 = arith.constant 0 : index
    %15 = vector.load %arg4[%c0_13, %c0_14] : memref<80x128xf32, #tpu.memory_space<vmem>>, vector<80x128xf32>
    %c1_15 = arith.constant 1 : index
    %c0_16 = arith.constant 0 : index
    %c0_17 = arith.constant 0 : index
    %16 = vector.load %arg3[%c1_15, %c0_16, %c0_17] : memref<9x128x128xbf16, #tpu.memory_space<vmem>>, vector<1x128x128xbf16>
    %17 = vector.shape_cast %16 : vector<1x128x128xbf16> to vector<128x128xbf16>
    %cst_18 = arith.constant dense<0.000000e+00> : vector<80x128xf32>
    %18 = tpu.matmul %14, %17, %cst_18 {dimension_numbers = #tpu.dot_dimension_numbers<[1], [0], [0], [1], [0, 0, 1, 1], [], []>} : vector<80x128xbf16>, vector<128x128xbf16>, vector<80x128xf32> -> vector<80x128xf32>
    %19 = arith.addf %15, %18 : vector<80x128xf32>
    %c0_19 = arith.constant 0 : index
    %c0_20 = arith.constant 0 : index
    %20 = vector.load %arg4[%c0_19, %c0_20] : memref<80x128xf32, #tpu.memory_space<vmem>>, vector<80x128xf32>
    tpu.vector_store %arg4[%c0_19, %c0_20], %19 {strides = array<i32>} : memref<80x128xf32, #tpu.memory_space<vmem>>, vector<80x128xf32>,
    %c2 = arith.constant 2 : index
    %c0_21 = arith.constant 0 : index
    %21 = vector.load %arg5[%c2, %c0_21] : memref<96x128xf32, #tpu.memory_space<vmem>>, vector<80x128xf32>
    %22 = arith.truncf %21 : vector<80x128xf32> to vector<80x128xbf16>
    %c0_22 = arith.constant 0 : index
    %c0_23 = arith.constant 0 : index
    %23 = vector.load %arg4[%c0_22, %c0_23] : memref<80x128xf32, #tpu.memory_space<vmem>>, vector<80x128xf32>
    %c2_24 = arith.constant 2 : index
    %c0_25 = arith.constant 0 : index
    %c0_26 = arith.constant 0 : index
    %24 = vector.load %arg3[%c2_24, %c0_25, %c0_26] : memref<9x128x128xbf16, #tpu.memory_space<vmem>>, vector<1x128x128xbf16>
    %25 = vector.shape_cast %24 : vector<1x128x128xbf16> to vector<128x128xbf16>
    %cst_27 = arith.constant dense<0.000000e+00> : vector<80x128xf32>
    %26 = tpu.matmul %22, %25, %cst_27 {dimension_numbers = #tpu.dot_dimension_numbers<[1], [0], [0], [1], [0, 0, 1, 1], [], []>} : vector<80x128xbf16>, vector<128x128xbf16>, vector<80x128xf32> -> vector<80x128xf32>
    %27 = arith.addf %23, %26 : vector<80x128xf32>
    %c0_28 = arith.constant 0 : index
    %c0_29 = arith.constant 0 : index
    %28 = vector.load %arg4[%c0_28, %c0_29] : memref<80x128xf32, #tpu.memory_space<vmem>>, vector<80x128xf32>
    tpu.vector_store %arg4[%c0_28, %c0_29], %27 {strides = array<i32>} : memref<80x128xf32, #tpu.memory_space<vmem>>, vector<80x128xf32>,
    %c6 = arith.constant 6 : index
    %c0_30 = arith.constant 0 : index
    %29 = vector.load %arg5[%c6, %c0_30] : memref<96x128xf32, #tpu.memory_space<vmem>>, vector<80x128xf32>
    %30 = arith.truncf %29 : vector<80x128xf32> to vector<80x128xbf16>
    %c0_31 = arith.constant 0 : index
    %c0_32 = arith.constant 0 : index
    %31 = vector.load %arg4[%c0_31, %c0_32] : memref<80x128xf32, #tpu.memory_space<vmem>>, vector<80x128xf32>
    %c3 = arith.constant 3 : index
    %c0_33 = arith.constant 0 : index
    %c0_34 = arith.constant 0 : index
    %32 = vector.load %arg3[%c3, %c0_33, %c0_34] : memref<9x128x128xbf16, #tpu.memory_space<vmem>>, vector<1x128x128xbf16>
    %33 = vector.shape_cast %32 : vector<1x128x128xbf16> to vector<128x128xbf16>
    %cst_35 = arith.constant dense<0.000000e+00> : vector<80x128xf32>
    %34 = tpu.matmul %30, %33, %cst_35 {dimension_numbers = #tpu.dot_dimension_numbers<[1], [0], [0], [1], [0, 0, 1, 1], [], []>} : vector<80x128xbf16>, vector<128x128xbf16>, vector<80x128xf32> -> vector<80x128xf32>
    %35 = arith.addf %31, %34 : vector<80x128xf32>
    %c0_36 = arith.constant 0 : index
    %c0_37 = arith.constant 0 : index
    %36 = vector.load %arg4[%c0_36, %c0_37] : memref<80x128xf32, #tpu.memory_space<vmem>>, vector<80x128xf32>
    tpu.vector_store %arg4[%c0_36, %c0_37], %35 {strides = array<i32>} : memref<80x128xf32, #tpu.memory_space<vmem>>, vector<80x128xf32>,
    %c7 = arith.constant 7 : index
    %c0_38 = arith.constant 0 : index
    %37 = vector.load %arg5[%c7, %c0_38] : memref<96x128xf32, #tpu.memory_space<vmem>>, vector<80x128xf32>
    %38 = arith.truncf %37 : vector<80x128xf32> to vector<80x128xbf16>
    %c0_39 = arith.constant 0 : index
    %c0_40 = arith.constant 0 : index
    %39 = vector.load %arg4[%c0_39, %c0_40] : memref<80x128xf32, #tpu.memory_space<vmem>>, vector<80x128xf32>
    %c4 = arith.constant 4 : index
    %c0_41 = arith.constant 0 : index
    %c0_42 = arith.constant 0 : index
    %40 = vector.load %arg3[%c4, %c0_41, %c0_42] : memref<9x128x128xbf16, #tpu.memory_space<vmem>>, vector<1x128x128xbf16>
    %41 = vector.shape_cast %40 : vector<1x128x128xbf16> to vector<128x128xbf16>
    %cst_43 = arith.constant dense<0.000000e+00> : vector<80x128xf32>
    %42 = tpu.matmul %38, %41, %cst_43 {dimension_numbers = #tpu.dot_dimension_numbers<[1], [0], [0], [1], [0, 0, 1, 1], [], []>} : vector<80x128xbf16>, vector<128x128xbf16>, vector<80x128xf32> -> vector<80x128xf32>
    %43 = arith.addf %39, %42 : vector<80x128xf32>
    %c0_44 = arith.constant 0 : index
    %c0_45 = arith.constant 0 : index
    %44 = vector.load %arg4[%c0_44, %c0_45] : memref<80x128xf32, #tpu.memory_space<vmem>>, vector<80x128xf32>
    tpu.vector_store %arg4[%c0_44, %c0_45], %43 {strides = array<i32>} : memref<80x128xf32, #tpu.memory_space<vmem>>, vector<80x128xf32>,
    %c8 = arith.constant 8 : index
    %c0_46 = arith.constant 0 : index
    %45 = vector.load %arg5[%c8, %c0_46] : memref<96x128xf32, #tpu.memory_space<vmem>>, vector<80x128xf32>
    %46 = arith.truncf %45 : vector<80x128xf32> to vector<80x128xbf16>
    %c0_47 = arith.constant 0 : index
    %c0_48 = arith.constant 0 : index
    %47 = vector.load %arg4[%c0_47, %c0_48] : memref<80x128xf32, #tpu.memory_space<vmem>>, vector<80x128xf32>
    %c5 = arith.constant 5 : index
    %c0_49 = arith.constant 0 : index
    %c0_50 = arith.constant 0 : index
    %48 = vector.load %arg3[%c5, %c0_49, %c0_50] : memref<9x128x128xbf16, #tpu.memory_space<vmem>>, vector<1x128x128xbf16>
    %49 = vector.shape_cast %48 : vector<1x128x128xbf16> to vector<128x128xbf16>
    %cst_51 = arith.constant dense<0.000000e+00> : vector<80x128xf32>
    %50 = tpu.matmul %46, %49, %cst_51 {dimension_numbers = #tpu.dot_dimension_numbers<[1], [0], [0], [1], [0, 0, 1, 1], [], []>} : vector<80x128xbf16>, vector<128x128xbf16>, vector<80x128xf32> -> vector<80x128xf32>
    %51 = arith.addf %47, %50 : vector<80x128xf32>
    %c0_52 = arith.constant 0 : index
    %c0_53 = arith.constant 0 : index
    %52 = vector.load %arg4[%c0_52, %c0_53] : memref<80x128xf32, #tpu.memory_space<vmem>>, vector<80x128xf32>
    tpu.vector_store %arg4[%c0_52, %c0_53], %51 {strides = array<i32>} : memref<80x128xf32, #tpu.memory_space<vmem>>, vector<80x128xf32>,
    %c12 = arith.constant 12 : index
    %c0_54 = arith.constant 0 : index
    %53 = vector.load %arg5[%c12, %c0_54] : memref<96x128xf32, #tpu.memory_space<vmem>>, vector<80x128xf32>
    %54 = arith.truncf %53 : vector<80x128xf32> to vector<80x128xbf16>
    %c0_55 = arith.constant 0 : index
    %c0_56 = arith.constant 0 : index
    %55 = vector.load %arg4[%c0_55, %c0_56] : memref<80x128xf32, #tpu.memory_space<vmem>>, vector<80x128xf32>
    %c6_57 = arith.constant 6 : index
    %c0_58 = arith.constant 0 : index
    %c0_59 = arith.constant 0 : index
    %56 = vector.load %arg3[%c6_57, %c0_58, %c0_59] : memref<9x128x128xbf16, #tpu.memory_space<vmem>>, vector<1x128x128xbf16>
    %57 = vector.shape_cast %56 : vector<1x128x128xbf16> to vector<128x128xbf16>
    %cst_60 = arith.constant dense<0.000000e+00> : vector<80x128xf32>
    %58 = tpu.matmul %54, %57, %cst_60 {dimension_numbers = #tpu.dot_dimension_numbers<[1], [0], [0], [1], [0, 0, 1, 1], [], []>} : vector<80x128xbf16>, vector<128x128xbf16>, vector<80x128xf32> -> vector<80x128xf32>
    %59 = arith.addf %55, %58 : vector<80x128xf32>
    %c0_61 = arith.constant 0 : index
    %c0_62 = arith.constant 0 : index
    %60 = vector.load %arg4[%c0_61, %c0_62] : memref<80x128xf32, #tpu.memory_space<vmem>>, vector<80x128xf32>
    tpu.vector_store %arg4[%c0_61, %c0_62], %59 {strides = array<i32>} : memref<80x128xf32, #tpu.memory_space<vmem>>, vector<80x128xf32>,
    %c13 = arith.constant 13 : index
    %c0_63 = arith.constant 0 : index
    %61 = vector.load %arg5[%c13, %c0_63] : memref<96x128xf32, #tpu.memory_space<vmem>>, vector<80x128xf32>
    %62 = arith.truncf %61 : vector<80x128xf32> to vector<80x128xbf16>
    %c0_64 = arith.constant 0 : index
    %c0_65 = arith.constant 0 : index
    %63 = vector.load %arg4[%c0_64, %c0_65] : memref<80x128xf32, #tpu.memory_space<vmem>>, vector<80x128xf32>
    %c7_66 = arith.constant 7 : index
    %c0_67 = arith.constant 0 : index
    %c0_68 = arith.constant 0 : index
    %64 = vector.load %arg3[%c7_66, %c0_67, %c0_68] : memref<9x128x128xbf16, #tpu.memory_space<vmem>>, vector<1x128x128xbf16>
    %65 = vector.shape_cast %64 : vector<1x128x128xbf16> to vector<128x128xbf16>
    %cst_69 = arith.constant dense<0.000000e+00> : vector<80x128xf32>
    %66 = tpu.matmul %62, %65, %cst_69 {dimension_numbers = #tpu.dot_dimension_numbers<[1], [0], [0], [1], [0, 0, 1, 1], [], []>} : vector<80x128xbf16>, vector<128x128xbf16>, vector<80x128xf32> -> vector<80x128xf32>
    %67 = arith.addf %63, %66 : vector<80x128xf32>
    %c0_70 = arith.constant 0 : index
    %c0_71 = arith.constant 0 : index
    %68 = vector.load %arg4[%c0_70, %c0_71] : memref<80x128xf32, #tpu.memory_space<vmem>>, vector<80x128xf32>
    tpu.vector_store %arg4[%c0_70, %c0_71], %67 {strides = array<i32>} : memref<80x128xf32, #tpu.memory_space<vmem>>, vector<80x128xf32>,
    %c14 = arith.constant 14 : index
    %c0_72 = arith.constant 0 : index
    %69 = vector.load %arg5[%c14, %c0_72] : memref<96x128xf32, #tpu.memory_space<vmem>>, vector<80x128xf32>
    %70 = arith.truncf %69 : vector<80x128xf32> to vector<80x128xbf16>
    %c0_73 = arith.constant 0 : index
    %c0_74 = arith.constant 0 : index
    %71 = vector.load %arg4[%c0_73, %c0_74] : memref<80x128xf32, #tpu.memory_space<vmem>>, vector<80x128xf32>
    %c8_75 = arith.constant 8 : index
    %c0_76 = arith.constant 0 : index
    %c0_77 = arith.constant 0 : index
    %72 = vector.load %arg3[%c8_75, %c0_76, %c0_77] : memref<9x128x128xbf16, #tpu.memory_space<vmem>>, vector<1x128x128xbf16>
    %73 = vector.shape_cast %72 : vector<1x128x128xbf16> to vector<128x128xbf16>
    %cst_78 = arith.constant dense<0.000000e+00> : vector<80x128xf32>
    %74 = tpu.matmul %70, %73, %cst_78 {dimension_numbers = #tpu.dot_dimension_numbers<[1], [0], [0], [1], [0, 0, 1, 1], [], []>} : vector<80x128xbf16>, vector<128x128xbf16>, vector<80x128xf32> -> vector<80x128xf32>
    %75 = arith.addf %71, %74 : vector<80x128xf32>
    %c0_79 = arith.constant 0 : index
    %c0_80 = arith.constant 0 : index
    %76 = vector.load %arg4[%c0_79, %c0_80] : memref<80x128xf32, #tpu.memory_space<vmem>>, vector<80x128xf32>
    tpu.vector_store %arg4[%c0_79, %c0_80], %75 {strides = array<i32>} : memref<80x128xf32, #tpu.memory_space<vmem>>, vector<80x128xf32>,
    return
  }
  func.func @transform_1(%arg0: i32, %arg1: i32) -> (i32, i32, i32) {
    %c0_i32 = arith.constant 0 : i32
    %c0_i32_0 = arith.constant 0 : i32
    %c0_i32_1 = arith.constant 0 : i32
    return %c0_i32, %c0_i32_0, %arg1 : i32, i32, i32
  }
  func.func @transform_2(%arg0: i32, %arg1: i32) -> (i32, i32) {
    %c0_i32 = arith.constant 0 : i32
    return %arg0, %arg1 : i32, i32
  }
}

module attributes {stable_mosaic.version = 11 : i64} {
  func.func @_in_stats_kernel(%arg0: i32, %arg1: i32, %arg2: memref<1x16x128xf32, #tpu.memory_space<vmem>>, %arg3: memref<1x1x128xf32, #tpu.memory_space<vmem>>, %arg4: memref<1x1x128xf32, #tpu.memory_space<vmem>>) attributes {dimension_semantics = [#tpu.dimension_semantics<parallel>, #tpu.dimension_semantics<arbitrary>], iteration_bounds = array<i64: 2, 1>, scalar_prefetch = 0 : i64, scratch_operands = 0 : i64, tpu.core_type = #tpu.core_type<tc>, window_params = [{transform_indices = @transform_0, window_bounds = array<i64: 1, 16, 128>}, {transform_indices = @transform_1, window_bounds = array<i64: 1, 1, 128>}, {transform_indices = @transform_2, window_bounds = array<i64: 1, 1, 128>}]} {
    %c0_i32 = arith.constant 0 : i32
    %0 = arith.cmpi eq, %arg1, %c0_i32 : i32
    %1 = arith.extui %0 : i1 to i32
    %c0_i32_0 = arith.constant 0 : i32
    %2 = arith.cmpi ne, %1, %c0_i32_0 : i32
    scf.if %2 {
      %cst_16 = arith.constant 0.000000e+00 : f32
      %15 = vector.broadcast %cst_16 : f32 to vector<1x1x128xf32>
      %c0_17 = arith.constant 0 : index
      %c0_18 = arith.constant 0 : index
      %c0_19 = arith.constant 0 : index
      %16 = vector.load %arg3[%c0_17, %c0_18, %c0_19] : memref<1x1x128xf32, #tpu.memory_space<vmem>>, vector<1x1x128xf32>
      tpu.vector_store %arg3[%c0_17, %c0_18, %c0_19], %15 {strides = array<i32>} : memref<1x1x128xf32, #tpu.memory_space<vmem>>, vector<1x1x128xf32>,
      %cst_20 = arith.constant 0.000000e+00 : f32
      %17 = vector.broadcast %cst_20 : f32 to vector<1x1x128xf32>
      %c0_21 = arith.constant 0 : index
      %c0_22 = arith.constant 0 : index
      %c0_23 = arith.constant 0 : index
      %18 = vector.load %arg4[%c0_21, %c0_22, %c0_23] : memref<1x1x128xf32, #tpu.memory_space<vmem>>, vector<1x1x128xf32>
      tpu.vector_store %arg4[%c0_21, %c0_22, %c0_23], %17 {strides = array<i32>} : memref<1x1x128xf32, #tpu.memory_space<vmem>>, vector<1x1x128xf32>,
    } else {
    }
    %c0 = arith.constant 0 : index
    %c0_1 = arith.constant 0 : index
    %c0_2 = arith.constant 0 : index
    %3 = vector.load %arg2[%c0, %c0_1, %c0_2] : memref<1x16x128xf32, #tpu.memory_space<vmem>>, vector<1x16x128xf32>
    %c0_3 = arith.constant 0 : index
    %c0_4 = arith.constant 0 : index
    %c0_5 = arith.constant 0 : index
    %4 = vector.load %arg3[%c0_3, %c0_4, %c0_5] : memref<1x1x128xf32, #tpu.memory_space<vmem>>, vector<1x1x128xf32>
    %cst = arith.constant dense<0.000000e+00> : vector<1x128xf32>
    %5 = vector.multi_reduction <add>, %3, %cst [1] : vector<1x16x128xf32> to vector<1x128xf32>
    %6 = vector.shape_cast %5 : vector<1x128xf32> to vector<1x1x128xf32>
    %7 = arith.addf %4, %6 : vector<1x1x128xf32>
    %c0_6 = arith.constant 0 : index
    %c0_7 = arith.constant 0 : index
    %c0_8 = arith.constant 0 : index
    %8 = vector.load %arg3[%c0_6, %c0_7, %c0_8] : memref<1x1x128xf32, #tpu.memory_space<vmem>>, vector<1x1x128xf32>
    tpu.vector_store %arg3[%c0_6, %c0_7, %c0_8], %7 {strides = array<i32>} : memref<1x1x128xf32, #tpu.memory_space<vmem>>, vector<1x1x128xf32>,
    %c0_9 = arith.constant 0 : index
    %c0_10 = arith.constant 0 : index
    %c0_11 = arith.constant 0 : index
    %9 = vector.load %arg4[%c0_9, %c0_10, %c0_11] : memref<1x1x128xf32, #tpu.memory_space<vmem>>, vector<1x1x128xf32>
    %10 = arith.mulf %3, %3 : vector<1x16x128xf32>
    %cst_12 = arith.constant dense<0.000000e+00> : vector<1x128xf32>
    %11 = vector.multi_reduction <add>, %10, %cst_12 [1] : vector<1x16x128xf32> to vector<1x128xf32>
    %12 = vector.shape_cast %11 : vector<1x128xf32> to vector<1x1x128xf32>
    %13 = arith.addf %9, %12 : vector<1x1x128xf32>
    %c0_13 = arith.constant 0 : index
    %c0_14 = arith.constant 0 : index
    %c0_15 = arith.constant 0 : index
    %14 = vector.load %arg4[%c0_13, %c0_14, %c0_15] : memref<1x1x128xf32, #tpu.memory_space<vmem>>, vector<1x1x128xf32>
    tpu.vector_store %arg4[%c0_13, %c0_14, %c0_15], %13 {strides = array<i32>} : memref<1x1x128xf32, #tpu.memory_space<vmem>>, vector<1x1x128xf32>,
    return
  }
  func.func @transform_0(%arg0: i32, %arg1: i32) -> (i32, i32, i32) {
    %c0_i32 = arith.constant 0 : i32
    %c0_i32_0 = arith.constant 0 : i32
    return %arg0, %arg1, %c0_i32 : i32, i32, i32
  }
  func.func @transform_1(%arg0: i32, %arg1: i32) -> (i32, i32, i32) {
    %c0_i32 = arith.constant 0 : i32
    %c0_i32_0 = arith.constant 0 : i32
    %c0_i32_1 = arith.constant 0 : i32
    return %arg0, %c0_i32, %c0_i32_0 : i32, i32, i32
  }
  func.func @transform_2(%arg0: i32, %arg1: i32) -> (i32, i32, i32) {
    %c0_i32 = arith.constant 0 : i32
    %c0_i32_0 = arith.constant 0 : i32
    %c0_i32_1 = arith.constant 0 : i32
    return %arg0, %c0_i32, %c0_i32_0 : i32, i32, i32
  }
}

module attributes {stable_mosaic.version = 11 : i64} {
  func.func @_in_apply_kernel(%arg0: i32, %arg1: i32, %arg2: memref<1x16x128xf32, #tpu.memory_space<vmem>>, %arg3: memref<1x1x128xf32, #tpu.memory_space<vmem>>, %arg4: memref<1x1x128xf32, #tpu.memory_space<vmem>>, %arg5: memref<1x1x128xf32, #tpu.memory_space<vmem>>, %arg6: memref<1x1x128xf32, #tpu.memory_space<vmem>>, %arg7: memref<1x16x128xf32, #tpu.memory_space<vmem>>) attributes {dimension_semantics = [#tpu.dimension_semantics<parallel>, #tpu.dimension_semantics<parallel>], iteration_bounds = array<i64: 2, 1>, scalar_prefetch = 0 : i64, scratch_operands = 0 : i64, tpu.core_type = #tpu.core_type<tc>, window_params = [{transform_indices = @transform_0, window_bounds = array<i64: 1, 16, 128>}, {transform_indices = @transform_1, window_bounds = array<i64: 1, 1, 128>}, {transform_indices = @transform_2, window_bounds = array<i64: 1, 1, 128>}, {pipeline_mode = #tpu.pipeline_mode<synchronous>, transform_indices = @transform_3, window_bounds = array<i64: 1, 1, 128>}, {pipeline_mode = #tpu.pipeline_mode<synchronous>, transform_indices = @transform_4, window_bounds = array<i64: 1, 1, 128>}, {transform_indices = @transform_5, window_bounds = array<i64: 1, 16, 128>}]} {
    %c0 = arith.constant 0 : index
    %c0_0 = arith.constant 0 : index
    %c0_1 = arith.constant 0 : index
    %0 = vector.load %arg2[%c0, %c0_0, %c0_1] : memref<1x16x128xf32, #tpu.memory_space<vmem>>, vector<1x16x128xf32>
    %c0_2 = arith.constant 0 : index
    %c0_3 = arith.constant 0 : index
    %c0_4 = arith.constant 0 : index
    %1 = vector.load %arg3[%c0_2, %c0_3, %c0_4] : memref<1x1x128xf32, #tpu.memory_space<vmem>>, vector<1x1x128xf32>
    %c0_5 = arith.constant 0 : index
    %c0_6 = arith.constant 0 : index
    %c0_7 = arith.constant 0 : index
    %2 = vector.load %arg4[%c0_5, %c0_6, %c0_7] : memref<1x1x128xf32, #tpu.memory_space<vmem>>, vector<1x1x128xf32>
    %c0_8 = arith.constant 0 : index
    %c0_9 = arith.constant 0 : index
    %c0_10 = arith.constant 0 : index
    %3 = vector.load %arg5[%c0_8, %c0_9, %c0_10] : memref<1x1x128xf32, #tpu.memory_space<vmem>>, vector<1x1x128xf32>
    %c0_11 = arith.constant 0 : index
    %c0_12 = arith.constant 0 : index
    %c0_13 = arith.constant 0 : index
    %4 = vector.load %arg6[%c0_11, %c0_12, %c0_13] : memref<1x1x128xf32, #tpu.memory_space<vmem>>, vector<1x1x128xf32>
    %cst = arith.constant 6.250000e-02 : f32
    %5 = vector.broadcast %cst : f32 to vector<1x1x128xf32>
    %6 = arith.mulf %1, %5 : vector<1x1x128xf32>
    %cst_14 = arith.constant 6.250000e-02 : f32
    %7 = vector.broadcast %cst_14 : f32 to vector<1x1x128xf32>
    %8 = arith.mulf %2, %7 : vector<1x1x128xf32>
    %9 = arith.mulf %6, %6 : vector<1x1x128xf32>
    %10 = arith.subf %8, %9 : vector<1x1x128xf32>
    %cst_15 = arith.constant 0.000000e+00 : f32
    %11 = vector.broadcast %cst_15 : f32 to vector<1x1x128xf32>
    %12 = arith.maximumf %10, %11 : vector<1x1x128xf32>
    %13 = vector.broadcast %6 : vector<1x1x128xf32> to vector<1x16x128xf32>
    %14 = arith.subf %0, %13 : vector<1x16x128xf32>
    %cst_16 = arith.constant 9.99999974E-6 : f32
    %15 = vector.broadcast %cst_16 : f32 to vector<1x1x128xf32>
    %16 = arith.addf %12, %15 : vector<1x1x128xf32>
    %17 = math.rsqrt %16 : vector<1x1x128xf32>
    %18 = vector.broadcast %17 : vector<1x1x128xf32> to vector<1x16x128xf32>
    %19 = arith.mulf %14, %18 : vector<1x16x128xf32>
    %20 = vector.broadcast %3 : vector<1x1x128xf32> to vector<1x16x128xf32>
    %21 = arith.mulf %19, %20 : vector<1x16x128xf32>
    %22 = vector.broadcast %4 : vector<1x1x128xf32> to vector<1x16x128xf32>
    %23 = arith.addf %21, %22 : vector<1x16x128xf32>
    %cst_17 = arith.constant 0.000000e+00 : f32
    %24 = vector.broadcast %cst_17 : f32 to vector<1x16x128xf32>
    %25 = arith.maximumf %23, %24 : vector<1x16x128xf32>
    %c0_18 = arith.constant 0 : index
    %c0_19 = arith.constant 0 : index
    %c0_20 = arith.constant 0 : index
    %26 = vector.load %arg7[%c0_18, %c0_19, %c0_20] : memref<1x16x128xf32, #tpu.memory_space<vmem>>, vector<1x16x128xf32>
    tpu.vector_store %arg7[%c0_18, %c0_19, %c0_20], %25 {strides = array<i32>} : memref<1x16x128xf32, #tpu.memory_space<vmem>>, vector<1x16x128xf32>,
    return
  }
  func.func @transform_0(%arg0: i32, %arg1: i32) -> (i32, i32, i32) {
    %c0_i32 = arith.constant 0 : i32
    %c0_i32_0 = arith.constant 0 : i32
    return %arg0, %arg1, %c0_i32 : i32, i32, i32
  }
  func.func @transform_1(%arg0: i32, %arg1: i32) -> (i32, i32, i32) {
    %c0_i32 = arith.constant 0 : i32
    %c0_i32_0 = arith.constant 0 : i32
    %c0_i32_1 = arith.constant 0 : i32
    return %arg0, %c0_i32, %c0_i32_0 : i32, i32, i32
  }
  func.func @transform_2(%arg0: i32, %arg1: i32) -> (i32, i32, i32) {
    %c0_i32 = arith.constant 0 : i32
    %c0_i32_0 = arith.constant 0 : i32
    %c0_i32_1 = arith.constant 0 : i32
    return %arg0, %c0_i32, %c0_i32_0 : i32, i32, i32
  }
  func.func @transform_3(%arg0: i32, %arg1: i32) -> (i32, i32, i32) {
    %c0_i32 = arith.constant 0 : i32
    %c0_i32_0 = arith.constant 0 : i32
    %c0_i32_1 = arith.constant 0 : i32
    %c0_i32_2 = arith.constant 0 : i32
    return %c0_i32, %c0_i32_0, %c0_i32_1 : i32, i32, i32
  }
  func.func @transform_4(%arg0: i32, %arg1: i32) -> (i32, i32, i32) {
    %c0_i32 = arith.constant 0 : i32
    %c0_i32_0 = arith.constant 0 : i32
    %c0_i32_1 = arith.constant 0 : i32
    %c0_i32_2 = arith.constant 0 : i32
    return %c0_i32, %c0_i32_0, %c0_i32_1 : i32, i32, i32
  }
  func.func @transform_5(%arg0: i32, %arg1: i32) -> (i32, i32, i32) {
    %c0_i32 = arith.constant 0 : i32
    %c0_i32_0 = arith.constant 0 : i32
    return %arg0, %arg1, %c0_i32 : i32, i32, i32
  }
}

module attributes {stable_mosaic.version = 11 : i64} {
  func.func @_in_apply_add_kernel(%arg0: i32, %arg1: i32, %arg2: memref<1x16x128xf32, #tpu.memory_space<vmem>>, %arg3: memref<1x16x128xf32, #tpu.memory_space<vmem>>, %arg4: memref<1x1x128xf32, #tpu.memory_space<vmem>>, %arg5: memref<1x1x128xf32, #tpu.memory_space<vmem>>, %arg6: memref<1x1x128xf32, #tpu.memory_space<vmem>>, %arg7: memref<1x1x128xf32, #tpu.memory_space<vmem>>, %arg8: memref<1x16x128xf32, #tpu.memory_space<vmem>>) attributes {dimension_semantics = [#tpu.dimension_semantics<parallel>, #tpu.dimension_semantics<parallel>], iteration_bounds = array<i64: 2, 1>, scalar_prefetch = 0 : i64, scratch_operands = 0 : i64, tpu.core_type = #tpu.core_type<tc>, window_params = [{transform_indices = @transform_0, window_bounds = array<i64: 1, 16, 128>}, {transform_indices = @transform_1, window_bounds = array<i64: 1, 16, 128>}, {transform_indices = @transform_2, window_bounds = array<i64: 1, 1, 128>}, {transform_indices = @transform_3, window_bounds = array<i64: 1, 1, 128>}, {pipeline_mode = #tpu.pipeline_mode<synchronous>, transform_indices = @transform_4, window_bounds = array<i64: 1, 1, 128>}, {pipeline_mode = #tpu.pipeline_mode<synchronous>, transform_indices = @transform_5, window_bounds = array<i64: 1, 1, 128>}, {transform_indices = @transform_6, window_bounds = array<i64: 1, 16, 128>}]} {
    %c0 = arith.constant 0 : index
    %c0_0 = arith.constant 0 : index
    %c0_1 = arith.constant 0 : index
    %0 = vector.load %arg2[%c0, %c0_0, %c0_1] : memref<1x16x128xf32, #tpu.memory_space<vmem>>, vector<1x16x128xf32>
    %c0_2 = arith.constant 0 : index
    %c0_3 = arith.constant 0 : index
    %c0_4 = arith.constant 0 : index
    %1 = vector.load %arg4[%c0_2, %c0_3, %c0_4] : memref<1x1x128xf32, #tpu.memory_space<vmem>>, vector<1x1x128xf32>
    %c0_5 = arith.constant 0 : index
    %c0_6 = arith.constant 0 : index
    %c0_7 = arith.constant 0 : index
    %2 = vector.load %arg5[%c0_5, %c0_6, %c0_7] : memref<1x1x128xf32, #tpu.memory_space<vmem>>, vector<1x1x128xf32>
    %c0_8 = arith.constant 0 : index
    %c0_9 = arith.constant 0 : index
    %c0_10 = arith.constant 0 : index
    %3 = vector.load %arg6[%c0_8, %c0_9, %c0_10] : memref<1x1x128xf32, #tpu.memory_space<vmem>>, vector<1x1x128xf32>
    %c0_11 = arith.constant 0 : index
    %c0_12 = arith.constant 0 : index
    %c0_13 = arith.constant 0 : index
    %4 = vector.load %arg7[%c0_11, %c0_12, %c0_13] : memref<1x1x128xf32, #tpu.memory_space<vmem>>, vector<1x1x128xf32>
    %cst = arith.constant 6.250000e-02 : f32
    %5 = vector.broadcast %cst : f32 to vector<1x1x128xf32>
    %6 = arith.mulf %1, %5 : vector<1x1x128xf32>
    %cst_14 = arith.constant 6.250000e-02 : f32
    %7 = vector.broadcast %cst_14 : f32 to vector<1x1x128xf32>
    %8 = arith.mulf %2, %7 : vector<1x1x128xf32>
    %9 = arith.mulf %6, %6 : vector<1x1x128xf32>
    %10 = arith.subf %8, %9 : vector<1x1x128xf32>
    %cst_15 = arith.constant 0.000000e+00 : f32
    %11 = vector.broadcast %cst_15 : f32 to vector<1x1x128xf32>
    %12 = arith.maximumf %10, %11 : vector<1x1x128xf32>
    %13 = vector.broadcast %6 : vector<1x1x128xf32> to vector<1x16x128xf32>
    %14 = arith.subf %0, %13 : vector<1x16x128xf32>
    %cst_16 = arith.constant 9.99999974E-6 : f32
    %15 = vector.broadcast %cst_16 : f32 to vector<1x1x128xf32>
    %16 = arith.addf %12, %15 : vector<1x1x128xf32>
    %17 = math.rsqrt %16 : vector<1x1x128xf32>
    %18 = vector.broadcast %17 : vector<1x1x128xf32> to vector<1x16x128xf32>
    %19 = arith.mulf %14, %18 : vector<1x16x128xf32>
    %20 = vector.broadcast %3 : vector<1x1x128xf32> to vector<1x16x128xf32>
    %21 = arith.mulf %19, %20 : vector<1x16x128xf32>
    %22 = vector.broadcast %4 : vector<1x1x128xf32> to vector<1x16x128xf32>
    %23 = arith.addf %21, %22 : vector<1x16x128xf32>
    %c0_17 = arith.constant 0 : index
    %c0_18 = arith.constant 0 : index
    %c0_19 = arith.constant 0 : index
    %24 = vector.load %arg3[%c0_17, %c0_18, %c0_19] : memref<1x16x128xf32, #tpu.memory_space<vmem>>, vector<1x16x128xf32>
    %25 = arith.addf %24, %23 : vector<1x16x128xf32>
    %c0_20 = arith.constant 0 : index
    %c0_21 = arith.constant 0 : index
    %c0_22 = arith.constant 0 : index
    %26 = vector.load %arg8[%c0_20, %c0_21, %c0_22] : memref<1x16x128xf32, #tpu.memory_space<vmem>>, vector<1x16x128xf32>
    tpu.vector_store %arg8[%c0_20, %c0_21, %c0_22], %25 {strides = array<i32>} : memref<1x16x128xf32, #tpu.memory_space<vmem>>, vector<1x16x128xf32>,
    return
  }
  func.func @transform_0(%arg0: i32, %arg1: i32) -> (i32, i32, i32) {
    %c0_i32 = arith.constant 0 : i32
    %c0_i32_0 = arith.constant 0 : i32
    return %arg0, %arg1, %c0_i32 : i32, i32, i32
  }
  func.func @transform_1(%arg0: i32, %arg1: i32) -> (i32, i32, i32) {
    %c0_i32 = arith.constant 0 : i32
    %c0_i32_0 = arith.constant 0 : i32
    return %arg0, %arg1, %c0_i32 : i32, i32, i32
  }
  func.func @transform_2(%arg0: i32, %arg1: i32) -> (i32, i32, i32) {
    %c0_i32 = arith.constant 0 : i32
    %c0_i32_0 = arith.constant 0 : i32
    %c0_i32_1 = arith.constant 0 : i32
    return %arg0, %c0_i32, %c0_i32_0 : i32, i32, i32
  }
  func.func @transform_3(%arg0: i32, %arg1: i32) -> (i32, i32, i32) {
    %c0_i32 = arith.constant 0 : i32
    %c0_i32_0 = arith.constant 0 : i32
    %c0_i32_1 = arith.constant 0 : i32
    return %arg0, %c0_i32, %c0_i32_0 : i32, i32, i32
  }
  func.func @transform_4(%arg0: i32, %arg1: i32) -> (i32, i32, i32) {
    %c0_i32 = arith.constant 0 : i32
    %c0_i32_0 = arith.constant 0 : i32
    %c0_i32_1 = arith.constant 0 : i32
    %c0_i32_2 = arith.constant 0 : i32
    return %c0_i32, %c0_i32_0, %c0_i32_1 : i32, i32, i32
  }
  func.func @transform_5(%arg0: i32, %arg1: i32) -> (i32, i32, i32) {
    %c0_i32 = arith.constant 0 : i32
    %c0_i32_0 = arith.constant 0 : i32
    %c0_i32_1 = arith.constant 0 : i32
    %c0_i32_2 = arith.constant 0 : i32
    return %c0_i32, %c0_i32_0, %c0_i32_1 : i32, i32, i32
  }
  func.func @transform_6(%arg0: i32, %arg1: i32) -> (i32, i32, i32) {
    %c0_i32 = arith.constant 0 : i32
    %c0_i32_0 = arith.constant 0 : i32
    return %arg0, %arg1, %c0_i32 : i32, i32, i32
  }
}

</mosaic_0001>

<llo_original>
// kernel: _lambda_.40
$region0: #{_lambda_.40}
  #allocation0 [shape = 'u32[]', space=smem, size = 0x4, offset = 0x4, fixed_abs, tag = 'smem constant byte address 0x4 - core index']
  #allocation1 [shape = 'u32[144,128]{1,0:T(1,128)}', space=vmem, size = 0x12000, scoped, tag = 'internal scratch']
  #allocation2 [shape = 'f32[128,128]{1,0:T(8,128)}', space=vmem, size = 0x10000, scoped, tag = 'scratch operand']
  %s0 = inlined_call_operand.vmem [shape: bf16[128,128], index: 0, kind: input, shape index: {}]
  %s1 = inlined_call_operand.vmem [shape: bf16[128,128], index: 1, kind: input, shape index: {}]
  %s2 = inlined_call_operand.vmem [shape: f32[128,128], index: 2, kind: output, shape index: {}]
  %s3 = sld [smem:[#allocation0]]
  $region26: #{_lambda_.40} parent=0
    _
  %s5 = ssub.s32 1, %s3
  %s6 = scalar_select 0, %s5, %s3
  // Predicated region
  $region2: #{_lambda_.40} parent=0 // pred_check
    _
  $region3: #{_lambda_.40} parent=0 // pred_check_branch
    %8 = sbr.rel (0) target = $region5
  $region4: #{_lambda_.40} parent=0 // pred_region
    _
  $region5: #{_lambda_.40} parent=0 // pred_fallthru
    _
  // Predicated region
  $region6: #{_lambda_.40} parent=0 // pred_check
    _
  $region7: #{_lambda_.40} parent=0 // pred_check_branch
    %10 = sbr.rel (0) target = $region9
  $region8: #{_lambda_.40} parent=0 // pred_region
    _
  $region9: #{_lambda_.40} parent=0 // pred_fallthru
    _
  %p12 = scmp.eq.s32.totalorder 0, 0
  // Predicated region
  $region10: #{_lambda_.40} parent=0 // pred_check
    %p13 = pneg %p12
  $region11: #{_lambda_.40} parent=0 // pred_check_branch
    %15 = sbr.rel (%p13) target = $region13
  $region12: #{_lambda_.40} parent=0 // pred_region
    %16 = vst [vmem:[#allocation2] sm:$0xff] 0.0
    %17 = vst [vmem:[#allocation2 + $0x8] sm:$0xff] 0.0
    %18 = vst [vmem:[#allocation2 + $0x10] sm:$0xff] 0.0
    %19 = vst [vmem:[#allocation2 + $0x18] sm:$0xff] 0.0
    %20 = vst [vmem:[#allocation2 + $0x20] sm:$0xff] 0.0
    %21 = vst [vmem:[#allocation2 + $0x28] sm:$0xff] 0.0
    %22 = vst [vmem:[#allocation2 + $0x30] sm:$0xff] 0.0
    %23 = vst [vmem:[#allocation2 + $0x38] sm:$0xff] 0.0
    %24 = vst [vmem:[#allocation2 + $0x40] sm:$0xff] 0.0
    %25 = vst [vmem:[#allocation2 + $0x48] sm:$0xff] 0.0
    %26 = vst [vmem:[#allocation2 + $0x50] sm:$0xff] 0.0
    %27 = vst [vmem:[#allocation2 + $0x58] sm:$0xff] 0.0
    %28 = vst [vmem:[#allocation2 + $0x60] sm:$0xff] 0.0
    %29 = vst [vmem:[#allocation2 + $0x68] sm:$0xff] 0.0
    %30 = vst [vmem:[#allocation2 + $0x70] sm:$0xff] 0.0
    %31 = vst [vmem:[#allocation2 + $0x78] sm:$0xff] 0.0
  $region13: #{_lambda_.40} parent=0 // pred_fallthru
    _
  %v32 = vld [vmem:[#allocation2] sm:$0xff]
  %v33 = vld [vmem:[#allocation2 + $0x8] sm:$0xff]
  %v34 = vld [vmem:[#allocation2 + $0x10] sm:$0xff]
  %v35 = vld [vmem:[#allocation2 + $0x18] sm:$0xff]
  %v36 = vld [vmem:[#allocation2 + $0x20] sm:$0xff]
  %v37 = vld [vmem:[#allocation2 + $0x28] sm:$0xff]
  %v38 = vld [vmem:[#allocation2 + $0x30] sm:$0xff]
  %v39 = vld [vmem:[#allocation2 + $0x38] sm:$0xff]
  %v40 = vld [vmem:[#allocation2 + $0x40] sm:$0xff]
  %v41 = vld [vmem:[#allocation2 + $0x48] sm:$0xff]
  %v42 = vld [vmem:[#allocation2 + $0x50] sm:$0xff]
  %v43 = vld [vmem:[#allocation2 + $0x58] sm:$0xff]
  %v44 = vld [vmem:[#allocation2 + $0x60] sm:$0xff]
  %v45 = vld [vmem:[#allocation2 + $0x68] sm:$0xff]
  %v46 = vld [vmem:[#allocation2 + $0x70] sm:$0xff]
  %v47 = vld [vmem:[#allocation2 + $0x78] sm:$0xff]
  %v48 = vld [vmem:[%s0] sm:$0xf]
  %v49 = vld [vmem:[%s0 + $0x4] sm:$0xf]
  %v50 = vld [vmem:[%s0 + $0x8] sm:$0xf]
  %v51 = vld [vmem:[%s0 + $0xc] sm:$0xf]
  %v52 = vld [vmem:[%s0 + $0x10] sm:$0xf]
  %v53 = vld [vmem:[%s0 + $0x14] sm:$0xf]
  %v54 = vld [vmem:[%s0 + $0x18] sm:$0xf]
  %v55 = vld [vmem:[%s0 + $0x1c] sm:$0xf]
  %v56 = vld [vmem:[%s0 + $0x20] sm:$0xf]
  %v57 = vld [vmem:[%s0 + $0x24] sm:$0xf]
  %v58 = vld [vmem:[%s0 + $0x28] sm:$0xf]
  %v59 = vld [vmem:[%s0 + $0x2c] sm:$0xf]
  %v60 = vld [vmem:[%s0 + $0x30] sm:$0xf]
  %v61 = vld [vmem:[%s0 + $0x34] sm:$0xf]
  %v62 = vld [vmem:[%s0 + $0x38] sm:$0xf]
  %v63 = vld [vmem:[%s0 + $0x3c] sm:$0xf]
  %v64 = vld [vmem:[%s1] sm:$0xf]
  %v65 = vld [vmem:[%s1 + $0x4] sm:$0xf]
  %v66 = vld [vmem:[%s1 + $0x8] sm:$0xf]
  %v67 = vld [vmem:[%s1 + $0xc] sm:$0xf]
  %v68 = vld [vmem:[%s1 + $0x10] sm:$0xf]
  %v69 = vld [vmem:[%s1 + $0x14] sm:$0xf]
  %v70 = vld [vmem:[%s1 + $0x18] sm:$0xf]
  %v71 = vld [vmem:[%s1 + $0x1c] sm:$0xf]
  %v72 = vld [vmem:[%s1 + $0x20] sm:$0xf]
  %v73 = vld [vmem:[%s1 + $0x24] sm:$0xf]
  %v74 = vld [vmem:[%s1 + $0x28] sm:$0xf]
  %v75 = vld [vmem:[%s1 + $0x2c] sm:$0xf]
  %v76 = vld [vmem:[%s1 + $0x30] sm:$0xf]
  %v77 = vld [vmem:[%s1 + $0x34] sm:$0xf]
  %v78 = vld [vmem:[%s1 + $0x38] sm:$0xf]
  %v79 = vld [vmem:[%s1 + $0x3c] sm:$0xf]
  %v96 = vunpack.c.l.b16 %v48
  %v97 = vunpack.c.l.b16 %v49
  %v98 = vunpack.c.l.b16 %v50
  %v99 = vunpack.c.l.b16 %v51
  %v100 = vunpack.c.l.b16 %v52
  %v101 = vunpack.c.l.b16 %v53
  %v102 = vunpack.c.l.b16 %v54
  %v103 = vunpack.c.l.b16 %v55
  %v104 = vunpack.c.l.b16 %v56
  %v105 = vunpack.c.l.b16 %v57
  %v106 = vunpack.c.l.b16 %v58
  %v107 = vunpack.c.l.b16 %v59
  %v108 = vunpack.c.l.b16 %v60
  %v109 = vunpack.c.l.b16 %v61
  %v110 = vunpack.c.l.b16 %v62
  %v111 = vunpack.c.l.b16 %v63
  %v112 = vpack.c.b16 %v97, %v96
  %v113 = vpack.c.b16 %v99, %v98
  %v114 = vpack.c.b16 %v101, %v100
  %v115 = vpack.c.b16 %v103, %v102
  %v116 = vpack.c.b16 %v105, %v104
  %v117 = vpack.c.b16 %v107, %v106
  %v118 = vpack.c.b16 %v109, %v108
  %v119 = vpack.c.b16 %v111, %v110
  %v144 = vunpack.c.l.b16 %v64
  %v145 = vunpack.c.l.b16 %v65
  %v146 = vunpack.c.l.b16 %v66
  %v147 = vunpack.c.l.b16 %v67
  %v148 = vunpack.c.l.b16 %v68
  %v149 = vunpack.c.l.b16 %v69
  %v150 = vunpack.c.l.b16 %v70
  %v151 = vunpack.c.l.b16 %v71
  %v152 = vunpack.c.l.b16 %v72
  %v153 = vunpack.c.l.b16 %v73
  %v154 = vunpack.c.l.b16 %v74
  %v155 = vunpack.c.l.b16 %v75
  %v156 = vunpack.c.l.b16 %v76
  %v157 = vunpack.c.l.b16 %v77
  %v158 = vunpack.c.l.b16 %v78
  %v159 = vunpack.c.l.b16 %v79
  %v160 = vpack.c.b16 %v145, %v144
  %v161 = vpack.c.b16 %v147, %v146
  %v162 = vpack.c.b16 %v149, %v148
  %v163 = vpack.c.b16 %v151, %v150
  %v164 = vpack.c.b16 %v153, %v152
  %v165 = vpack.c.b16 %v155, %v154
  %v166 = vpack.c.b16 %v157, %v156
  %v167 = vpack.c.b16 %v159, %v158
  %176 = vmatprep.subr.bf16.mxu0 0
  %177 = vmatpush1.bf16.msra.mxu0 %v160
  %178 = vmatprep.subr.bf16.mxu0 0
  %179 = vmatpush1.bf16.msra.mxu0 %v161
  %180 = vmatprep.subr.bf16.mxu0 0
  %181 = vmatpush1.bf16.msra.mxu0 %v162
  %182 = vmatprep.subr.bf16.mxu0 0
  %183 = vmatpush1.bf16.msra.mxu0 %v163
  %184 = vmatprep.subr.bf16.mxu0 0
  %185 = vmatpush1.bf16.msra.mxu0 %v164
  %186 = vmatprep.subr.bf16.mxu0 0
  %187 = vmatpush1.bf16.msra.mxu0 %v165
  %188 = vmatprep.subr.bf16.mxu0 0
  %189 = vmatpush1.bf16.msra.mxu0 %v166
  %190 = vmatprep.subr.bf16.mxu0 0
  %191 = vmatpush1.bf16.msra.mxu0 %v167
  %192 = vmatprep.subr.bf16.mxu0 0
  %193 = vmatpush1.bf16.msra.mxu0 0
  %194 = vmatprep.subr.bf16.mxu0 0
  %195 = vmatpush1.bf16.msra.mxu0 0
  %196 = vmatprep.subr.bf16.mxu0 0
  %197 = vmatpush1.bf16.msra.mxu0 0
  %198 = vmatprep.subr.bf16.mxu0 0
  %199 = vmatpush1.bf16.msra.mxu0 0
  %200 = vmatprep.subr.bf16.mxu0 0
  %201 = vmatpush1.bf16.msra.mxu0 0
  %202 = vmatprep.subr.bf16.mxu0 0
  %203 = vmatpush1.bf16.msra.mxu0 0
  %204 = vmatprep.subr.bf16.mxu0 0
  %205 = vmatpush1.bf16.msra.mxu0 0
  %206 = vmatprep.subr.bf16.mxu0 0
  %207 = vmatpush1.bf16.msra.mxu0 0
  %208 = vmatprep.mubr.bf16.mxu0 0
  %209 = vmatmul.mubr.bf16.gmra.mrb[0].mxu0 %v112
  %v210 = vpop.f32.mrb[0].mxu0
  %v211 = vadd.f32 0.0, %v210
  %v212 = vpop.f32.mrb[0].mxu0
  %v213 = vpop.f32.mrb[0].mxu0
  %v214 = vadd.f32 0.0, %v213
  %v215 = vpop.f32.mrb[0].mxu0
  %216 = vmatprep.mubr.bf16.mxu0 0
  %217 = vmatmul.mubr.bf16.gmra.mrb[0].mxu0 %v113
  %v218 = vpop.f32.mrb[0].mxu0
  %v219 = vadd.f32 0.0, %v218
  %v220 = vpop.f32.mrb[0].mxu0
  %v221 = vpop.f32.mrb[0].mxu0
  %v222 = vadd.f32 0.0, %v221
  %v223 = vpop.f32.mrb[0].mxu0
  %224 = vmatprep.mubr.bf16.mxu0 0
  %225 = vmatmul.mubr.bf16.gmra.mrb[0].mxu0 %v114
  %v226 = vpop.f32.mrb[0].mxu0
  %v227 = vadd.f32 0.0, %v226
  %v228 = vpop.f32.mrb[0].mxu0
  %v229 = vpop.f32.mrb[0].mxu0
  %v230 = vadd.f32 0.0, %v229
  %v231 = vpop.f32.mrb[0].mxu0
  %232 = vmatprep.mubr.bf16.mxu0 0
  %233 = vmatmul.mubr.bf16.gmra.mrb[0].mxu0 %v115
  %v234 = vpop.f32.mrb[0].mxu0
  %v235 = vadd.f32 0.0, %v234
  %v236 = vpop.f32.mrb[0].mxu0
  %v237 = vpop.f32.mrb[0].mxu0
  %v238 = vadd.f32 0.0, %v237
  %v239 = vpop.f32.mrb[0].mxu0
  %240 = vmatprep.mubr.bf16.mxu0 0
  %241 = vmatmul.mubr.bf16.gmra.mrb[0].mxu0 %v116
  %v242 = vpop.f32.mrb[0].mxu0
  %v243 = vadd.f32 0.0, %v242
  %v244 = vpop.f32.mrb[0].mxu0
  %v245 = vpop.f32.mrb[0].mxu0
  %v246 = vadd.f32 0.0, %v245
  %v247 = vpop.f32.mrb[0].mxu0
  %248 = vmatprep.mubr.bf16.mxu0 0
  %249 = vmatmul.mubr.bf16.gmra.mrb[0].mxu0 %v117
  %v250 = vpop.f32.mrb[0].mxu0
  %v251 = vadd.f32 0.0, %v250
  %v252 = vpop.f32.mrb[0].mxu0
  %v253 = vpop.f32.mrb[0].mxu0
  %v254 = vadd.f32 0.0, %v253
  %v255 = vpop.f32.mrb[0].mxu0
  %256 = vmatprep.mubr.bf16.mxu0 0
  %257 = vmatmul.mubr.bf16.gmra.mrb[0].mxu0 %v118
  %v258 = vpop.f32.mrb[0].mxu0
  %v259 = vadd.f32 0.0, %v258
  %v260 = vpop.f32.mrb[0].mxu0
  %v261 = vpop.f32.mrb[0].mxu0
  %v262 = vadd.f32 0.0, %v261
  %v263 = vpop.f32.mrb[0].mxu0
  %264 = vmatprep.mubr.bf16.mxu0 0
  %265 = vmatmul.mubr.bf16.gmra.mrb[0].mxu0 %v119
  %v266 = vpop.f32.mrb[0].mxu0
  %v267 = vadd.f32 0.0, %v266
  %v268 = vpop.f32.mrb[0].mxu0
  %v269 = vpop.f32.mrb[0].mxu0
  %v270 = vadd.f32 0.0, %v269
  %v271 = vpop.f32.mrb[0].mxu0
  %272 = vdwg.mxu0
  %v273 = vadd.f32 %v32, %v211
  %v274 = vadd.f32 %v33, %v214
  %v275 = vadd.f32 %v34, %v219
  %v276 = vadd.f32 %v35, %v222
  %v277 = vadd.f32 %v36, %v227
  %v278 = vadd.f32 %v37, %v230
  %v279 = vadd.f32 %v38, %v235
  %v280 = vadd.f32 %v39, %v238
  %v281 = vadd.f32 %v40, %v243
  %v282 = vadd.f32 %v41, %v246
  %v283 = vadd.f32 %v42, %v251
  %v284 = vadd.f32 %v43, %v254
  %v285 = vadd.f32 %v44, %v259
  %v286 = vadd.f32 %v45, %v262
  %v287 = vadd.f32 %v46, %v267
  %v288 = vadd.f32 %v47, %v270
  %289 = vst [vmem:[#allocation2] sm:$0xff] %v273
  %290 = vst [vmem:[#allocation2 + $0x8] sm:$0xff] %v274
  %291 = vst [vmem:[#allocation2 + $0x10] sm:$0xff] %v275
  %292 = vst [vmem:[#allocation2 + $0x18] sm:$0xff] %v276
  %293 = vst [vmem:[#allocation2 + $0x20] sm:$0xff] %v277
  %294 = vst [vmem:[#allocation2 + $0x28] sm:$0xff] %v278
  %295 = vst [vmem:[#allocation2 + $0x30] sm:$0xff] %v279
  %296 = vst [vmem:[#allocation2 + $0x38] sm:$0xff] %v280
  %297 = vst [vmem:[#allocation2 + $0x40] sm:$0xff] %v281
  %298 = vst [vmem:[#allocation2 + $0x48] sm:$0xff] %v282
  %299 = vst [vmem:[#allocation2 + $0x50] sm:$0xff] %v283
  %300 = vst [vmem:[#allocation2 + $0x58] sm:$0xff] %v284
  %301 = vst [vmem:[#allocation2 + $0x60] sm:$0xff] %v285
  %302 = vst [vmem:[#allocation2 + $0x68] sm:$0xff] %v286
  %303 = vst [vmem:[#allocation2 + $0x70] sm:$0xff] %v287
  %304 = vst [vmem:[#allocation2 + $0x78] sm:$0xff] %v288
  // Predicated region
  $region14: #{_lambda_.40} parent=0 // pred_check
    %p305 = pneg %p12
  $region15: #{_lambda_.40} parent=0 // pred_check_branch
    %307 = sbr.rel (%p305) target = $region17
  $region16: #{_lambda_.40} parent=0 // pred_region
    %v308 = vld [vmem:[#allocation2] sm:$0xff]
    %v309 = vld [vmem:[#allocation2 + $0x8] sm:$0xff]
    %v310 = vld [vmem:[#allocation2 + $0x10] sm:$0xff]
    %v311 = vld [vmem:[#allocation2 + $0x18] sm:$0xff]
    %v312 = vld [vmem:[#allocation2 + $0x20] sm:$0xff]
    %v313 = vld [vmem:[#allocation2 + $0x28] sm:$0xff]
    %v314 = vld [vmem:[#allocation2 + $0x30] sm:$0xff]
    %v315 = vld [vmem:[#allocation2 + $0x38] sm:$0xff]
    %v316 = vld [vmem:[#allocation2 + $0x40] sm:$0xff]
    %v317 = vld [vmem:[#allocation2 + $0x48] sm:$0xff]
    %v318 = vld [vmem:[#allocation2 + $0x50] sm:$0xff]
    %v319 = vld [vmem:[#allocation2 + $0x58] sm:$0xff]
    %v320 = vld [vmem:[#allocation2 + $0x60] sm:$0xff]
    %v321 = vld [vmem:[#allocation2 + $0x68] sm:$0xff]
    %v322 = vld [vmem:[#allocation2 + $0x70] sm:$0xff]
    %v323 = vld [vmem:[#allocation2 + $0x78] sm:$0xff]
    %vm324 = vcmp.gt.f32.partialorder %v308, 0.0
    %vm325 = vcmp.gt.f32.partialorder %v309, 0.0
    %vm326 = vcmp.gt.f32.partialorder %v310, 0.0
    %vm327 = vcmp.gt.f32.partialorder %v311, 0.0
    %vm328 = vcmp.gt.f32.partialorder %v312, 0.0
    %vm329 = vcmp.gt.f32.partialorder %v313, 0.0
    %vm330 = vcmp.gt.f32.partialorder %v314, 0.0
    %vm331 = vcmp.gt.f32.partialorder %v315, 0.0
    %vm332 = vcmp.gt.f32.partialorder %v316, 0.0
    %vm333 = vcmp.gt.f32.partialorder %v317, 0.0
    %vm334 = vcmp.gt.f32.partialorder %v318, 0.0
    %vm335 = vcmp.gt.f32.partialorder %v319, 0.0
    %vm336 = vcmp.gt.f32.partialorder %v320, 0.0
    %vm337 = vcmp.gt.f32.partialorder %v321, 0.0
    %vm338 = vcmp.gt.f32.partialorder %v322, 0.0
    %vm339 = vcmp.gt.f32.partialorder %v323, 0.0
    %v340 = vmul.f32 %v308, 0.2
    %v341 = vmul.f32 %v309, 0.2
    %v342 = vmul.f32 %v310, 0.2
    %v343 = vmul.f32 %v311, 0.2
    %v344 = vmul.f32 %v312, 0.2
    %v345 = vmul.f32 %v313, 0.2
    %v346 = vmul.f32 %v314, 0.2
    %v347 = vmul.f32 %v315, 0.2
    %v348 = vmul.f32 %v316, 0.2
    %v349 = vmul.f32 %v317, 0.2
    %v350 = vmul.f32 %v318, 0.2
    %v351 = vmul.f32 %v319, 0.2
    %v352 = vmul.f32 %v320, 0.2
    %v353 = vmul.f32 %v321, 0.2
    %v354 = vmul.f32 %v322, 0.2
    %v355 = vmul.f32 %v323, 0.2
    %v356 = vsel %vm324, %v308, %v340
    %v357 = vsel %vm325, %v309, %v341
    %v358 = vsel %vm326, %v310, %v342
    %v359 = vsel %vm327, %v311, %v343
    %v360 = vsel %vm328, %v312, %v344
    %v361 = vsel %vm329, %v313, %v345
    %v362 = vsel %vm330, %v314, %v346
    %v363 = vsel %vm331, %v315, %v347
    %v364 = vsel %vm332, %v316, %v348
    %v365 = vsel %vm333, %v317, %v349
    %v366 = vsel %vm334, %v318, %v350
    %v367 = vsel %vm335, %v319, %v351
    %v368 = vsel %vm336, %v320, %v352
    %v369 = vsel %vm337, %v321, %v353
    %v370 = vsel %vm338, %v322, %v354
    %v371 = vsel %vm339, %v323, %v355
    %372 = vst [vmem:[%s2] sm:$0xff] %v356
    %373 = vst [vmem:[%s2 + $0x8] sm:$0xff] %v357
    %374 = vst [vmem:[%s2 + $0x10] sm:$0xff] %v358
    %375 = vst [vmem:[%s2 + $0x18] sm:$0xff] %v359
    %376 = vst [vmem:[%s2 + $0x20] sm:$0xff] %v360
    %377 = vst [vmem:[%s2 + $0x28] sm:$0xff] %v361
    %378 = vst [vmem:[%s2 + $0x30] sm:$0xff] %v362
    %379 = vst [vmem:[%s2 + $0x38] sm:$0xff] %v363
    %380 = vst [vmem:[%s2 + $0x40] sm:$0xff] %v364
    %381 = vst [vmem:[%s2 + $0x48] sm:$0xff] %v365
    %382 = vst [vmem:[%s2 + $0x50] sm:$0xff] %v366
    %383 = vst [vmem:[%s2 + $0x58] sm:$0xff] %v367
    %384 = vst [vmem:[%s2 + $0x60] sm:$0xff] %v368
    %385 = vst [vmem:[%s2 + $0x68] sm:$0xff] %v369
    %386 = vst [vmem:[%s2 + $0x70] sm:$0xff] %v370
    %387 = vst [vmem:[%s2 + $0x78] sm:$0xff] %v371
  $region17: #{_lambda_.40} parent=0 // pred_fallthru
    _
  // Predicated region
  $region18: #{_lambda_.40} parent=0 // pred_check
    _
  $region19: #{_lambda_.40} parent=0 // pred_check_branch
    %389 = sbr.rel (0) target = $region21
  $region20: #{_lambda_.40} parent=0 // pred_region
    _
  $region21: #{_lambda_.40} parent=0 // pred_fallthru
    _
  // Predicated region
  $region22: #{_lambda_.40} parent=0 // pred_check
    _
  $region23: #{_lambda_.40} parent=0 // pred_check_branch
    %391 = sbr.rel (0) target = $region25
  $region24: #{_lambda_.40} parent=0 // pred_region
    _
  $region25: #{_lambda_.40} parent=0 // pred_fallthru
    _

// kernel: _lambda_.42
$region0: #{_lambda_.42}
  #allocation0 [shape = 'u32[]', space=smem, size = 0x4, offset = 0x4, fixed_abs, tag = 'smem constant byte address 0x4 - core index']
  #allocation1 [shape = 'u32[144,128]{1,0:T(1,128)}', space=vmem, size = 0x12000, scoped, tag = 'internal scratch']
  %s0 = inlined_call_operand.vmem [shape: f32[32,128], index: 0, kind: input, shape index: {}]
  %s1 = inlined_call_operand.vmem [shape: f32[1,128], index: 1, kind: output, shape index: {0}]
  %s2 = inlined_call_operand.vmem [shape: f32[1,128], index: 2, kind: output, shape index: {1}]
  %3 = xla_tuple %s1, %s2
  %s4 = sld [smem:[#allocation0]]
  $region26: #{_lambda_.42} parent=0
    _
  %s6 = ssub.s32 1, %s4
  %s7 = scalar_select 0, %s6, %s4
  // Predicated region
  $region2: #{_lambda_.42} parent=0 // pred_check
    _
  $region3: #{_lambda_.42} parent=0 // pred_check_branch
    %9 = sbr.rel (0) target = $region5
  $region4: #{_lambda_.42} parent=0 // pred_region
    _
  $region5: #{_lambda_.42} parent=0 // pred_fallthru
    _
  %p10 = scmp.eq.s32.totalorder 0, 0
  // Predicated region
  $region6: #{_lambda_.42} parent=0 // pred_check
    %p11 = pneg %p10
  $region7: #{_lambda_.42} parent=0 // pred_check_branch
    %13 = sbr.rel (%p11) target = $region9
  $region8: #{_lambda_.42} parent=0 // pred_region
    %14 = vst [vmem:[%s1] sm:$0x1] 0.0
    %15 = vst [vmem:[%s2] sm:$0x1] 0.0
  $region9: #{_lambda_.42} parent=0 // pred_fallthru
    _
  %v16 = vld [vmem:[%s0] sm:$0xff]
  %v17 = vld [vmem:[%s0 + $0x8] sm:$0xff]
  %v18 = vld [vmem:[%s0 + $0x10] sm:$0xff]
  %v19 = vld [vmem:[%s0 + $0x18] sm:$0xff]
  %v20 = vld [vmem:[%s1] sm:$0x1]
  %v21 = vadd.f32 %v16, %v17
  %v22 = vadd.f32 %v21, %v18
  %v23 = vadd.f32 %v22, %v19
  %v24 = vrot.slane %v23, 4
  %v25 = vadd.f32 %v23, %v24
  %v26 = vrot.slane %v25, 2
  %v27 = vadd.f32 %v25, %v26
  %v28 = vrot.slane %v27, 1
  %v29 = vadd.f32 %v27, %v28
  %v30 = vadd.f32 %v20, %v29
  %31 = vst [vmem:[%s1] sm:$0x1] %v30
  %v32 = vld [vmem:[%s2] sm:$0x1]
  %v33 = vmul.f32 %v16, %v16
  %v34 = vmul.f32 %v17, %v17
  %v35 = vmul.f32 %v18, %v18
  %v36 = vmul.f32 %v19, %v19
  %v37 = vadd.f32 %v33, %v34
  %v38 = vadd.f32 %v37, %v35
  %v39 = vadd.f32 %v38, %v36
  %v40 = vrot.slane %v39, 4
  %v41 = vadd.f32 %v39, %v40
  %v42 = vrot.slane %v41, 2
  %v43 = vadd.f32 %v41, %v42
  %v44 = vrot.slane %v43, 1
  %v45 = vadd.f32 %v43, %v44
  %v46 = vadd.f32 %v32, %v45
  %47 = vst [vmem:[%s2] sm:$0x1] %v46
  // Predicated region
  $region10: #{_lambda_.42} parent=0 // pred_check
    _
  $region11: #{_lambda_.42} parent=0 // pred_check_branch
    %49 = sbr.rel (0) target = $region13
  $region12: #{_lambda_.42} parent=0 // pred_region
    _
  $region13: #{_lambda_.42} parent=0 // pred_fallthru
    _
  // Predicated region
  $region14: #{_lambda_.42} parent=0 // pred_check
    _
  $region15: #{_lambda_.42} parent=0 // pred_check_branch
    %51 = sbr.rel (0) target = $region17
  $region16: #{_lambda_.42} parent=0 // pred_region
    _
  $region17: #{_lambda_.42} parent=0 // pred_fallthru
    _
  // Predicated region
  $region18: #{_lambda_.42} parent=0 // pred_check
    _
  $region19: #{_lambda_.42} parent=0 // pred_check_branch
    %53 = sbr.rel (0) target = $region21
  $region20: #{_lambda_.42} parent=0 // pred_region
    _
  $region21: #{_lambda_.42} parent=0 // pred_fallthru
    _
  // Predicated region
  $region22: #{_lambda_.42} parent=0 // pred_check
    _
  $region23: #{_lambda_.42} parent=0 // pred_check_branch
    %55 = sbr.rel (0) target = $region25
  $region24: #{_lambda_.42} parent=0 // pred_region
    _
  $region25: #{_lambda_.42} parent=0 // pred_fallthru
    _

// kernel: _lambda_.41
$region0: #{_lambda_.41}
  #allocation0 [shape = 'u32[]', space=smem, size = 0x4, offset = 0x4, fixed_abs, tag = 'smem constant byte address 0x4 - core index']
  #allocation1 [shape = 'u32[144,128]{1,0:T(1,128)}', space=vmem, size = 0x12000, scoped, tag = 'internal scratch']
  #allocation2 [shape = 'f32[32,128]{1,0:T(8,128)}', space=vmem, size = 0x4000, scoped, tag = 'scratch operand']
  %s0 = inlined_call_operand.vmem [shape: bf16[32,128], index: 0, kind: input, shape index: {}]
  %s1 = inlined_call_operand.vmem [shape: bf16[128,128], index: 1, kind: input, shape index: {}]
  %s2 = inlined_call_operand.vmem [shape: f32[32,128], index: 2, kind: output, shape index: {}]
  %s3 = sld [smem:[#allocation0]]
  $region26: #{_lambda_.41} parent=0
    _
  %s5 = ssub.s32 1, %s3
  %s6 = scalar_select 0, %s5, %s3
  // Predicated region
  $region2: #{_lambda_.41} parent=0 // pred_check
    _
  $region3: #{_lambda_.41} parent=0 // pred_check_branch
    %8 = sbr.rel (0) target = $region5
  $region4: #{_lambda_.41} parent=0 // pred_region
    _
  $region5: #{_lambda_.41} parent=0 // pred_fallthru
    _
  // Predicated region
  $region6: #{_lambda_.41} parent=0 // pred_check
    _
  $region7: #{_lambda_.41} parent=0 // pred_check_branch
    %10 = sbr.rel (0) target = $region9
  $region8: #{_lambda_.41} parent=0 // pred_region
    _
  $region9: #{_lambda_.41} parent=0 // pred_fallthru
    _
  %p12 = scmp.eq.s32.totalorder 0, 0
  // Predicated region
  $region10: #{_lambda_.41} parent=0 // pred_check
    %p13 = pneg %p12
  $region11: #{_lambda_.41} parent=0 // pred_check_branch
    %15 = sbr.rel (%p13) target = $region13
  $region12: #{_lambda_.41} parent=0 // pred_region
    %16 = vst [vmem:[#allocation2] sm:$0xff] 0.0
    %17 = vst [vmem:[#allocation2 + $0x8] sm:$0xff] 0.0
    %18 = vst [vmem:[#allocation2 + $0x10] sm:$0xff] 0.0
    %19 = vst [vmem:[#allocation2 + $0x18] sm:$0xff] 0.0
  $region13: #{_lambda_.41} parent=0 // pred_fallthru
    _
  %v20 = vld [vmem:[#allocation2] sm:$0xff]
  %v21 = vld [vmem:[#allocation2 + $0x8] sm:$0xff]
  %v22 = vld [vmem:[#allocation2 + $0x10] sm:$0xff]
  %v23 = vld [vmem:[#allocation2 + $0x18] sm:$0xff]
  %v24 = vld [vmem:[%s0] sm:$0xf]
  %v25 = vld [vmem:[%s0 + $0x4] sm:$0xf]
  %v26 = vld [vmem:[%s0 + $0x8] sm:$0xf]
  %v27 = vld [vmem:[%s0 + $0xc] sm:$0xf]
  %v28 = vld [vmem:[%s1] sm:$0xf]
  %v29 = vld [vmem:[%s1 + $0x4] sm:$0xf]
  %v30 = vld [vmem:[%s1 + $0x8] sm:$0xf]
  %v31 = vld [vmem:[%s1 + $0xc] sm:$0xf]
  %v32 = vld [vmem:[%s1 + $0x10] sm:$0xf]
  %v33 = vld [vmem:[%s1 + $0x14] sm:$0xf]
  %v34 = vld [vmem:[%s1 + $0x18] sm:$0xf]
  %v35 = vld [vmem:[%s1 + $0x1c] sm:$0xf]
  %v36 = vld [vmem:[%s1 + $0x20] sm:$0xf]
  %v37 = vld [vmem:[%s1 + $0x24] sm:$0xf]
  %v38 = vld [vmem:[%s1 + $0x28] sm:$0xf]
  %v39 = vld [vmem:[%s1 + $0x2c] sm:$0xf]
  %v40 = vld [vmem:[%s1 + $0x30] sm:$0xf]
  %v41 = vld [vmem:[%s1 + $0x34] sm:$0xf]
  %v42 = vld [vmem:[%s1 + $0x38] sm:$0xf]
  %v43 = vld [vmem:[%s1 + $0x3c] sm:$0xf]
  %v48 = vunpack.c.l.b16 %v24
  %v49 = vunpack.c.l.b16 %v25
  %v50 = vunpack.c.l.b16 %v26
  %v51 = vunpack.c.l.b16 %v27
  %v52 = vpack.c.b16 %v49, %v48
  %v53 = vpack.c.b16 %v51, %v50
  %v72 = vunpack.c.l.b16 %v28
  %v73 = vunpack.c.l.b16 %v29
  %v74 = vunpack.c.l.b16 %v30
  %v75 = vunpack.c.l.b16 %v31
  %v76 = vunpack.c.l.b16 %v32
  %v77 = vunpack.c.l.b16 %v33
  %v78 = vunpack.c.l.b16 %v34
  %v79 = vunpack.c.l.b16 %v35
  %v80 = vunpack.c.l.b16 %v36
  %v81 = vunpack.c.l.b16 %v37
  %v82 = vunpack.c.l.b16 %v38
  %v83 = vunpack.c.l.b16 %v39
  %v84 = vunpack.c.l.b16 %v40
  %v85 = vunpack.c.l.b16 %v41
  %v86 = vunpack.c.l.b16 %v42
  %v87 = vunpack.c.l.b16 %v43
  %v88 = vpack.c.b16 %v73, %v72
  %v89 = vpack.c.b16 %v75, %v74
  %v90 = vpack.c.b16 %v77, %v76
  %v91 = vpack.c.b16 %v79, %v78
  %v92 = vpack.c.b16 %v81, %v80
  %v93 = vpack.c.b16 %v83, %v82
  %v94 = vpack.c.b16 %v85, %v84
  %v95 = vpack.c.b16 %v87, %v86
  %104 = vmatprep.subr.bf16.mxu0 0
  %105 = vmatpush1.bf16.msra.mxu0 %v88
  %106 = vmatprep.subr.bf16.mxu0 0
  %107 = vmatpush1.bf16.msra.mxu0 %v89
  %108 = vmatprep.subr.bf16.mxu0 0
  %109 = vmatpush1.bf16.msra.mxu0 %v90
  %110 = vmatprep.subr.bf16.mxu0 0
  %111 = vmatpush1.bf16.msra.mxu0 %v91
  %112 = vmatprep.subr.bf16.mxu0 0
  %113 = vmatpush1.bf16.msra.mxu0 %v92
  %114 = vmatprep.subr.bf16.mxu0 0
  %115 = vmatpush1.bf16.msra.mxu0 %v93
  %116 = vmatprep.subr.bf16.mxu0 0
  %117 = vmatpush1.bf16.msra.mxu0 %v94
  %118 = vmatprep.subr.bf16.mxu0 0
  %119 = vmatpush1.bf16.msra.mxu0 %v95
  %120 = vmatprep.subr.bf16.mxu0 0
  %121 = vmatpush1.bf16.msra.mxu0 0
  %122 = vmatprep.subr.bf16.mxu0 0
  %123 = vmatpush1.bf16.msra.mxu0 0
  %124 = vmatprep.subr.bf16.mxu0 0
  %125 = vmatpush1.bf16.msra.mxu0 0
  %126 = vmatprep.subr.bf16.mxu0 0
  %127 = vmatpush1.bf16.msra.mxu0 0
  %128 = vmatprep.subr.bf16.mxu0 0
  %129 = vmatpush1.bf16.msra.mxu0 0
  %130 = vmatprep.subr.bf16.mxu0 0
  %131 = vmatpush1.bf16.msra.mxu0 0
  %132 = vmatprep.subr.bf16.mxu0 0
  %133 = vmatpush1.bf16.msra.mxu0 0
  %134 = vmatprep.subr.bf16.mxu0 0
  %135 = vmatpush1.bf16.msra.mxu0 0
  %136 = vmatprep.mubr.bf16.mxu0 0
  %137 = vmatmul.mubr.bf16.gmra.mrb[0].mxu0 %v52
  %v138 = vpop.f32.mrb[0].mxu0
  %v139 = vadd.f32 0.0, %v138
  %v140 = vpop.f32.mrb[0].mxu0
  %v141 = vpop.f32.mrb[0].mxu0
  %v142 = vadd.f32 0.0, %v141
  %v143 = vpop.f32.mrb[0].mxu0
  %144 = vmatprep.mubr.bf16.mxu0 0
  %145 = vmatmul.mubr.bf16.gmra.mrb[0].mxu0 %v53
  %v146 = vpop.f32.mrb[0].mxu0
  %v147 = vadd.f32 0.0, %v146
  %v148 = vpop.f32.mrb[0].mxu0
  %v149 = vpop.f32.mrb[0].mxu0
  %v150 = vadd.f32 0.0, %v149
  %v151 = vpop.f32.mrb[0].mxu0
  %152 = vdwg.mxu0
  %v153 = vadd.f32 %v20, %v139
  %v154 = vadd.f32 %v21, %v142
  %v155 = vadd.f32 %v22, %v147
  %v156 = vadd.f32 %v23, %v150
  %157 = vst [vmem:[#allocation2] sm:$0xff] %v153
  %158 = vst [vmem:[#allocation2 + $0x8] sm:$0xff] %v154
  %159 = vst [vmem:[#allocation2 + $0x10] sm:$0xff] %v155
  %160 = vst [vmem:[#allocation2 + $0x18] sm:$0xff] %v156
  // Predicated region
  $region14: #{_lambda_.41} parent=0 // pred_check
    %p161 = pneg %p12
  $region15: #{_lambda_.41} parent=0 // pred_check_branch
    %163 = sbr.rel (%p161) target = $region17
  $region16: #{_lambda_.41} parent=0 // pred_region
    %v164 = vld [vmem:[#allocation2] sm:$0xff]
    %v165 = vld [vmem:[#allocation2 + $0x8] sm:$0xff]
    %v166 = vld [vmem:[#allocation2 + $0x10] sm:$0xff]
    %v167 = vld [vmem:[#allocation2 + $0x18] sm:$0xff]
    %168 = vst [vmem:[%s2] sm:$0xff] %v164
    %169 = vst [vmem:[%s2 + $0x8] sm:$0xff] %v165
    %170 = vst [vmem:[%s2 + $0x10] sm:$0xff] %v166
    %171 = vst [vmem:[%s2 + $0x18] sm:$0xff] %v167
  $region17: #{_lambda_.41} parent=0 // pred_fallthru
    _
  // Predicated region
  $region18: #{_lambda_.41} parent=0 // pred_check
    _
  $region19: #{_lambda_.41} parent=0 // pred_check_branch
    %173 = sbr.rel (0) target = $region21
  $region20: #{_lambda_.41} parent=0 // pred_region
    _
  $region21: #{_lambda_.41} parent=0 // pred_fallthru
    _
  // Predicated region
  $region22: #{_lambda_.41} parent=0 // pred_check
    _
  $region23: #{_lambda_.41} parent=0 // pred_check_branch
    %175 = sbr.rel (0) target = $region25
  $region24: #{_lambda_.41} parent=0 // pred_region
    _
  $region25: #{_lambda_.41} parent=0 // pred_fallthru
    _

// kernel: _lambda_.43
$region0: #{_lambda_.43}
  #allocation0 [shape = 'u32[]', space=smem, size = 0x4, offset = 0x4, fixed_abs, tag = 'smem constant byte address 0x4 - core index']
  #allocation1 [shape = 'u32[144,128]{1,0:T(1,128)}', space=vmem, size = 0x12000, scoped, tag = 'internal scratch']
  %s0 = inlined_call_operand.vmem [shape: f32[32,128], index: 0, kind: input, shape index: {}]
  %s1 = inlined_call_operand.vmem [shape: f32[1,128], index: 1, kind: input, shape index: {}]
  %s2 = inlined_call_operand.vmem [shape: f32[1,128], index: 2, kind: input, shape index: {}]
  %s3 = inlined_call_operand.vmem [shape: f32[1,128], index: 3, kind: input, shape index: {}]
  %s4 = inlined_call_operand.vmem [shape: f32[1,128], index: 4, kind: input, shape index: {}]
  %s5 = inlined_call_operand.vmem [shape: f32[32,128], index: 5, kind: output, shape index: {}]
  %s6 = sld [smem:[#allocation0]]
  $region30: #{_lambda_.43} parent=0
    _
  %s8 = ssub.s32 1, %s6
  %s9 = scalar_select 0, %s8, %s6
  // Predicated region
  $region2: #{_lambda_.43} parent=0 // pred_check
    _
  $region3: #{_lambda_.43} parent=0 // pred_check_branch
    %11 = sbr.rel (0) target = $region5
  $region4: #{_lambda_.43} parent=0 // pred_region
    _
  $region5: #{_lambda_.43} parent=0 // pred_fallthru
    _
  // Predicated region
  $region6: #{_lambda_.43} parent=0 // pred_check
    _
  $region7: #{_lambda_.43} parent=0 // pred_check_branch
    %13 = sbr.rel (0) target = $region9
  $region8: #{_lambda_.43} parent=0 // pred_region
    _
  $region9: #{_lambda_.43} parent=0 // pred_fallthru
    _
  // Predicated region
  $region10: #{_lambda_.43} parent=0 // pred_check
    _
  $region11: #{_lambda_.43} parent=0 // pred_check_branch
    %15 = sbr.rel (0) target = $region13
  $region12: #{_lambda_.43} parent=0 // pred_region
    _
  $region13: #{_lambda_.43} parent=0 // pred_fallthru
    _
  // Predicated region
  $region14: #{_lambda_.43} parent=0 // pred_check
    _
  $region15: #{_lambda_.43} parent=0 // pred_check_branch
    %17 = sbr.rel (0) target = $region17
  $region16: #{_lambda_.43} parent=0 // pred_region
    _
  $region17: #{_lambda_.43} parent=0 // pred_fallthru
    _
  // Predicated region
  $region18: #{_lambda_.43} parent=0 // pred_check
    _
  $region19: #{_lambda_.43} parent=0 // pred_check_branch
    %19 = sbr.rel (0) target = $region21
  $region20: #{_lambda_.43} parent=0 // pred_region
    _
  $region21: #{_lambda_.43} parent=0 // pred_fallthru
    _
  %v20 = vld [vmem:[%s1] sm:$0x1]
  %v21 = vmul.f32 %v20, 0.03125
  %v22 = vld [vmem:[%s2] sm:$0x1]
  %v23 = vmul.f32 %v22, 0.03125
  %v24 = vmul.f32 %v21, %v21
  %v25 = vsub.f32 %v23, %v24
  %v26 = vmax.f32 %v25, 0.0
  %v27 = vld [vmem:[%s0] sm:$0xff]
  %v28 = vld [vmem:[%s0 + $0x8] sm:$0xff]
  %v29 = vld [vmem:[%s0 + $0x10] sm:$0xff]
  %v30 = vld [vmem:[%s0 + $0x18] sm:$0xff]
  %v32 = vlaneseq
  %v33 = vshrl.u32 %v32, 7
  %v34 = vsub.s32 0, %v33
  %v35 = vrot.slane %v21, %v34
  %v37 = vsub.f32 %v27, %v35
  %v38 = vsub.f32 %v28, %v35
  %v39 = vsub.f32 %v29, %v35
  %v40 = vsub.f32 %v30, %v35
  %v41 = vadd.f32 %v26, 1e-05
  %v42 = vrsqrt.pop %v41
  %v44 = vlaneseq
  %v45 = vshrl.u32 %v44, 7
  %v46 = vsub.s32 0, %v45
  %v47 = vrot.slane %v42, %v46
  %v49 = vmul.f32 %v37, %v47
  %v50 = vmul.f32 %v38, %v47
  %v51 = vmul.f32 %v39, %v47
  %v52 = vmul.f32 %v40, %v47
  %v53 = vld [vmem:[%s3] sm:$0x1]
  %v55 = vlaneseq
  %v56 = vshrl.u32 %v55, 7
  %v57 = vsub.s32 0, %v56
  %v58 = vrot.slane %v53, %v57
  %v60 = vmul.f32 %v49, %v58
  %v61 = vmul.f32 %v50, %v58
  %v62 = vmul.f32 %v51, %v58
  %v63 = vmul.f32 %v52, %v58
  %v64 = vld [vmem:[%s4] sm:$0x1]
  %v66 = vlaneseq
  %v67 = vshrl.u32 %v66, 7
  %v68 = vsub.s32 0, %v67
  %v69 = vrot.slane %v64, %v68
  %v71 = vadd.f32 %v60, %v69
  %v72 = vadd.f32 %v61, %v69
  %v73 = vadd.f32 %v62, %v69
  %v74 = vadd.f32 %v63, %v69
  %vm75 = vcmp.gt.f32.partialorder %v71, 0.0
  %vm76 = vcmp.gt.f32.partialorder %v72, 0.0
  %vm77 = vcmp.gt.f32.partialorder %v73, 0.0
  %vm78 = vcmp.gt.f32.partialorder %v74, 0.0
  %v79 = vmul.f32 %v71, 0.2
  %v80 = vmul.f32 %v72, 0.2
  %v81 = vmul.f32 %v73, 0.2
  %v82 = vmul.f32 %v74, 0.2
  %v83 = vsel %vm75, %v71, %v79
  %v84 = vsel %vm76, %v72, %v80
  %v85 = vsel %vm77, %v73, %v81
  %v86 = vsel %vm78, %v74, %v82
  %87 = vst [vmem:[%s5] sm:$0xff] %v83
  %88 = vst [vmem:[%s5 + $0x8] sm:$0xff] %v84
  %89 = vst [vmem:[%s5 + $0x10] sm:$0xff] %v85
  %90 = vst [vmem:[%s5 + $0x18] sm:$0xff] %v86
  // Predicated region
  $region22: #{_lambda_.43} parent=0 // pred_check
    _
  $region23: #{_lambda_.43} parent=0 // pred_check_branch
    %92 = sbr.rel (0) target = $region25
  $region24: #{_lambda_.43} parent=0 // pred_region
    _
  $region25: #{_lambda_.43} parent=0 // pred_fallthru
    _
  // Predicated region
  $region26: #{_lambda_.43} parent=0 // pred_check
    _
  $region27: #{_lambda_.43} parent=0 // pred_check_branch
    %94 = sbr.rel (0) target = $region29
  $region28: #{_lambda_.43} parent=0 // pred_region
    _
  $region29: #{_lambda_.43} parent=0 // pred_fallthru
    _

// kernel: _lambda_.45
$region0: #{_lambda_.45}
  #allocation0 [shape = 'u32[]', space=smem, size = 0x4, offset = 0x4, fixed_abs, tag = 'smem constant byte address 0x4 - core index']
  #allocation1 [shape = 'u32[144,128]{1,0:T(1,128)}', space=vmem, size = 0x12000, scoped, tag = 'internal scratch']
  %s0 = inlined_call_operand.vmem [shape: f32[2,16,128], index: 0, kind: input, shape index: {}]
  %s1 = inlined_call_operand.vmem [shape: f32[2,1,128], index: 1, kind: output, shape index: {0}]
  %s2 = inlined_call_operand.vmem [shape: f32[2,1,128], index: 2, kind: output, shape index: {1}]
  %3 = xla_tuple %s1, %s2
  %s4 = sld [smem:[#allocation0]]
  $region49: #{_lambda_.45} parent=0
    _
  %s6 = ssub.s32 1, %s4
  %s7 = scalar_select 0, %s6, %s4
  loop: start=0, step=1, limit=4
  $region2: #{_lambda_.45} parent=0 // loop_pre_header
    _
  $region3: #{_lambda_.45} parent=0 // loop_header
    %s9 = sphi 0, %s13
    %p10 = scmp.ge.s32.totalorder %s9, 4
    %s16 = sphi 0, %s28
    %s17 = sphi 0, %s24
    %s18 = sphi 0, %s16
    %s19 = sphi 0, %s17
    %s20 = sphi 0, %s18
    %s21 = sphi 0, %s19
    %s33 = sphi 0, %s35
    %s36 = sphi 0, %s33
    %s37 = sphi 0, %s36
    %s53 = sphi 0, %s37
    %s59 = sphi 0, %s61
    %s62 = sphi 0, %s59
    %s63 = sphi 0, %s62
    %s79 = sphi 0, %s63
    %s85 = sphi 0, %s87
    %s88 = sphi 0, %s85
    %s89 = sphi 0, %s88
    %s105 = sphi 0, %s89
  $region4: #{_lambda_.45} parent=0 // loop_header_branch
    %12 = sbr.rel (%p10) target = $region8
  $region5: #{_lambda_.45} parent=0 // loop_body
    %s14 = ssub.s32 %s9, 1
    %s15 = ssub.s32 %s9, 2
    %s22 = sadd.s32 1, %s17
    %p23 = scmp.ge.s32.totalorder %s22, 1
    %s24 = scalar_select %p23, 0, %s22
    %s25 = sadd.s32 1, %s16
    %s26 = scalar_select %p23, %s25, %s16
    %p27 = scmp.ge.s32.totalorder %s26, 2
    %s28 = scalar_select %p27, 0, %s26
    %s29 = ssub.s32 %s16, %s28
    %s30 = ssub.s32 %s17, %s24
    %s31 = sor.u32 %s29, %s30
    %p32 = scmp.eq.s32.totalorder %s31, 0
    %s34 = sadd.s32 %s33, 1
    %s35 = scalar_select %p32, %s33, %s34
    %p38 = pneg %p32
    %p39 = scmp.eq.s32.totalorder %s9, 1
    %p40 = por %p38, %p39
    %p41 = scmp.ne.s32.totalorder %s33, %s36
    %p42 = scmp.eq.s32.totalorder %s9, 0
    %p43 = por %p41, %p42
    %p44 = scmp.ne.s32.totalorder %s33, %s36
    %p45 = scmp.eq.s32.totalorder %s14, 1
    %p46 = por %p44, %p45
    %p47 = scmp.ne.s32.totalorder %s36, %s37
    %p48 = scmp.eq.s32.totalorder %s14, 0
    %p49 = por %p47, %p48
    %p50 = scmp.ne.s32.totalorder %s36, %s37
    %p51 = scmp.eq.s32.totalorder %s15, 1
    %p52 = por %p50, %p51
    %p54 = scmp.ne.s32.totalorder %s37, %s53
    %p55 = scmp.eq.s32.totalorder %s15, 0
    %p56 = por %p54, %p55
    %s57 = ssub.s32 %s16, %s28
    %p58 = scmp.eq.s32.totalorder %s57, 0
    %s60 = sadd.s32 %s59, 1
    %s61 = scalar_select %p58, %s59, %s60
    %p64 = pneg %p58
    %p65 = scmp.eq.s32.totalorder %s9, 1
    %p66 = por %p64, %p65
    %p67 = scmp.ne.s32.totalorder %s59, %s62
    %p68 = scmp.eq.s32.totalorder %s9, 0
    %p69 = por %p67, %p68
    %p70 = scmp.ne.s32.totalorder %s59, %s62
    %p71 = scmp.eq.s32.totalorder %s14, 1
    %p72 = por %p70, %p71
    %p73 = scmp.ne.s32.totalorder %s62, %s63
    %p74 = scmp.eq.s32.totalorder %s14, 0
    %p75 = por %p73, %p74
    %p76 = scmp.ne.s32.totalorder %s62, %s63
    %p77 = scmp.eq.s32.totalorder %s15, 1
    %p78 = por %p76, %p77
    %p80 = scmp.ne.s32.totalorder %s63, %s79
    %p81 = scmp.eq.s32.totalorder %s15, 0
    %p82 = por %p80, %p81
    %s83 = ssub.s32 %s16, %s28
    %p84 = scmp.eq.s32.totalorder %s83, 0
    %s86 = sadd.s32 %s85, 1
    %s87 = scalar_select %p84, %s85, %s86
    %p90 = pneg %p84
    %p91 = scmp.eq.s32.totalorder %s9, 1
    %p92 = por %p90, %p91
    %p93 = scmp.ne.s32.totalorder %s85, %s88
    %p94 = scmp.eq.s32.totalorder %s9, 0
    %p95 = por %p93, %p94
    %p96 = scmp.ne.s32.totalorder %s85, %s88
    %p97 = scmp.eq.s32.totalorder %s14, 1
    %p98 = por %p96, %p97
    %p99 = scmp.ne.s32.totalorder %s88, %s89
    %p100 = scmp.eq.s32.totalorder %s14, 0
    %p101 = por %p99, %p100
    %p102 = scmp.ne.s32.totalorder %s88, %s89
    %p103 = scmp.eq.s32.totalorder %s15, 1
    %p104 = por %p102, %p103
    %p106 = scmp.ne.s32.totalorder %s89, %s105
    %p107 = scmp.eq.s32.totalorder %s15, 0
    %p108 = por %p106, %p107
    %p109 = scmp.le.s32.totalorder 1, %s9
    %p110 = scmp.lt.s32.totalorder %s9, 3
    %p111 = pnand %p109, %p110
    %p112 = pneg %p111
    // Predicated region
    $region9: #{_lambda_.45} parent=5 // pred_check
      _
    $region10: #{_lambda_.45} parent=5 // pred_check_branch
      %114 = sbr.rel (%p111) target = $region12
    $region11: #{_lambda_.45} parent=5 // pred_region
      %s115 = ssub.s32 %s9, 1
    $region12: #{_lambda_.45} parent=5 // pred_fallthru
      _
    %p116 = scmp.lt.s32.totalorder %s9, 2
    // Predicated region
    $region13: #{_lambda_.45} parent=5 // pred_check
      %p117 = pneg %p116
    $region14: #{_lambda_.45} parent=5 // pred_check_branch
      %119 = sbr.rel (%p117) target = $region16
    $region15: #{_lambda_.45} parent=5 // pred_region
      // Predicated region
      $region17: #{_lambda_.45} parent=15 // pred_check
        %p120 = pneg %p43
      $region18: #{_lambda_.45} parent=15 // pred_check_branch
        %122 = sbr.rel (%p120) target = $region20
      $region19: #{_lambda_.45} parent=15 // pred_region
        %s123 = smul.u32 2, %s17
        %p124 = scmp.lt.s32.totalorder %s16, 1
        %s125 = scalar_select %p124, %s16, 1
        %p126 = scmp.lt.s32.totalorder %s123, 1
        %s127 = scalar_select %p126, %s123, 1
        %s128 = smul.addr %s125, 2
        %s129 = sadd.s32 %s127, %s128
        %s130 = smul.addr %s129, 8
        %s131 = scalar_lea.vmem %s0, %s130
        %s132 = smul.u32 2, %s17
      $region20: #{_lambda_.45} parent=15 // pred_fallthru
        _
    $region16: #{_lambda_.45} parent=5 // pred_fallthru
      _
    %p133 = scmp.le.s32.totalorder 1, %s9
    %p134 = scmp.lt.s32.totalorder %s9, 3
    %p135 = pnand %p133, %p134
    %p136 = pneg %p135
    // Predicated region
    $region21: #{_lambda_.45} parent=5 // pred_check
      _
    $region22: #{_lambda_.45} parent=5 // pred_check_branch
      %138 = sbr.rel (%p135) target = $region24
    $region23: #{_lambda_.45} parent=5 // pred_region
      %s139 = ssub.s32 %s9, 1
      %s140 = smul.u32 2, %s19
      %p141 = scmp.lt.s32.totalorder %s18, 1
      %s142 = scalar_select %p141, %s18, 1
      %p143 = scmp.lt.s32.totalorder %s140, 1
      %s144 = scalar_select %p143, %s140, 1
      %s145 = smul.addr %s142, 2
      %s146 = sadd.s32 %s144, %s145
      %s147 = smul.addr %s146, 8
      %s148 = scalar_lea.vmem %s0, %s147
      %p149 = pneg %p49
      %p150 = pneg %p46
      %p151 = pneg %p75
      %p152 = pneg %p72
      %p153 = scmp.lt.s32.totalorder %s18, 1
      %s154 = scalar_select %p153, %s18, 1
      %s155 = scalar_lea.vmem %s1, %s154
      %p156 = pneg %p101
      %p157 = pneg %p98
      %p158 = scmp.lt.s32.totalorder %s18, 1
      %s159 = scalar_select %p158, %s18, 1
      %s160 = scalar_lea.vmem %s2, %s159
      %s161 = smul.u32 2, %s19
      %p162 = scmp.lt.s32.totalorder %s18, 1
      %s163 = scalar_select %p162, %s18, 1
      %p164 = scmp.lt.s32.totalorder %s161, 1
      %s165 = scalar_select %p164, %s161, 1
      %s166 = smul.addr %s163, 2
      %s167 = sadd.s32 %s165, %s166
      %s168 = smul.addr %s167, 8
      %s169 = scalar_lea.vmem %s0, %s168
      %s170 = smul.u32 2, %s19
      %p171 = scmp.lt.s32.totalorder %s18, 1
      %s172 = scalar_select %p171, %s18, 1
      %s173 = scalar_lea.vmem %s1, %s172
      %p174 = scmp.lt.s32.totalorder %s18, 1
      %s175 = scalar_select %p174, %s18, 1
      %s176 = scalar_lea.vmem %s2, %s175
      %p177 = scmp.eq.s32.totalorder %s19, 0
      // Predicated region
      $region25: #{_lambda_.45} parent=23 // pred_check
        %p178 = pneg %p177
      $region26: #{_lambda_.45} parent=23 // pred_check_branch
        %180 = sbr.rel (%p178) target = $region28
      $region27: #{_lambda_.45} parent=23 // pred_region
        %181 = vst [vmem:[%s173] sm:$0x1] 0.0
        %182 = vst [vmem:[%s176] sm:$0x1] 0.0
      $region28: #{_lambda_.45} parent=23 // pred_fallthru
        _
      %v183 = vld [vmem:[%s169] sm:$0xff]
      %v184 = vld [vmem:[%s169 + $0x8] sm:$0xff]
      %v185 = vld [vmem:[%s173] sm:$0x1]
      %v186 = vadd.f32 %v183, %v184
      %v187 = vrot.slane %v186, 4
      %v188 = vadd.f32 %v186, %v187
      %v189 = vrot.slane %v188, 2
      %v190 = vadd.f32 %v188, %v189
      %v191 = vrot.slane %v190, 1
      %v192 = vadd.f32 %v190, %v191
      %v193 = vadd.f32 %v185, %v192
      %194 = vst [vmem:[%s173] sm:$0x1] %v193
      %v195 = vld [vmem:[%s176] sm:$0x1]
      %v196 = vmul.f32 %v183, %v183
      %v197 = vmul.f32 %v184, %v184
      %v198 = vadd.f32 %v196, %v197
      %v199 = vrot.slane %v198, 4
      %v200 = vadd.f32 %v198, %v199
      %v201 = vrot.slane %v200, 2
      %v202 = vadd.f32 %v200, %v201
      %v203 = vrot.slane %v202, 1
      %v204 = vadd.f32 %v202, %v203
      %v205 = vadd.f32 %v195, %v204
      %206 = vst [vmem:[%s176] sm:$0x1] %v205
      %p207 = scmp.lt.s32.totalorder %s18, 1
      %s208 = scalar_select %p207, %s18, 1
      %s209 = scalar_lea.vmem %s1, %s208
      %p210 = scmp.lt.s32.totalorder %s18, 1
      %s211 = scalar_select %p210, %s18, 1
      %s212 = scalar_lea.vmem %s2, %s211
      // Predicated region
      $region29: #{_lambda_.45} parent=23 // pred_check
        %p213 = pneg %p72
      $region30: #{_lambda_.45} parent=23 // pred_check_branch
        %215 = sbr.rel (%p213) target = $region32
      $region31: #{_lambda_.45} parent=23 // pred_region
        _
      $region32: #{_lambda_.45} parent=23 // pred_fallthru
        _
      // Predicated region
      $region33: #{_lambda_.45} parent=23 // pred_check
        %p216 = pneg %p98
      $region34: #{_lambda_.45} parent=23 // pred_check_branch
        %218 = sbr.rel (%p216) target = $region36
      $region35: #{_lambda_.45} parent=23 // pred_region
        _
      $region36: #{_lambda_.45} parent=23 // pred_fallthru
        _
    $region24: #{_lambda_.45} parent=5 // pred_fallthru
      _
    %p219 = scmp.le.s32.totalorder 2, %s9
    // Predicated region
    $region37: #{_lambda_.45} parent=5 // pred_check
      %p220 = pneg %p219
    $region38: #{_lambda_.45} parent=5 // pred_check_branch
      %222 = sbr.rel (%p220) target = $region40
    $region39: #{_lambda_.45} parent=5 // pred_region
      %s223 = ssub.s32 %s9, 2
      // Predicated region
      $region41: #{_lambda_.45} parent=39 // pred_check
        %p224 = pneg %p78
      $region42: #{_lambda_.45} parent=39 // pred_check_branch
        %226 = sbr.rel (%p224) target = $region44
      $region43: #{_lambda_.45} parent=39 // pred_region
        %p227 = scmp.lt.s32.totalorder %s20, 1
        %s228 = scalar_select %p227, %s20, 1
        %s229 = scalar_lea.vmem %s1, %s228
      $region44: #{_lambda_.45} parent=39 // pred_fallthru
        _
      // Predicated region
      $region45: #{_lambda_.45} parent=39 // pred_check
        %p230 = pneg %p104
      $region46: #{_lambda_.45} parent=39 // pred_check_branch
        %232 = sbr.rel (%p230) target = $region48
      $region47: #{_lambda_.45} parent=39 // pred_region
        %p233 = scmp.lt.s32.totalorder %s20, 1
        %s234 = scalar_select %p233, %s20, 1
        %s235 = scalar_lea.vmem %s2, %s234
      $region48: #{_lambda_.45} parent=39 // pred_fallthru
        _
    $region40: #{_lambda_.45} parent=5 // pred_fallthru
      _
  $region6: #{_lambda_.45} parent=0 // loop_footer
    %s13 = sadd.s32 1, %s9
  $region7: #{_lambda_.45} parent=0 // loop_footer_branch
    %8 = sbr.rel target = $region3
  $region8: #{_lambda_.45} parent=0 // loop_exit
    _

// kernel: _lambda_.46
$region0: #{_lambda_.46}
  #allocation0 [shape = 'u32[]', space=smem, size = 0x4, offset = 0x4, fixed_abs, tag = 'smem constant byte address 0x4 - core index']
  #allocation1 [shape = 'u32[144,128]{1,0:T(1,128)}', space=vmem, size = 0x12000, scoped, tag = 'internal scratch']
  %s0 = inlined_call_operand.vmem [shape: f32[2,16,128], index: 0, kind: input, shape index: {}]
  %s1 = inlined_call_operand.vmem [shape: f32[2,1,128], index: 1, kind: input, shape index: {}]
  %s2 = inlined_call_operand.vmem [shape: f32[2,1,128], index: 2, kind: input, shape index: {}]
  %s3 = inlined_call_operand.vmem [shape: f32[1,1,128], index: 3, kind: input, shape index: {}]
  %s4 = inlined_call_operand.vmem [shape: f32[1,1,128], index: 4, kind: input, shape index: {}]
  %s5 = inlined_call_operand.vmem [shape: f32[2,16,128], index: 5, kind: output, shape index: {}]
  %s6 = sld [smem:[#allocation0]]
  $region53: #{_lambda_.46} parent=0
    _
  %s8 = ssub.s32 1, %s6
  %s9 = scalar_select 0, %s8, %s6
  loop: start=0, step=1, limit=4
  $region2: #{_lambda_.46} parent=0 // loop_pre_header
    _
  $region3: #{_lambda_.46} parent=0 // loop_header
    %s11 = sphi 0, %s15
    %p12 = scmp.ge.s32.totalorder %s11, 4
    %s18 = sphi 0, %s30
    %s19 = sphi 0, %s26
    %s20 = sphi 0, %s18
    %s21 = sphi 0, %s19
    %s22 = sphi 0, %s20
    %s23 = sphi 0, %s21
    %s35 = sphi 0, %s37
    %s38 = sphi 0, %s35
    %s39 = sphi 0, %s38
    %s55 = sphi 0, %s39
    %s61 = sphi 0, %s63
    %s64 = sphi 0, %s61
    %s65 = sphi 0, %s64
    %s81 = sphi 0, %s65
    %s87 = sphi 0, %s89
    %s90 = sphi 0, %s87
    %s91 = sphi 0, %s90
    %s107 = sphi 0, %s91
    %s111 = sphi 0, %s111
    %s113 = sphi 0, %s111
    %s114 = sphi 0, %s113
    %s128 = sphi 0, %s114
    %s132 = sphi 0, %s132
    %s134 = sphi 0, %s132
    %s135 = sphi 0, %s134
    %s149 = sphi 0, %s135
    %s157 = sphi 0, %s159
    %s160 = sphi 0, %s157
    %s161 = sphi 0, %s160
    %s177 = sphi 0, %s161
  $region4: #{_lambda_.46} parent=0 // loop_header_branch
    %14 = sbr.rel (%p12) target = $region8
  $region5: #{_lambda_.46} parent=0 // loop_body
    %s16 = ssub.s32 %s11, 1
    %s17 = ssub.s32 %s11, 2
    %s24 = sadd.s32 1, %s19
    %p25 = scmp.ge.s32.totalorder %s24, 1
    %s26 = scalar_select %p25, 0, %s24
    %s27 = sadd.s32 1, %s18
    %s28 = scalar_select %p25, %s27, %s18
    %p29 = scmp.ge.s32.totalorder %s28, 2
    %s30 = scalar_select %p29, 0, %s28
    %s31 = ssub.s32 %s18, %s30
    %s32 = ssub.s32 %s19, %s26
    %s33 = sor.u32 %s31, %s32
    %p34 = scmp.eq.s32.totalorder %s33, 0
    %s36 = sadd.s32 %s35, 1
    %s37 = scalar_select %p34, %s35, %s36
    %p40 = pneg %p34
    %p41 = scmp.eq.s32.totalorder %s11, 1
    %p42 = por %p40, %p41
    %p43 = scmp.ne.s32.totalorder %s35, %s38
    %p44 = scmp.eq.s32.totalorder %s11, 0
    %p45 = por %p43, %p44
    %p46 = scmp.ne.s32.totalorder %s35, %s38
    %p47 = scmp.eq.s32.totalorder %s16, 1
    %p48 = por %p46, %p47
    %p49 = scmp.ne.s32.totalorder %s38, %s39
    %p50 = scmp.eq.s32.totalorder %s16, 0
    %p51 = por %p49, %p50
    %p52 = scmp.ne.s32.totalorder %s38, %s39
    %p53 = scmp.eq.s32.totalorder %s17, 1
    %p54 = por %p52, %p53
    %p56 = scmp.ne.s32.totalorder %s39, %s55
    %p57 = scmp.eq.s32.totalorder %s17, 0
    %p58 = por %p56, %p57
    %s59 = ssub.s32 %s18, %s30
    %p60 = scmp.eq.s32.totalorder %s59, 0
    %s62 = sadd.s32 %s61, 1
    %s63 = scalar_select %p60, %s61, %s62
    %p66 = pneg %p60
    %p67 = scmp.eq.s32.totalorder %s11, 1
    %p68 = por %p66, %p67
    %p69 = scmp.ne.s32.totalorder %s61, %s64
    %p70 = scmp.eq.s32.totalorder %s11, 0
    %p71 = por %p69, %p70
    %p72 = scmp.ne.s32.totalorder %s61, %s64
    %p73 = scmp.eq.s32.totalorder %s16, 1
    %p74 = por %p72, %p73
    %p75 = scmp.ne.s32.totalorder %s64, %s65
    %p76 = scmp.eq.s32.totalorder %s16, 0
    %p77 = por %p75, %p76
    %p78 = scmp.ne.s32.totalorder %s64, %s65
    %p79 = scmp.eq.s32.totalorder %s17, 1
    %p80 = por %p78, %p79
    %p82 = scmp.ne.s32.totalorder %s65, %s81
    %p83 = scmp.eq.s32.totalorder %s17, 0
    %p84 = por %p82, %p83
    %s85 = ssub.s32 %s18, %s30
    %p86 = scmp.eq.s32.totalorder %s85, 0
    %s88 = sadd.s32 %s87, 1
    %s89 = scalar_select %p86, %s87, %s88
    %p92 = pneg %p86
    %p93 = scmp.eq.s32.totalorder %s11, 1
    %p94 = por %p92, %p93
    %p95 = scmp.ne.s32.totalorder %s87, %s90
    %p96 = scmp.eq.s32.totalorder %s11, 0
    %p97 = por %p95, %p96
    %p98 = scmp.ne.s32.totalorder %s87, %s90
    %p99 = scmp.eq.s32.totalorder %s16, 1
    %p100 = por %p98, %p99
    %p101 = scmp.ne.s32.totalorder %s90, %s91
    %p102 = scmp.eq.s32.totalorder %s16, 0
    %p103 = por %p101, %p102
    %p104 = scmp.ne.s32.totalorder %s90, %s91
    %p105 = scmp.eq.s32.totalorder %s17, 1
    %p106 = por %p104, %p105
    %p108 = scmp.ne.s32.totalorder %s91, %s107
    %p109 = scmp.eq.s32.totalorder %s17, 0
    %p110 = por %p108, %p109
    %s112 = sadd.s32 %s111, 1
    %p115 = scmp.eq.s32.totalorder %s11, 1
    %p116 = scmp.ne.s32.totalorder %s111, %s113
    %p117 = scmp.eq.s32.totalorder %s11, 0
    %p118 = por %p116, %p117
    %p119 = scmp.ne.s32.totalorder %s111, %s113
    %p120 = scmp.eq.s32.totalorder %s16, 1
    %p121 = por %p119, %p120
    %p122 = scmp.ne.s32.totalorder %s113, %s114
    %p123 = scmp.eq.s32.totalorder %s16, 0
    %p124 = por %p122, %p123
    %p125 = scmp.ne.s32.totalorder %s113, %s114
    %p126 = scmp.eq.s32.totalorder %s17, 1
    %p127 = por %p125, %p126
    %p129 = scmp.ne.s32.totalorder %s114, %s128
    %p130 = scmp.eq.s32.totalorder %s17, 0
    %p131 = por %p129, %p130
    %s133 = sadd.s32 %s132, 1
    %p136 = scmp.eq.s32.totalorder %s11, 1
    %p137 = scmp.ne.s32.totalorder %s132, %s134
    %p138 = scmp.eq.s32.totalorder %s11, 0
    %p139 = por %p137, %p138
    %p140 = scmp.ne.s32.totalorder %s132, %s134
    %p141 = scmp.eq.s32.totalorder %s16, 1
    %p142 = por %p140, %p141
    %p143 = scmp.ne.s32.totalorder %s134, %s135
    %p144 = scmp.eq.s32.totalorder %s16, 0
    %p145 = por %p143, %p144
    %p146 = scmp.ne.s32.totalorder %s134, %s135
    %p147 = scmp.eq.s32.totalorder %s17, 1
    %p148 = por %p146, %p147
    %p150 = scmp.ne.s32.totalorder %s135, %s149
    %p151 = scmp.eq.s32.totalorder %s17, 0
    %p152 = por %p150, %p151
    %s153 = ssub.s32 %s18, %s30
    %s154 = ssub.s32 %s19, %s26
    %s155 = sor.u32 %s153, %s154
    %p156 = scmp.eq.s32.totalorder %s155, 0
    %s158 = sadd.s32 %s157, 1
    %s159 = scalar_select %p156, %s157, %s158
    %p162 = pneg %p156
    %p163 = scmp.eq.s32.totalorder %s11, 1
    %p164 = por %p162, %p163
    %p165 = scmp.ne.s32.totalorder %s157, %s160
    %p166 = scmp.eq.s32.totalorder %s11, 0
    %p167 = por %p165, %p166
    %p168 = scmp.ne.s32.totalorder %s157, %s160
    %p169 = scmp.eq.s32.totalorder %s16, 1
    %p170 = por %p168, %p169
    %p171 = scmp.ne.s32.totalorder %s160, %s161
    %p172 = scmp.eq.s32.totalorder %s16, 0
    %p173 = por %p171, %p172
    %p174 = scmp.ne.s32.totalorder %s160, %s161
    %p175 = scmp.eq.s32.totalorder %s17, 1
    %p176 = por %p174, %p175
    %p178 = scmp.ne.s32.totalorder %s161, %s177
    %p179 = scmp.eq.s32.totalorder %s17, 0
    %p180 = por %p178, %p179
    %p181 = scmp.le.s32.totalorder 1, %s11
    %p182 = scmp.lt.s32.totalorder %s11, 3
    %p183 = pnand %p181, %p182
    %p184 = pneg %p183
    // Predicated region
    $region9: #{_lambda_.46} parent=5 // pred_check
      _
    $region10: #{_lambda_.46} parent=5 // pred_check_branch
      %186 = sbr.rel (%p183) target = $region12
    $region11: #{_lambda_.46} parent=5 // pred_region
      %s187 = ssub.s32 %s11, 1
      // Predicated region
      $region13: #{_lambda_.46} parent=11 // pred_check
        %p188 = pneg %p124
      $region14: #{_lambda_.46} parent=11 // pred_check_branch
        %190 = sbr.rel (%p188) target = $region16
      $region15: #{_lambda_.46} parent=11 // pred_region
        _
      $region16: #{_lambda_.46} parent=11 // pred_fallthru
        _
      // Predicated region
      $region17: #{_lambda_.46} parent=11 // pred_check
        %p191 = pneg %p145
      $region18: #{_lambda_.46} parent=11 // pred_check_branch
        %193 = sbr.rel (%p191) target = $region20
      $region19: #{_lambda_.46} parent=11 // pred_region
        _
      $region20: #{_lambda_.46} parent=11 // pred_fallthru
        _
    $region12: #{_lambda_.46} parent=5 // pred_fallthru
      _
    %p194 = scmp.lt.s32.totalorder %s11, 2
    // Predicated region
    $region21: #{_lambda_.46} parent=5 // pred_check
      %p195 = pneg %p194
    $region22: #{_lambda_.46} parent=5 // pred_check_branch
      %197 = sbr.rel (%p195) target = $region24
    $region23: #{_lambda_.46} parent=5 // pred_region
      // Predicated region
      $region25: #{_lambda_.46} parent=23 // pred_check
        %p198 = pneg %p45
      $region26: #{_lambda_.46} parent=23 // pred_check_branch
        %200 = sbr.rel (%p198) target = $region28
      $region27: #{_lambda_.46} parent=23 // pred_region
        %s201 = smul.u32 2, %s19
        %p202 = scmp.lt.s32.totalorder %s18, 1
        %s203 = scalar_select %p202, %s18, 1
        %p204 = scmp.lt.s32.totalorder %s201, 1
        %s205 = scalar_select %p204, %s201, 1
        %s206 = smul.addr %s203, 2
        %s207 = sadd.s32 %s205, %s206
        %s208 = smul.addr %s207, 8
        %s209 = scalar_lea.vmem %s0, %s208
        %s210 = smul.u32 2, %s19
      $region28: #{_lambda_.46} parent=23 // pred_fallthru
        _
      // Predicated region
      $region29: #{_lambda_.46} parent=23 // pred_check
        %p211 = pneg %p71
      $region30: #{_lambda_.46} parent=23 // pred_check_branch
        %213 = sbr.rel (%p211) target = $region32
      $region31: #{_lambda_.46} parent=23 // pred_region
        %p214 = scmp.lt.s32.totalorder %s18, 1
        %s215 = scalar_select %p214, %s18, 1
        %s216 = scalar_lea.vmem %s1, %s215
      $region32: #{_lambda_.46} parent=23 // pred_fallthru
        _
      // Predicated region
      $region33: #{_lambda_.46} parent=23 // pred_check
        %p217 = pneg %p97
      $region34: #{_lambda_.46} parent=23 // pred_check_branch
        %219 = sbr.rel (%p217) target = $region36
      $region35: #{_lambda_.46} parent=23 // pred_region
        %p220 = scmp.lt.s32.totalorder %s18, 1
        %s221 = scalar_select %p220, %s18, 1
        %s222 = scalar_lea.vmem %s2, %s221
      $region36: #{_lambda_.46} parent=23 // pred_fallthru
        _
    $region24: #{_lambda_.46} parent=5 // pred_fallthru
      _
    %p223 = scmp.le.s32.totalorder 1, %s11
    %p224 = scmp.lt.s32.totalorder %s11, 3
    %p225 = pnand %p223, %p224
    %p226 = pneg %p225
    // Predicated region
    $region37: #{_lambda_.46} parent=5 // pred_check
      _
    $region38: #{_lambda_.46} parent=5 // pred_check_branch
      %228 = sbr.rel (%p225) target = $region40
    $region39: #{_lambda_.46} parent=5 // pred_region
      %s229 = ssub.s32 %s11, 1
      %s230 = smul.u32 2, %s21
      %p231 = scmp.lt.s32.totalorder %s20, 1
      %s232 = scalar_select %p231, %s20, 1
      %p233 = scmp.lt.s32.totalorder %s230, 1
      %s234 = scalar_select %p233, %s230, 1
      %s235 = smul.addr %s232, 2
      %s236 = sadd.s32 %s234, %s235
      %s237 = smul.addr %s236, 8
      %s238 = scalar_lea.vmem %s0, %s237
      %p239 = pneg %p51
      %p240 = pneg %p48
      %p241 = scmp.lt.s32.totalorder %s20, 1
      %s242 = scalar_select %p241, %s20, 1
      %s243 = scalar_lea.vmem %s1, %s242
      %p244 = pneg %p77
      %p245 = pneg %p74
      %p246 = scmp.lt.s32.totalorder %s20, 1
      %s247 = scalar_select %p246, %s20, 1
      %s248 = scalar_lea.vmem %s2, %s247
      %p249 = pneg %p103
      %p250 = pneg %p100
      %p251 = pneg %p124
      %p252 = pneg %p121
      %p253 = pneg %p145
      %p254 = pneg %p142
      %p255 = pneg %p173
      %p256 = pneg %p170
      %s257 = smul.u32 2, %s21
      %p258 = scmp.lt.s32.totalorder %s20, 1
      %s259 = scalar_select %p258, %s20, 1
      %p260 = scmp.lt.s32.totalorder %s257, 1
      %s261 = scalar_select %p260, %s257, 1
      %s262 = smul.addr %s259, 2
      %s263 = sadd.s32 %s261, %s262
      %s264 = smul.addr %s263, 8
      %s265 = scalar_lea.vmem %s5, %s264
      %s266 = smul.u32 2, %s21
      %p267 = scmp.lt.s32.totalorder %s20, 1
      %s268 = scalar_select %p267, %s20, 1
      %p269 = scmp.lt.s32.totalorder %s266, 1
      %s270 = scalar_select %p269, %s266, 1
      %s271 = smul.addr %s268, 2
      %s272 = sadd.s32 %s270, %s271
      %s273 = smul.addr %s272, 8
      %s274 = scalar_lea.vmem %s0, %s273
      %s275 = smul.u32 2, %s21
      %p276 = scmp.lt.s32.totalorder %s20, 1
      %s277 = scalar_select %p276, %s20, 1
      %s278 = scalar_lea.vmem %s1, %s277
      %p279 = scmp.lt.s32.totalorder %s20, 1
      %s280 = scalar_select %p279, %s20, 1
      %s281 = scalar_lea.vmem %s2, %s280
      %s282 = smul.u32 2, %s21
      %p283 = scmp.lt.s32.totalorder %s20, 1
      %s284 = scalar_select %p283, %s20, 1
      %p285 = scmp.lt.s32.totalorder %s282, 1
      %s286 = scalar_select %p285, %s282, 1
      %s287 = smul.addr %s284, 2
      %s288 = sadd.s32 %s286, %s287
      %s289 = smul.addr %s288, 8
      %s290 = scalar_lea.vmem %s5, %s289
      %s291 = smul.u32 2, %s21
      %v292 = vld [vmem:[%s274] sm:$0xff]
      %v293 = vld [vmem:[%s274 + $0x8] sm:$0xff]
      %v294 = vld [vmem:[%s278] sm:$0x1]
      %v295 = vld [vmem:[%s281] sm:$0x1]
      %v296 = vld [vmem:[%s3] sm:$0x1]
      %v297 = vld [vmem:[%s4] sm:$0x1]
      %v298 = vmul.f32 %v294, 0.0625
      %v299 = vmul.f32 %v295, 0.0625
      %v300 = vmul.f32 %v298, %v298
      %v301 = vsub.f32 %v299, %v300
      %v302 = vmax.f32 %v301, 0.0
      %v304 = vlaneseq
      %v305 = vshrl.u32 %v304, 7
      %v306 = vsub.s32 0, %v305
      %v307 = vrot.slane %v298, %v306
      %v309 = vsub.f32 %v292, %v307
      %v310 = vsub.f32 %v293, %v307
      %v311 = vadd.f32 %v302, 1e-05
      %v312 = vrsqrt.pop %v311
      %v314 = vlaneseq
      %v315 = vshrl.u32 %v314, 7
      %v316 = vsub.s32 0, %v315
      %v317 = vrot.slane %v312, %v316
      %v319 = vmul.f32 %v309, %v317
      %v320 = vmul.f32 %v310, %v317
      %v322 = vlaneseq
      %v323 = vshrl.u32 %v322, 7
      %v324 = vsub.s32 0, %v323
      %v325 = vrot.slane %v296, %v324
      %v327 = vmul.f32 %v319, %v325
      %v328 = vmul.f32 %v320, %v325
      %v330 = vlaneseq
      %v331 = vshrl.u32 %v330, 7
      %v332 = vsub.s32 0, %v331
      %v333 = vrot.slane %v297, %v332
      %v335 = vadd.f32 %v327, %v333
      %v336 = vadd.f32 %v328, %v333
      %v337 = vmax.f32 %v335, 0.0
      %v338 = vmax.f32 %v336, 0.0
      %339 = vst [vmem:[%s290] sm:$0xff] %v337
      %340 = vst [vmem:[%s290 + $0x8] sm:$0xff] %v338
      %s341 = smul.u32 2, %s21
      %p342 = scmp.lt.s32.totalorder %s20, 1
      %s343 = scalar_select %p342, %s20, 1
      %p344 = scmp.lt.s32.totalorder %s341, 1
      %s345 = scalar_select %p344, %s341, 1
      %s346 = smul.addr %s343, 2
      %s347 = sadd.s32 %s345, %s346
      %s348 = smul.addr %s347, 8
      %s349 = scalar_lea.vmem %s5, %s348
      // Predicated region
      $region41: #{_lambda_.46} parent=39 // pred_check
        %p350 = pneg %p170
      $region42: #{_lambda_.46} parent=39 // pred_check_branch
        %352 = sbr.rel (%p350) target = $region44
      $region43: #{_lambda_.46} parent=39 // pred_region
        %s353 = smul.u32 2, %s21
      $region44: #{_lambda_.46} parent=39 // pred_fallthru
        _
    $region40: #{_lambda_.46} parent=5 // pred_fallthru
      _
    %p354 = scmp.le.s32.totalorder 2, %s11
    // Predicated region
    $region45: #{_lambda_.46} parent=5 // pred_check
      %p355 = pneg %p354
    $region46: #{_lambda_.46} parent=5 // pred_check_branch
      %357 = sbr.rel (%p355) target = $region48
    $region47: #{_lambda_.46} parent=5 // pred_region
      %s358 = ssub.s32 %s11, 2
      // Predicated region
      $region49: #{_lambda_.46} parent=47 // pred_check
        %p359 = pneg %p176
      $region50: #{_lambda_.46} parent=47 // pred_check_branch
        %361 = sbr.rel (%p359) target = $region52
      $region51: #{_lambda_.46} parent=47 // pred_region
        %s362 = smul.u32 2, %s23
        %p363 = scmp.lt.s32.totalorder %s22, 1
        %s364 = scalar_select %p363, %s22, 1
        %p365 = scmp.lt.s32.totalorder %s362, 1
        %s366 = scalar_select %p365, %s362, 1
        %s367 = smul.addr %s364, 2
        %s368 = sadd.s32 %s366, %s367
        %s369 = smul.addr %s368, 8
        %s370 = scalar_lea.vmem %s5, %s369
      $region52: #{_lambda_.46} parent=47 // pred_fallthru
        _
    $region48: #{_lambda_.46} parent=5 // pred_fallthru
      _
  $region6: #{_lambda_.46} parent=0 // loop_footer
    %s15 = sadd.s32 1, %s11
  $region7: #{_lambda_.46} parent=0 // loop_footer_branch
    %10 = sbr.rel target = $region3
  $region8: #{_lambda_.46} parent=0 // loop_exit
    _

// kernel: _lambda_.49
$region0: #{_lambda_.49}
  #allocation0 [shape = 'u32[]', space=smem, size = 0x4, offset = 0x4, fixed_abs, tag = 'smem constant byte address 0x4 - core index']
  #allocation1 [shape = 'u32[144,128]{1,0:T(1,128)}', space=vmem, size = 0x12000, scoped, tag = 'internal scratch']
  %s0 = inlined_call_operand.vmem [shape: f32[2,16,128], index: 0, kind: input, shape index: {}]
  %s1 = inlined_call_operand.vmem [shape: f32[2,16,128], index: 1, kind: input, shape index: {}]
  %s2 = inlined_call_operand.vmem [shape: f32[2,1,128], index: 2, kind: input, shape index: {}]
  %s3 = inlined_call_operand.vmem [shape: f32[2,1,128], index: 3, kind: input, shape index: {}]
  %s4 = inlined_call_operand.vmem [shape: f32[1,1,128], index: 4, kind: input, shape index: {}]
  %s5 = inlined_call_operand.vmem [shape: f32[1,1,128], index: 5, kind: input, shape index: {}]
  %s6 = inlined_call_operand.vmem [shape: f32[2,16,128], index: 6, kind: output, shape index: {}]
  %s7 = sld [smem:[#allocation0]]
  $region57: #{_lambda_.49} parent=0
    _
  %s9 = ssub.s32 1, %s7
  %s10 = scalar_select 0, %s9, %s7
  loop: start=0, step=1, limit=4
  $region2: #{_lambda_.49} parent=0 // loop_pre_header
    _
  $region3: #{_lambda_.49} parent=0 // loop_header
    %s12 = sphi 0, %s16
    %p13 = scmp.ge.s32.totalorder %s12, 4
    %s19 = sphi 0, %s31
    %s20 = sphi 0, %s27
    %s21 = sphi 0, %s19
    %s22 = sphi 0, %s20
    %s23 = sphi 0, %s21
    %s24 = sphi 0, %s22
    %s36 = sphi 0, %s38
    %s39 = sphi 0, %s36
    %s40 = sphi 0, %s39
    %s56 = sphi 0, %s40
    %s64 = sphi 0, %s66
    %s67 = sphi 0, %s64
    %s68 = sphi 0, %s67
    %s84 = sphi 0, %s68
    %s90 = sphi 0, %s92
    %s93 = sphi 0, %s90
    %s94 = sphi 0, %s93
    %s110 = sphi 0, %s94
    %s116 = sphi 0, %s118
    %s119 = sphi 0, %s116
    %s120 = sphi 0, %s119
    %s136 = sphi 0, %s120
    %s140 = sphi 0, %s140
    %s142 = sphi 0, %s140
    %s143 = sphi 0, %s142
    %s157 = sphi 0, %s143
    %s161 = sphi 0, %s161
    %s163 = sphi 0, %s161
    %s164 = sphi 0, %s163
    %s178 = sphi 0, %s164
    %s186 = sphi 0, %s188
    %s189 = sphi 0, %s186
    %s190 = sphi 0, %s189
    %s206 = sphi 0, %s190
  $region4: #{_lambda_.49} parent=0 // loop_header_branch
    %15 = sbr.rel (%p13) target = $region8
  $region5: #{_lambda_.49} parent=0 // loop_body
    %s17 = ssub.s32 %s12, 1
    %s18 = ssub.s32 %s12, 2
    %s25 = sadd.s32 1, %s20
    %p26 = scmp.ge.s32.totalorder %s25, 1
    %s27 = scalar_select %p26, 0, %s25
    %s28 = sadd.s32 1, %s19
    %s29 = scalar_select %p26, %s28, %s19
    %p30 = scmp.ge.s32.totalorder %s29, 2
    %s31 = scalar_select %p30, 0, %s29
    %s32 = ssub.s32 %s19, %s31
    %s33 = ssub.s32 %s20, %s27
    %s34 = sor.u32 %s32, %s33
    %p35 = scmp.eq.s32.totalorder %s34, 0
    %s37 = sadd.s32 %s36, 1
    %s38 = scalar_select %p35, %s36, %s37
    %p41 = pneg %p35
    %p42 = scmp.eq.s32.totalorder %s12, 1
    %p43 = por %p41, %p42
    %p44 = scmp.ne.s32.totalorder %s36, %s39
    %p45 = scmp.eq.s32.totalorder %s12, 0
    %p46 = por %p44, %p45
    %p47 = scmp.ne.s32.totalorder %s36, %s39
    %p48 = scmp.eq.s32.totalorder %s17, 1
    %p49 = por %p47, %p48
    %p50 = scmp.ne.s32.totalorder %s39, %s40
    %p51 = scmp.eq.s32.totalorder %s17, 0
    %p52 = por %p50, %p51
    %p53 = scmp.ne.s32.totalorder %s39, %s40
    %p54 = scmp.eq.s32.totalorder %s18, 1
    %p55 = por %p53, %p54
    %p57 = scmp.ne.s32.totalorder %s40, %s56
    %p58 = scmp.eq.s32.totalorder %s18, 0
    %p59 = por %p57, %p58
    %s60 = ssub.s32 %s19, %s31
    %s61 = ssub.s32 %s20, %s27
    %s62 = sor.u32 %s60, %s61
    %p63 = scmp.eq.s32.totalorder %s62, 0
    %s65 = sadd.s32 %s64, 1
    %s66 = scalar_select %p63, %s64, %s65
    %p69 = pneg %p63
    %p70 = scmp.eq.s32.totalorder %s12, 1
    %p71 = por %p69, %p70
    %p72 = scmp.ne.s32.totalorder %s64, %s67
    %p73 = scmp.eq.s32.totalorder %s12, 0
    %p74 = por %p72, %p73
    %p75 = scmp.ne.s32.totalorder %s64, %s67
    %p76 = scmp.eq.s32.totalorder %s17, 1
    %p77 = por %p75, %p76
    %p78 = scmp.ne.s32.totalorder %s67, %s68
    %p79 = scmp.eq.s32.totalorder %s17, 0
    %p80 = por %p78, %p79
    %p81 = scmp.ne.s32.totalorder %s67, %s68
    %p82 = scmp.eq.s32.totalorder %s18, 1
    %p83 = por %p81, %p82
    %p85 = scmp.ne.s32.totalorder %s68, %s84
    %p86 = scmp.eq.s32.totalorder %s18, 0
    %p87 = por %p85, %p86
    %s88 = ssub.s32 %s19, %s31
    %p89 = scmp.eq.s32.totalorder %s88, 0
    %s91 = sadd.s32 %s90, 1
    %s92 = scalar_select %p89, %s90, %s91
    %p95 = pneg %p89
    %p96 = scmp.eq.s32.totalorder %s12, 1
    %p97 = por %p95, %p96
    %p98 = scmp.ne.s32.totalorder %s90, %s93
    %p99 = scmp.eq.s32.totalorder %s12, 0
    %p100 = por %p98, %p99
    %p101 = scmp.ne.s32.totalorder %s90, %s93
    %p102 = scmp.eq.s32.totalorder %s17, 1
    %p103 = por %p101, %p102
    %p104 = scmp.ne.s32.totalorder %s93, %s94
    %p105 = scmp.eq.s32.totalorder %s17, 0
    %p106 = por %p104, %p105
    %p107 = scmp.ne.s32.totalorder %s93, %s94
    %p108 = scmp.eq.s32.totalorder %s18, 1
    %p109 = por %p107, %p108
    %p111 = scmp.ne.s32.totalorder %s94, %s110
    %p112 = scmp.eq.s32.totalorder %s18, 0
    %p113 = por %p111, %p112
    %s114 = ssub.s32 %s19, %s31
    %p115 = scmp.eq.s32.totalorder %s114, 0
    %s117 = sadd.s32 %s116, 1
    %s118 = scalar_select %p115, %s116, %s117
    %p121 = pneg %p115
    %p122 = scmp.eq.s32.totalorder %s12, 1
    %p123 = por %p121, %p122
    %p124 = scmp.ne.s32.totalorder %s116, %s119
    %p125 = scmp.eq.s32.totalorder %s12, 0
    %p126 = por %p124, %p125
    %p127 = scmp.ne.s32.totalorder %s116, %s119
    %p128 = scmp.eq.s32.totalorder %s17, 1
    %p129 = por %p127, %p128
    %p130 = scmp.ne.s32.totalorder %s119, %s120
    %p131 = scmp.eq.s32.totalorder %s17, 0
    %p132 = por %p130, %p131
    %p133 = scmp.ne.s32.totalorder %s119, %s120
    %p134 = scmp.eq.s32.totalorder %s18, 1
    %p135 = por %p133, %p134
    %p137 = scmp.ne.s32.totalorder %s120, %s136
    %p138 = scmp.eq.s32.totalorder %s18, 0
    %p139 = por %p137, %p138
    %s141 = sadd.s32 %s140, 1
    %p144 = scmp.eq.s32.totalorder %s12, 1
    %p145 = scmp.ne.s32.totalorder %s140, %s142
    %p146 = scmp.eq.s32.totalorder %s12, 0
    %p147 = por %p145, %p146
    %p148 = scmp.ne.s32.totalorder %s140, %s142
    %p149 = scmp.eq.s32.totalorder %s17, 1
    %p150 = por %p148, %p149
    %p151 = scmp.ne.s32.totalorder %s142, %s143
    %p152 = scmp.eq.s32.totalorder %s17, 0
    %p153 = por %p151, %p152
    %p154 = scmp.ne.s32.totalorder %s142, %s143
    %p155 = scmp.eq.s32.totalorder %s18, 1
    %p156 = por %p154, %p155
    %p158 = scmp.ne.s32.totalorder %s143, %s157
    %p159 = scmp.eq.s32.totalorder %s18, 0
    %p160 = por %p158, %p159
    %s162 = sadd.s32 %s161, 1
    %p165 = scmp.eq.s32.totalorder %s12, 1
    %p166 = scmp.ne.s32.totalorder %s161, %s163
    %p167 = scmp.eq.s32.totalorder %s12, 0
    %p168 = por %p166, %p167
    %p169 = scmp.ne.s32.totalorder %s161, %s163
    %p170 = scmp.eq.s32.totalorder %s17, 1
    %p171 = por %p169, %p170
    %p172 = scmp.ne.s32.totalorder %s163, %s164
    %p173 = scmp.eq.s32.totalorder %s17, 0
    %p174 = por %p172, %p173
    %p175 = scmp.ne.s32.totalorder %s163, %s164
    %p176 = scmp.eq.s32.totalorder %s18, 1
    %p177 = por %p175, %p176
    %p179 = scmp.ne.s32.totalorder %s164, %s178
    %p180 = scmp.eq.s32.totalorder %s18, 0
    %p181 = por %p179, %p180
    %s182 = ssub.s32 %s19, %s31
    %s183 = ssub.s32 %s20, %s27
    %s184 = sor.u32 %s182, %s183
    %p185 = scmp.eq.s32.totalorder %s184, 0
    %s187 = sadd.s32 %s186, 1
    %s188 = scalar_select %p185, %s186, %s187
    %p191 = pneg %p185
    %p192 = scmp.eq.s32.totalorder %s12, 1
    %p193 = por %p191, %p192
    %p194 = scmp.ne.s32.totalorder %s186, %s189
    %p195 = scmp.eq.s32.totalorder %s12, 0
    %p196 = por %p194, %p195
    %p197 = scmp.ne.s32.totalorder %s186, %s189
    %p198 = scmp.eq.s32.totalorder %s17, 1
    %p199 = por %p197, %p198
    %p200 = scmp.ne.s32.totalorder %s189, %s190
    %p201 = scmp.eq.s32.totalorder %s17, 0
    %p202 = por %p200, %p201
    %p203 = scmp.ne.s32.totalorder %s189, %s190
    %p204 = scmp.eq.s32.totalorder %s18, 1
    %p205 = por %p203, %p204
    %p207 = scmp.ne.s32.totalorder %s190, %s206
    %p208 = scmp.eq.s32.totalorder %s18, 0
    %p209 = por %p207, %p208
    %p210 = scmp.le.s32.totalorder 1, %s12
    %p211 = scmp.lt.s32.totalorder %s12, 3
    %p212 = pnand %p210, %p211
    %p213 = pneg %p212
    // Predicated region
    $region9: #{_lambda_.49} parent=5 // pred_check
      _
    $region10: #{_lambda_.49} parent=5 // pred_check_branch
      %215 = sbr.rel (%p212) target = $region12
    $region11: #{_lambda_.49} parent=5 // pred_region
      %s216 = ssub.s32 %s12, 1
      // Predicated region
      $region13: #{_lambda_.49} parent=11 // pred_check
        %p217 = pneg %p153
      $region14: #{_lambda_.49} parent=11 // pred_check_branch
        %219 = sbr.rel (%p217) target = $region16
      $region15: #{_lambda_.49} parent=11 // pred_region
        _
      $region16: #{_lambda_.49} parent=11 // pred_fallthru
        _
      // Predicated region
      $region17: #{_lambda_.49} parent=11 // pred_check
        %p220 = pneg %p174
      $region18: #{_lambda_.49} parent=11 // pred_check_branch
        %222 = sbr.rel (%p220) target = $region20
      $region19: #{_lambda_.49} parent=11 // pred_region
        _
      $region20: #{_lambda_.49} parent=11 // pred_fallthru
        _
    $region12: #{_lambda_.49} parent=5 // pred_fallthru
      _
    %p223 = scmp.lt.s32.totalorder %s12, 2
    // Predicated region
    $region21: #{_lambda_.49} parent=5 // pred_check
      %p224 = pneg %p223
    $region22: #{_lambda_.49} parent=5 // pred_check_branch
      %226 = sbr.rel (%p224) target = $region24
    $region23: #{_lambda_.49} parent=5 // pred_region
      // Predicated region
      $region25: #{_lambda_.49} parent=23 // pred_check
        %p227 = pneg %p46
      $region26: #{_lambda_.49} parent=23 // pred_check_branch
        %229 = sbr.rel (%p227) target = $region28
      $region27: #{_lambda_.49} parent=23 // pred_region
        %s230 = smul.u32 2, %s20
        %p231 = scmp.lt.s32.totalorder %s19, 1
        %s232 = scalar_select %p231, %s19, 1
        %p233 = scmp.lt.s32.totalorder %s230, 1
        %s234 = scalar_select %p233, %s230, 1
        %s235 = smul.addr %s232, 2
        %s236 = sadd.s32 %s234, %s235
        %s237 = smul.addr %s236, 8
        %s238 = scalar_lea.vmem %s0, %s237
        %s239 = smul.u32 2, %s20
      $region28: #{_lambda_.49} parent=23 // pred_fallthru
        _
      // Predicated region
      $region29: #{_lambda_.49} parent=23 // pred_check
        %p240 = pneg %p74
      $region30: #{_lambda_.49} parent=23 // pred_check_branch
        %242 = sbr.rel (%p240) target = $region32
      $region31: #{_lambda_.49} parent=23 // pred_region
        %s243 = smul.u32 2, %s20
        %p244 = scmp.lt.s32.totalorder %s19, 1
        %s245 = scalar_select %p244, %s19, 1
        %p246 = scmp.lt.s32.totalorder %s243, 1
        %s247 = scalar_select %p246, %s243, 1
        %s248 = smul.addr %s245, 2
        %s249 = sadd.s32 %s247, %s248
        %s250 = smul.addr %s249, 8
        %s251 = scalar_lea.vmem %s1, %s250
        %s252 = smul.u32 2, %s20
      $region32: #{_lambda_.49} parent=23 // pred_fallthru
        _
      // Predicated region
      $region33: #{_lambda_.49} parent=23 // pred_check
        %p253 = pneg %p100
      $region34: #{_lambda_.49} parent=23 // pred_check_branch
        %255 = sbr.rel (%p253) target = $region36
      $region35: #{_lambda_.49} parent=23 // pred_region
        %p256 = scmp.lt.s32.totalorder %s19, 1
        %s257 = scalar_select %p256, %s19, 1
        %s258 = scalar_lea.vmem %s2, %s257
      $region36: #{_lambda_.49} parent=23 // pred_fallthru
        _
      // Predicated region
      $region37: #{_lambda_.49} parent=23 // pred_check
        %p259 = pneg %p126
      $region38: #{_lambda_.49} parent=23 // pred_check_branch
        %261 = sbr.rel (%p259) target = $region40
      $region39: #{_lambda_.49} parent=23 // pred_region
        %p262 = scmp.lt.s32.totalorder %s19, 1
        %s263 = scalar_select %p262, %s19, 1
        %s264 = scalar_lea.vmem %s3, %s263
      $region40: #{_lambda_.49} parent=23 // pred_fallthru
        _
    $region24: #{_lambda_.49} parent=5 // pred_fallthru
      _
    %p265 = scmp.le.s32.totalorder 1, %s12
    %p266 = scmp.lt.s32.totalorder %s12, 3
    %p267 = pnand %p265, %p266
    %p268 = pneg %p267
    // Predicated region
    $region41: #{_lambda_.49} parent=5 // pred_check
      _
    $region42: #{_lambda_.49} parent=5 // pred_check_branch
      %270 = sbr.rel (%p267) target = $region44
    $region43: #{_lambda_.49} parent=5 // pred_region
      %s271 = ssub.s32 %s12, 1
      %s272 = smul.u32 2, %s22
      %p273 = scmp.lt.s32.totalorder %s21, 1
      %s274 = scalar_select %p273, %s21, 1
      %p275 = scmp.lt.s32.totalorder %s272, 1
      %s276 = scalar_select %p275, %s272, 1
      %s277 = smul.addr %s274, 2
      %s278 = sadd.s32 %s276, %s277
      %s279 = smul.addr %s278, 8
      %s280 = scalar_lea.vmem %s0, %s279
      %p281 = pneg %p52
      %p282 = pneg %p49
      %s283 = smul.u32 2, %s22
      %p284 = scmp.lt.s32.totalorder %s21, 1
      %s285 = scalar_select %p284, %s21, 1
      %p286 = scmp.lt.s32.totalorder %s283, 1
      %s287 = scalar_select %p286, %s283, 1
      %s288 = smul.addr %s285, 2
      %s289 = sadd.s32 %s287, %s288
      %s290 = smul.addr %s289, 8
      %s291 = scalar_lea.vmem %s1, %s290
      %p292 = pneg %p80
      %p293 = pneg %p77
      %p294 = scmp.lt.s32.totalorder %s21, 1
      %s295 = scalar_select %p294, %s21, 1
      %s296 = scalar_lea.vmem %s2, %s295
      %p297 = pneg %p106
      %p298 = pneg %p103
      %p299 = scmp.lt.s32.totalorder %s21, 1
      %s300 = scalar_select %p299, %s21, 1
      %s301 = scalar_lea.vmem %s3, %s300
      %p302 = pneg %p132
      %p303 = pneg %p129
      %p304 = pneg %p153
      %p305 = pneg %p150
      %p306 = pneg %p174
      %p307 = pneg %p171
      %p308 = pneg %p202
      %p309 = pneg %p199
      %s310 = smul.u32 2, %s22
      %p311 = scmp.lt.s32.totalorder %s21, 1
      %s312 = scalar_select %p311, %s21, 1
      %p313 = scmp.lt.s32.totalorder %s310, 1
      %s314 = scalar_select %p313, %s310, 1
      %s315 = smul.addr %s312, 2
      %s316 = sadd.s32 %s314, %s315
      %s317 = smul.addr %s316, 8
      %s318 = scalar_lea.vmem %s6, %s317
      %s319 = smul.u32 2, %s22
      %p320 = scmp.lt.s32.totalorder %s21, 1
      %s321 = scalar_select %p320, %s21, 1
      %p322 = scmp.lt.s32.totalorder %s319, 1
      %s323 = scalar_select %p322, %s319, 1
      %s324 = smul.addr %s321, 2
      %s325 = sadd.s32 %s323, %s324
      %s326 = smul.addr %s325, 8
      %s327 = scalar_lea.vmem %s0, %s326
      %s328 = smul.u32 2, %s22
      %s329 = smul.u32 2, %s22
      %p330 = scmp.lt.s32.totalorder %s21, 1
      %s331 = scalar_select %p330, %s21, 1
      %p332 = scmp.lt.s32.totalorder %s329, 1
      %s333 = scalar_select %p332, %s329, 1
      %s334 = smul.addr %s331, 2
      %s335 = sadd.s32 %s333, %s334
      %s336 = smul.addr %s335, 8
      %s337 = scalar_lea.vmem %s1, %s336
      %s338 = smul.u32 2, %s22
      %p339 = scmp.lt.s32.totalorder %s21, 1
      %s340 = scalar_select %p339, %s21, 1
      %s341 = scalar_lea.vmem %s2, %s340
      %p342 = scmp.lt.s32.totalorder %s21, 1
      %s343 = scalar_select %p342, %s21, 1
      %s344 = scalar_lea.vmem %s3, %s343
      %s345 = smul.u32 2, %s22
      %p346 = scmp.lt.s32.totalorder %s21, 1
      %s347 = scalar_select %p346, %s21, 1
      %p348 = scmp.lt.s32.totalorder %s345, 1
      %s349 = scalar_select %p348, %s345, 1
      %s350 = smul.addr %s347, 2
      %s351 = sadd.s32 %s349, %s350
      %s352 = smul.addr %s351, 8
      %s353 = scalar_lea.vmem %s6, %s352
      %s354 = smul.u32 2, %s22
      %v355 = vld [vmem:[%s327] sm:$0xff]
      %v356 = vld [vmem:[%s327 + $0x8] sm:$0xff]
      %v357 = vld [vmem:[%s341] sm:$0x1]
      %v358 = vld [vmem:[%s344] sm:$0x1]
      %v359 = vld [vmem:[%s4] sm:$0x1]
      %v360 = vld [vmem:[%s5] sm:$0x1]
      %v361 = vmul.f32 %v357, 0.0625
      %v362 = vmul.f32 %v358, 0.0625
      %v363 = vmul.f32 %v361, %v361
      %v364 = vsub.f32 %v362, %v363
      %v365 = vmax.f32 %v364, 0.0
      %v367 = vlaneseq
      %v368 = vshrl.u32 %v367, 7
      %v369 = vsub.s32 0, %v368
      %v370 = vrot.slane %v361, %v369
      %v372 = vsub.f32 %v355, %v370
      %v373 = vsub.f32 %v356, %v370
      %v374 = vadd.f32 %v365, 1e-05
      %v375 = vrsqrt.pop %v374
      %v377 = vlaneseq
      %v378 = vshrl.u32 %v377, 7
      %v379 = vsub.s32 0, %v378
      %v380 = vrot.slane %v375, %v379
      %v382 = vmul.f32 %v372, %v380
      %v383 = vmul.f32 %v373, %v380
      %v385 = vlaneseq
      %v386 = vshrl.u32 %v385, 7
      %v387 = vsub.s32 0, %v386
      %v388 = vrot.slane %v359, %v387
      %v390 = vmul.f32 %v382, %v388
      %v391 = vmul.f32 %v383, %v388
      %v393 = vlaneseq
      %v394 = vshrl.u32 %v393, 7
      %v395 = vsub.s32 0, %v394
      %v396 = vrot.slane %v360, %v395
      %v398 = vadd.f32 %v390, %v396
      %v399 = vadd.f32 %v391, %v396
      %v400 = vld [vmem:[%s337] sm:$0xff]
      %v401 = vld [vmem:[%s337 + $0x8] sm:$0xff]
      %v402 = vadd.f32 %v400, %v398
      %v403 = vadd.f32 %v401, %v399
      %404 = vst [vmem:[%s353] sm:$0xff] %v402
      %405 = vst [vmem:[%s353 + $0x8] sm:$0xff] %v403
      %s406 = smul.u32 2, %s22
      %p407 = scmp.lt.s32.totalorder %s21, 1
      %s408 = scalar_select %p407, %s21, 1
      %p409 = scmp.lt.s32.totalorder %s406, 1
      %s410 = scalar_select %p409, %s406, 1
      %s411 = smul.addr %s408, 2
      %s412 = sadd.s32 %s410, %s411
      %s413 = smul.addr %s412, 8
      %s414 = scalar_lea.vmem %s6, %s413
      // Predicated region
      $region45: #{_lambda_.49} parent=43 // pred_check
        %p415 = pneg %p199
      $region46: #{_lambda_.49} parent=43 // pred_check_branch
        %417 = sbr.rel (%p415) target = $region48
      $region47: #{_lambda_.49} parent=43 // pred_region
        %s418 = smul.u32 2, %s22
      $region48: #{_lambda_.49} parent=43 // pred_fallthru
        _
    $region44: #{_lambda_.49} parent=5 // pred_fallthru
      _
    %p419 = scmp.le.s32.totalorder 2, %s12
    // Predicated region
    $region49: #{_lambda_.49} parent=5 // pred_check
      %p420 = pneg %p419
    $region50: #{_lambda_.49} parent=5 // pred_check_branch
      %422 = sbr.rel (%p420) target = $region52
    $region51: #{_lambda_.49} parent=5 // pred_region
      %s423 = ssub.s32 %s12, 2
      // Predicated region
      $region53: #{_lambda_.49} parent=51 // pred_check
        %p424 = pneg %p205
      $region54: #{_lambda_.49} parent=51 // pred_check_branch
        %426 = sbr.rel (%p424) target = $region56
      $region55: #{_lambda_.49} parent=51 // pred_region
        %s427 = smul.u32 2, %s24
        %p428 = scmp.lt.s32.totalorder %s23, 1
        %s429 = scalar_select %p428, %s23, 1
        %p430 = scmp.lt.s32.totalorder %s427, 1
        %s431 = scalar_select %p430, %s427, 1
        %s432 = smul.addr %s429, 2
        %s433 = sadd.s32 %s431, %s432
        %s434 = smul.addr %s433, 8
        %s435 = scalar_lea.vmem %s6, %s434
      $region56: #{_lambda_.49} parent=51 // pred_fallthru
        _
    $region52: #{_lambda_.49} parent=5 // pred_fallthru
      _
  $region6: #{_lambda_.49} parent=0 // loop_footer
    %s16 = sadd.s32 1, %s12
  $region7: #{_lambda_.49} parent=0 // loop_footer_branch
    %11 = sbr.rel target = $region3
  $region8: #{_lambda_.49} parent=0 // loop_exit
    _

// kernel: _lambda_.44
$region0: #{_lambda_.44}
  #allocation0 [shape = 'u32[]', space=smem, size = 0x4, offset = 0x4, fixed_abs, tag = 'smem constant byte address 0x4 - core index']
  #allocation1 [shape = 'u32[144,128]{1,0:T(1,128)}', space=vmem, size = 0x12000, scoped, tag = 'internal scratch']
  #allocation2 [shape = 'f32[96,128]{1,0:T(8,128)}', space=vmem, size = 0xc000, scoped, tag = 'scratch operand']
  #allocation3 [shape = 's32[1]{0}', space=sflag, size = 0x4, scoped, tag = 'scratch operand']
  #allocation4 [shape = 's32[]', space=sflag, size = 0x4, offset = 0, fixed_abs, tag = 'sflag constant byte address 0x0 - dummy sync flag']
  %s0 = inlined_call_operand.vmem [shape: f32[96,128], index: 0, kind: input, shape index: {}]
  %s1 = inlined_call_operand.vmem [shape: bf16[9,128,128], index: 1, kind: input, shape index: {}]
  %s2 = inlined_call_operand.vmem [shape: f32[80,128], index: 2, kind: output, shape index: {}]
  %s3 = sld [smem:[#allocation0]]
  $region52: #{_lambda_.44} parent=0
    _
  %s5 = ssub.s32 1, %s3
  %s6 = scalar_select 0, %s5, %s3
  // Predicated region
  $region2: #{_lambda_.44} parent=0 // pred_check
    _
  $region3: #{_lambda_.44} parent=0 // pred_check_branch
    %8 = sbr.rel (0) target = $region5
  $region4: #{_lambda_.44} parent=0 // pred_region
    _
  $region5: #{_lambda_.44} parent=0 // pred_fallthru
    _
  %p10 = scmp.eq.s32.totalorder 0, 0
  // Predicated region
  $region6: #{_lambda_.44} parent=0 // pred_check
    %p11 = pneg %p10
  $region7: #{_lambda_.44} parent=0 // pred_check_branch
    %13 = sbr.rel (%p11) target = $region9
  $region8: #{_lambda_.44} parent=0 // pred_region
    %s14 = smul.u32 0, 80
    %s15 = scalar_lea.vmem %s0, %s14
    %p17 = scmp.lt.u32.totalorder 96, 8
    %p18 = pneg %p17
    // Predicated region
    $region10: #{_lambda_.44} parent=8 // pred_check
      _
    $region11: #{_lambda_.44} parent=8 // pred_check_branch
      %20 = sbr.rel (%p17) target = $region13
    $region12: #{_lambda_.44} parent=8 // pred_region
      %s35 = sand.u32 96, 7
      %p36 = scmp.eq.s32.totalorder %s35, 0
      // Predicated region
      $region25: #{_lambda_.44} parent=12 // pred_check
        %p37 = pneg %p36
      $region26: #{_lambda_.44} parent=12 // pred_check_branch
        %39 = sbr.rel (%p37) target = $region28
      $region27: #{_lambda_.44} parent=12 // pred_region
        loop: start=0, step=1, limit=1
        $region29: #{_lambda_.44} parent=27 // loop_pre_header
          _
        $region30: #{_lambda_.44} parent=27 // loop_header
          %s41 = sphi 0, %s45
          %p42 = scmp.ge.s32.totalorder %s41, 1
          %s46 = sphi %s15, %s15
          %s47 = sphi [#allocation2], [#allocation2]
        $region31: #{_lambda_.44} parent=27 // loop_header_branch
          %44 = sbr.rel (%p42) target = $region35
        $region32: #{_lambda_.44} parent=27 // loop_body
          %v48 = vld [vmem:[%s46] sm:$0xff]
          %49 = vst [vmem:[%s47] sm:$0xff] %v48
          %v50 = vld [vmem:[%s46 + $0x8] sm:$0xff]
          %51 = vst [vmem:[%s47 + $0x8] sm:$0xff] %v50
          %v52 = vld [vmem:[%s46 + $0x10] sm:$0xff]
          %53 = vst [vmem:[%s47 + $0x10] sm:$0xff] %v52
          %v54 = vld [vmem:[%s46 + $0x18] sm:$0xff]
          %55 = vst [vmem:[%s47 + $0x18] sm:$0xff] %v54
          %v56 = vld [vmem:[%s46 + $0x20] sm:$0xff]
          %57 = vst [vmem:[%s47 + $0x20] sm:$0xff] %v56
          %v58 = vld [vmem:[%s46 + $0x28] sm:$0xff]
          %59 = vst [vmem:[%s47 + $0x28] sm:$0xff] %v58
          %v60 = vld [vmem:[%s46 + $0x30] sm:$0xff]
          %61 = vst [vmem:[%s47 + $0x30] sm:$0xff] %v60
          %v62 = vld [vmem:[%s46 + $0x38] sm:$0xff]
          %63 = vst [vmem:[%s47 + $0x38] sm:$0xff] %v62
          %v64 = vld [vmem:[%s46 + $0x40] sm:$0xff]
          %65 = vst [vmem:[%s47 + $0x40] sm:$0xff] %v64
          %v66 = vld [vmem:[%s46 + $0x48] sm:$0xff]
          %67 = vst [vmem:[%s47 + $0x48] sm:$0xff] %v66
          %v68 = vld [vmem:[%s46 + $0x50] sm:$0xff]
          %69 = vst [vmem:[%s47 + $0x50] sm:$0xff] %v68
          %v70 = vld [vmem:[%s46 + $0x58] sm:$0xff]
          %71 = vst [vmem:[%s47 + $0x58] sm:$0xff] %v70
        $region33: #{_lambda_.44} parent=27 // loop_footer
          %s45 = sadd.s32 1, %s41
        $region34: #{_lambda_.44} parent=27 // loop_footer_branch
          %40 = sbr.rel target = $region30
        $region35: #{_lambda_.44} parent=27 // loop_exit
          _
      $region28: #{_lambda_.44} parent=12 // pred_fallthru
        _
      %p72 = pneg %p36
      // Predicated region
      $region36: #{_lambda_.44} parent=12 // pred_check
        _
      $region37: #{_lambda_.44} parent=12 // pred_check_branch
        %74 = sbr.rel (%p36) target = $region39
      $region38: #{_lambda_.44} parent=12 // pred_region
        %s75 = sand.u32 96, 7
      $region39: #{_lambda_.44} parent=12 // pred_fallthru
        _
    $region13: #{_lambda_.44} parent=8 // pred_fallthru
      _
    // Predicated region
    $region14: #{_lambda_.44} parent=8 // pred_check
      %p21 = pneg %p17
    $region15: #{_lambda_.44} parent=8 // pred_check_branch
      %23 = sbr.rel (%p21) target = $region17
    $region16: #{_lambda_.44} parent=8 // pred_region
      %s24 = sshllo.u32 0, 96
      loop: start=0, step=1, limit=1
      $region18: #{_lambda_.44} parent=16 // loop_pre_header
        _
      $region19: #{_lambda_.44} parent=16 // loop_header
        %s26 = sphi 0, %s30
        %p27 = scmp.ge.s32.totalorder %s26, 1
        %s31 = sphi %s15, %s15
        %s32 = sphi [#allocation2], [#allocation2]
      $region20: #{_lambda_.44} parent=16 // loop_header_branch
        %29 = sbr.rel (%p27) target = $region24
      $region21: #{_lambda_.44} parent=16 // loop_body
        %v33 = vld [vmem:[%s31] sm:%s24]
        %34 = vst [vmem:[%s32] sm:%s24] %v33
      $region22: #{_lambda_.44} parent=16 // loop_footer
        %s30 = sadd.s32 1, %s26
      $region23: #{_lambda_.44} parent=16 // loop_footer_branch
        %25 = sbr.rel target = $region19
      $region24: #{_lambda_.44} parent=16 // loop_exit
        _
    $region17: #{_lambda_.44} parent=8 // pred_fallthru
      _
    // Predicated region
    $region40: #{_lambda_.44} parent=8 // pred_check
      _
    $region41: #{_lambda_.44} parent=8 // pred_check_branch
      %78 = sbr.rel (0) target = $region43
    $region42: #{_lambda_.44} parent=8 // pred_region
      %79 = vsyncadd [#allocation3], 1536
    $region43: #{_lambda_.44} parent=8 // pred_fallthru
      _
    %s80 = smul.u32 96, 1
    %s81 = sshll.u32 %s80, 4
    %82 = dma.done [#allocation3], %s81
  $region9: #{_lambda_.44} parent=0 // pred_fallthru
    _
  %83 = vst [vmem:[%s2] sm:$0xff] 0.0
  %84 = vst [vmem:[%s2 + $0x8] sm:$0xff] 0.0
  %85 = vst [vmem:[%s2 + $0x10] sm:$0xff] 0.0
  %86 = vst [vmem:[%s2 + $0x18] sm:$0xff] 0.0
  %87 = vst [vmem:[%s2 + $0x20] sm:$0xff] 0.0
  %88 = vst [vmem:[%s2 + $0x28] sm:$0xff] 0.0
  %89 = vst [vmem:[%s2 + $0x30] sm:$0xff] 0.0
  %90 = vst [vmem:[%s2 + $0x38] sm:$0xff] 0.0
  %91 = vst [vmem:[%s2 + $0x40] sm:$0xff] 0.0
  %92 = vst [vmem:[%s2 + $0x48] sm:$0xff] 0.0
  %v93 = vld [vmem:[#allocation2] sm:$0xff]
  %v94 = vld [vmem:[#allocation2 + $0x8] sm:$0xff]
  %v95 = vld [vmem:[#allocation2 + $0x10] sm:$0xff]
  %v96 = vld [vmem:[#allocation2 + $0x18] sm:$0xff]
  %v97 = vld [vmem:[#allocation2 + $0x20] sm:$0xff]
  %v98 = vld [vmem:[#allocation2 + $0x28] sm:$0xff]
  %v99 = vld [vmem:[#allocation2 + $0x30] sm:$0xff]
  %v100 = vld [vmem:[#allocation2 + $0x38] sm:$0xff]
  %v101 = vld [vmem:[#allocation2 + $0x40] sm:$0xff]
  %v102 = vld [vmem:[#allocation2 + $0x48] sm:$0xff]
  %v103 = vpack.c.bf16 %v94, %v93
  %v104 = vpack.c.bf16 %v96, %v95
  %v105 = vpack.c.bf16 %v98, %v97
  %v106 = vpack.c.bf16 %v100, %v99
  %v107 = vpack.c.bf16 %v102, %v101
  %v108 = vld [vmem:[%s2] sm:$0xff]
  %v109 = vld [vmem:[%s2 + $0x8] sm:$0xff]
  %v110 = vld [vmem:[%s2 + $0x10] sm:$0xff]
  %v111 = vld [vmem:[%s2 + $0x18] sm:$0xff]
  %v112 = vld [vmem:[%s2 + $0x20] sm:$0xff]
  %v113 = vld [vmem:[%s2 + $0x28] sm:$0xff]
  %v114 = vld [vmem:[%s2 + $0x30] sm:$0xff]
  %v115 = vld [vmem:[%s2 + $0x38] sm:$0xff]
  %v116 = vld [vmem:[%s2 + $0x40] sm:$0xff]
  %v117 = vld [vmem:[%s2 + $0x48] sm:$0xff]
  %v118 = vld [vmem:[%s1] sm:$0xf]
  %v119 = vld [vmem:[%s1 + $0x4] sm:$0xf]
  %v120 = vld [vmem:[%s1 + $0x8] sm:$0xf]
  %v121 = vld [vmem:[%s1 + $0xc] sm:$0xf]
  %v122 = vld [vmem:[%s1 + $0x10] sm:$0xf]
  %v123 = vld [vmem:[%s1 + $0x14] sm:$0xf]
  %v124 = vld [vmem:[%s1 + $0x18] sm:$0xf]
  %v125 = vld [vmem:[%s1 + $0x1c] sm:$0xf]
  %v126 = vld [vmem:[%s1 + $0x20] sm:$0xf]
  %v127 = vld [vmem:[%s1 + $0x24] sm:$0xf]
  %v128 = vld [vmem:[%s1 + $0x28] sm:$0xf]
  %v129 = vld [vmem:[%s1 + $0x2c] sm:$0xf]
  %v130 = vld [vmem:[%s1 + $0x30] sm:$0xf]
  %v131 = vld [vmem:[%s1 + $0x34] sm:$0xf]
  %v132 = vld [vmem:[%s1 + $0x38] sm:$0xf]
  %v133 = vld [vmem:[%s1 + $0x3c] sm:$0xf]
  %v150 = vunpack.c.l.b16 %v118
  %v151 = vunpack.c.l.b16 %v119
  %v152 = vunpack.c.l.b16 %v120
  %v153 = vunpack.c.l.b16 %v121
  %v154 = vunpack.c.l.b16 %v122
  %v155 = vunpack.c.l.b16 %v123
  %v156 = vunpack.c.l.b16 %v124
  %v157 = vunpack.c.l.b16 %v125
  %v158 = vunpack.c.l.b16 %v126
  %v159 = vunpack.c.l.b16 %v127
  %v160 = vunpack.c.l.b16 %v128
  %v161 = vunpack.c.l.b16 %v129
  %v162 = vunpack.c.l.b16 %v130
  %v163 = vunpack.c.l.b16 %v131
  %v164 = vunpack.c.l.b16 %v132
  %v165 = vunpack.c.l.b16 %v133
  %v166 = vpack.c.b16 %v151, %v150
  %v167 = vpack.c.b16 %v153, %v152
  %v168 = vpack.c.b16 %v155, %v154
  %v169 = vpack.c.b16 %v157, %v156
  %v170 = vpack.c.b16 %v159, %v158
  %v171 = vpack.c.b16 %v161, %v160
  %v172 = vpack.c.b16 %v163, %v162
  %v173 = vpack.c.b16 %v165, %v164
  %182 = vmatprep.subr.bf16.mxu0 0
  %183 = vmatpush1.bf16.msra.mxu0 %v166
  %184 = vmatprep.subr.bf16.mxu0 0
  %185 = vmatpush1.bf16.msra.mxu0 %v167
  %186 = vmatprep.subr.bf16.mxu0 0
  %187 = vmatpush1.bf16.msra.mxu0 %v168
  %188 = vmatprep.subr.bf16.mxu0 0
  %189 = vmatpush1.bf16.msra.mxu0 %v169
  %190 = vmatprep.subr.bf16.mxu0 0
  %191 = vmatpush1.bf16.msra.mxu0 %v170
  %192 = vmatprep.subr.bf16.mxu0 0
  %193 = vmatpush1.bf16.msra.mxu0 %v171
  %194 = vmatprep.subr.bf16.mxu0 0
  %195 = vmatpush1.bf16.msra.mxu0 %v172
  %196 = vmatprep.subr.bf16.mxu0 0
  %197 = vmatpush1.bf16.msra.mxu0 %v173
  %198 = vmatprep.subr.bf16.mxu0 0
  %199 = vmatpush1.bf16.msra.mxu0 0
  %200 = vmatprep.subr.bf16.mxu0 0
  %201 = vmatpush1.bf16.msra.mxu0 0
  %202 = vmatprep.subr.bf16.mxu0 0
  %203 = vmatpush1.bf16.msra.mxu0 0
  %204 = vmatprep.subr.bf16.mxu0 0
  %205 = vmatpush1.bf16.msra.mxu0 0
  %206 = vmatprep.subr.bf16.mxu0 0
  %207 = vmatpush1.bf16.msra.mxu0 0
  %208 = vmatprep.subr.bf16.mxu0 0
  %209 = vmatpush1.bf16.msra.mxu0 0
  %210 = vmatprep.subr.bf16.mxu0 0
  %211 = vmatpush1.bf16.msra.mxu0 0
  %212 = vmatprep.subr.bf16.mxu0 0
  %213 = vmatpush1.bf16.msra.mxu0 0
  %214 = vmatprep.mubr.bf16.mxu0 0
  %215 = vmatmul.mubr.bf16.gmra.mrb[0].mxu0 %v103
  %v216 = vpop.f32.mrb[0].mxu0
  %v217 = vadd.f32 0.0, %v216
  %v218 = vpop.f32.mrb[0].mxu0
  %v219 = vpop.f32.mrb[0].mxu0
  %v220 = vadd.f32 0.0, %v219
  %v221 = vpop.f32.mrb[0].mxu0
  %222 = vmatprep.mubr.bf16.mxu0 0
  %223 = vmatmul.mubr.bf16.gmra.mrb[0].mxu0 %v104
  %v224 = vpop.f32.mrb[0].mxu0
  %v225 = vadd.f32 0.0, %v224
  %v226 = vpop.f32.mrb[0].mxu0
  %v227 = vpop.f32.mrb[0].mxu0
  %v228 = vadd.f32 0.0, %v227
  %v229 = vpop.f32.mrb[0].mxu0
  %230 = vmatprep.mubr.bf16.mxu0 0
  %231 = vmatmul.mubr.bf16.gmra.mrb[0].mxu0 %v105
  %v232 = vpop.f32.mrb[0].mxu0
  %v233 = vadd.f32 0.0, %v232
  %v234 = vpop.f32.mrb[0].mxu0
  %v235 = vpop.f32.mrb[0].mxu0
  %v236 = vadd.f32 0.0, %v235
  %v237 = vpop.f32.mrb[0].mxu0
  %238 = vmatprep.mubr.bf16.mxu0 0
  %239 = vmatmul.mubr.bf16.gmra.mrb[0].mxu0 %v106
  %v240 = vpop.f32.mrb[0].mxu0
  %v241 = vadd.f32 0.0, %v240
  %v242 = vpop.f32.mrb[0].mxu0
  %v243 = vpop.f32.mrb[0].mxu0
  %v244 = vadd.f32 0.0, %v243
  %v245 = vpop.f32.mrb[0].mxu0
  %246 = vmatprep.mubr.bf16.mxu0 0
  %247 = vmatmul.mubr.bf16.gmra.mrb[0].mxu0 %v107
  %v248 = vpop.f32.mrb[0].mxu0
  %v249 = vadd.f32 0.0, %v248
  %v250 = vpop.f32.mrb[0].mxu0
  %v251 = vpop.f32.mrb[0].mxu0
  %v252 = vadd.f32 0.0, %v251
  %v253 = vpop.f32.mrb[0].mxu0
  %254 = vdwg.mxu0
  %v255 = vadd.f32 %v108, %v217
  %v256 = vadd.f32 %v109, %v220
  %v257 = vadd.f32 %v110, %v225
  %v258 = vadd.f32 %v111, %v228
  %v259 = vadd.f32 %v112, %v233
  %v260 = vadd.f32 %v113, %v236
  %v261 = vadd.f32 %v114, %v241
  %v262 = vadd.f32 %v115, %v244
  %v263 = vadd.f32 %v116, %v249
  %v264 = vadd.f32 %v117, %v252
  %265 = vst [vmem:[%s2] sm:$0xff] %v255
  %266 = vst [vmem:[%s2 + $0x8] sm:$0xff] %v256
  %267 = vst [vmem:[%s2 + $0x10] sm:$0xff] %v257
  %268 = vst [vmem:[%s2 + $0x18] sm:$0xff] %v258
  %269 = vst [vmem:[%s2 + $0x20] sm:$0xff] %v259
  %270 = vst [vmem:[%s2 + $0x28] sm:$0xff] %v260
  %271 = vst [vmem:[%s2 + $0x30] sm:$0xff] %v261
  %272 = vst [vmem:[%s2 + $0x38] sm:$0xff] %v262
  %273 = vst [vmem:[%s2 + $0x40] sm:$0xff] %v263
  %274 = vst [vmem:[%s2 + $0x48] sm:$0xff] %v264
  %v275 = vld [vmem:[#allocation2 + $0x1] sm:$0xff]
  %v276 = vld [vmem:[#allocation2 + $0x9] sm:$0xff]
  %v277 = vld [vmem:[#allocation2 + $0x11] sm:$0xff]
  %v278 = vld [vmem:[#allocation2 + $0x19] sm:$0xff]
  %v279 = vld [vmem:[#allocation2 + $0x21] sm:$0xff]
  %v280 = vld [vmem:[#allocation2 + $0x29] sm:$0xff]
  %v281 = vld [vmem:[#allocation2 + $0x31] sm:$0xff]
  %v282 = vld [vmem:[#allocation2 + $0x39] sm:$0xff]
  %v283 = vld [vmem:[#allocation2 + $0x41] sm:$0xff]
  %v284 = vld [vmem:[#allocation2 + $0x49] sm:$0xff]
  %v285 = vpack.c.bf16 %v276, %v275
  %v286 = vpack.c.bf16 %v278, %v277
  %v287 = vpack.c.bf16 %v280, %v279
  %v288 = vpack.c.bf16 %v282, %v281
  %v289 = vpack.c.bf16 %v284, %v283
  %v290 = vld [vmem:[%s2] sm:$0xff]
  %v291 = vld [vmem:[%s2 + $0x8] sm:$0xff]
  %v292 = vld [vmem:[%s2 + $0x10] sm:$0xff]
  %v293 = vld [vmem:[%s2 + $0x18] sm:$0xff]
  %v294 = vld [vmem:[%s2 + $0x20] sm:$0xff]
  %v295 = vld [vmem:[%s2 + $0x28] sm:$0xff]
  %v296 = vld [vmem:[%s2 + $0x30] sm:$0xff]
  %v297 = vld [vmem:[%s2 + $0x38] sm:$0xff]
  %v298 = vld [vmem:[%s2 + $0x40] sm:$0xff]
  %v299 = vld [vmem:[%s2 + $0x48] sm:$0xff]
  %s300 = scalar_lea.vmem %s1, 64
  %v301 = vld [vmem:[%s300] sm:$0xf]
  %v302 = vld [vmem:[%s300 + $0x4] sm:$0xf]
  %v303 = vld [vmem:[%s300 + $0x8] sm:$0xf]
  %v304 = vld [vmem:[%s300 + $0xc] sm:$0xf]
  %v305 = vld [vmem:[%s300 + $0x10] sm:$0xf]
  %v306 = vld [vmem:[%s300 + $0x14] sm:$0xf]
  %v307 = vld [vmem:[%s300 + $0x18] sm:$0xf]
  %v308 = vld [vmem:[%s300 + $0x1c] sm:$0xf]
  %v309 = vld [vmem:[%s300 + $0x20] sm:$0xf]
  %v310 = vld [vmem:[%s300 + $0x24] sm:$0xf]
  %v311 = vld [vmem:[%s300 + $0x28] sm:$0xf]
  %v312 = vld [vmem:[%s300 + $0x2c] sm:$0xf]
  %v313 = vld [vmem:[%s300 + $0x30] sm:$0xf]
  %v314 = vld [vmem:[%s300 + $0x34] sm:$0xf]
  %v315 = vld [vmem:[%s300 + $0x38] sm:$0xf]
  %v316 = vld [vmem:[%s300 + $0x3c] sm:$0xf]
  %v333 = vunpack.c.l.b16 %v301
  %v334 = vunpack.c.l.b16 %v302
  %v335 = vunpack.c.l.b16 %v303
  %v336 = vunpack.c.l.b16 %v304
  %v337 = vunpack.c.l.b16 %v305
  %v338 = vunpack.c.l.b16 %v306
  %v339 = vunpack.c.l.b16 %v307
  %v340 = vunpack.c.l.b16 %v308
  %v341 = vunpack.c.l.b16 %v309
  %v342 = vunpack.c.l.b16 %v310
  %v343 = vunpack.c.l.b16 %v311
  %v344 = vunpack.c.l.b16 %v312
  %v345 = vunpack.c.l.b16 %v313
  %v346 = vunpack.c.l.b16 %v314
  %v347 = vunpack.c.l.b16 %v315
  %v348 = vunpack.c.l.b16 %v316
  %v349 = vpack.c.b16 %v334, %v333
  %v350 = vpack.c.b16 %v336, %v335
  %v351 = vpack.c.b16 %v338, %v337
  %v352 = vpack.c.b16 %v340, %v339
  %v353 = vpack.c.b16 %v342, %v341
  %v354 = vpack.c.b16 %v344, %v343
  %v355 = vpack.c.b16 %v346, %v345
  %v356 = vpack.c.b16 %v348, %v347
  %365 = vmatprep.subr.bf16.mxu0 0
  %366 = vmatpush1.bf16.msra.mxu0 %v349
  %367 = vmatprep.subr.bf16.mxu0 0
  %368 = vmatpush1.bf16.msra.mxu0 %v350
  %369 = vmatprep.subr.bf16.mxu0 0
  %370 = vmatpush1.bf16.msra.mxu0 %v351
  %371 = vmatprep.subr.bf16.mxu0 0
  %372 = vmatpush1.bf16.msra.mxu0 %v352
  %373 = vmatprep.subr.bf16.mxu0 0
  %374 = vmatpush1.bf16.msra.mxu0 %v353
  %375 = vmatprep.subr.bf16.mxu0 0
  %376 = vmatpush1.bf16.msra.mxu0 %v354
  %377 = vmatprep.subr.bf16.mxu0 0
  %378 = vmatpush1.bf16.msra.mxu0 %v355
  %379 = vmatprep.subr.bf16.mxu0 0
  %380 = vmatpush1.bf16.msra.mxu0 %v356
  %381 = vmatprep.subr.bf16.mxu0 0
  %382 = vmatpush1.bf16.msra.mxu0 0
  %383 = vmatprep.subr.bf16.mxu0 0
  %384 = vmatpush1.bf16.msra.mxu0 0
  %385 = vmatprep.subr.bf16.mxu0 0
  %386 = vmatpush1.bf16.msra.mxu0 0
  %387 = vmatprep.subr.bf16.mxu0 0
  %388 = vmatpush1.bf16.msra.mxu0 0
  %389 = vmatprep.subr.bf16.mxu0 0
  %390 = vmatpush1.bf16.msra.mxu0 0
  %391 = vmatprep.subr.bf16.mxu0 0
  %392 = vmatpush1.bf16.msra.mxu0 0
  %393 = vmatprep.subr.bf16.mxu0 0
  %394 = vmatpush1.bf16.msra.mxu0 0
  %395 = vmatprep.subr.bf16.mxu0 0
  %396 = vmatpush1.bf16.msra.mxu0 0
  %397 = vmatprep.mubr.bf16.mxu0 0
  %398 = vmatmul.mubr.bf16.gmra.mrb[0].mxu0 %v285
  %v399 = vpop.f32.mrb[0].mxu0
  %v400 = vadd.f32 0.0, %v399
  %v401 = vpop.f32.mrb[0].mxu0
  %v402 = vpop.f32.mrb[0].mxu0
  %v403 = vadd.f32 0.0, %v402
  %v404 = vpop.f32.mrb[0].mxu0
  %405 = vmatprep.mubr.bf16.mxu0 0
  %406 = vmatmul.mubr.bf16.gmra.mrb[0].mxu0 %v286
  %v407 = vpop.f32.mrb[0].mxu0
  %v408 = vadd.f32 0.0, %v407
  %v409 = vpop.f32.mrb[0].mxu0
  %v410 = vpop.f32.mrb[0].mxu0
  %v411 = vadd.f32 0.0, %v410
  %v412 = vpop.f32.mrb[0].mxu0
  %413 = vmatprep.mubr.bf16.mxu0 0
  %414 = vmatmul.mubr.bf16.gmra.mrb[0].mxu0 %v287
  %v415 = vpop.f32.mrb[0].mxu0
  %v416 = vadd.f32 0.0, %v415
  %v417 = vpop.f32.mrb[0].mxu0
  %v418 = vpop.f32.mrb[0].mxu0
  %v419 = vadd.f32 0.0, %v418
  %v420 = vpop.f32.mrb[0].mxu0
  %421 = vmatprep.mubr.bf16.mxu0 0
  %422 = vmatmul.mubr.bf16.gmra.mrb[0].mxu0 %v288
  %v423 = vpop.f32.mrb[0].mxu0
  %v424 = vadd.f32 0.0, %v423
  %v425 = vpop.f32.mrb[0].mxu0
  %v426 = vpop.f32.mrb[0].mxu0
  %v427 = vadd.f32 0.0, %v426
  %v428 = vpop.f32.mrb[0].mxu0
  %429 = vmatprep.mubr.bf16.mxu0 0
  %430 = vmatmul.mubr.bf16.gmra.mrb[0].mxu0 %v289
  %v431 = vpop.f32.mrb[0].mxu0
  %v432 = vadd.f32 0.0, %v431
  %v433 = vpop.f32.mrb[0].mxu0
  %v434 = vpop.f32.mrb[0].mxu0
  %v435 = vadd.f32 0.0, %v434
  %v436 = vpop.f32.mrb[0].mxu0
  %437 = vdwg.mxu0
  %v438 = vadd.f32 %v290, %v400
  %v439 = vadd.f32 %v291, %v403
  %v440 = vadd.f32 %v292, %v408
  %v441 = vadd.f32 %v293, %v411
  %v442 = vadd.f32 %v294, %v416
  %v443 = vadd.f32 %v295, %v419
  %v444 = vadd.f32 %v296, %v424
  %v445 = vadd.f32 %v297, %v427
  %v446 = vadd.f32 %v298, %v432
  %v447 = vadd.f32 %v299, %v435
  %448 = vst [vmem:[%s2] sm:$0xff] %v438
  %449 = vst [vmem:[%s2 + $0x8] sm:$0xff] %v439
  %450 = vst [vmem:[%s2 + $0x10] sm:$0xff] %v440
  %451 = vst [vmem:[%s2 + $0x18] sm:$0xff] %v441
  %452 = vst [vmem:[%s2 + $0x20] sm:$0xff] %v442
  %453 = vst [vmem:[%s2 + $0x28] sm:$0xff] %v443
  %454 = vst [vmem:[%s2 + $0x30] sm:$0xff] %v444
  %455 = vst [vmem:[%s2 + $0x38] sm:$0xff] %v445
  %456 = vst [vmem:[%s2 + $0x40] sm:$0xff] %v446
  %457 = vst [vmem:[%s2 + $0x48] sm:$0xff] %v447
  %v458 = vld [vmem:[#allocation2 + $0x2] sm:$0xff]
  %v459 = vld [vmem:[#allocation2 + $0xa] sm:$0xff]
  %v460 = vld [vmem:[#allocation2 + $0x12] sm:$0xff]
  %v461 = vld [vmem:[#allocation2 + $0x1a] sm:$0xff]
  %v462 = vld [vmem:[#allocation2 + $0x22] sm:$0xff]
  %v463 = vld [vmem:[#allocation2 + $0x2a] sm:$0xff]
  %v464 = vld [vmem:[#allocation2 + $0x32] sm:$0xff]
  %v465 = vld [vmem:[#allocation2 + $0x3a] sm:$0xff]
  %v466 = vld [vmem:[#allocation2 + $0x42] sm:$0xff]
  %v467 = vld [vmem:[#allocation2 + $0x4a] sm:$0xff]
  %v468 = vpack.c.bf16 %v459, %v458
  %v469 = vpack.c.bf16 %v461, %v460
  %v470 = vpack.c.bf16 %v463, %v462
  %v471 = vpack.c.bf16 %v465, %v464
  %v472 = vpack.c.bf16 %v467, %v466
  %v473 = vld [vmem:[%s2] sm:$0xff]
  %v474 = vld [vmem:[%s2 + $0x8] sm:$0xff]
  %v475 = vld [vmem:[%s2 + $0x10] sm:$0xff]
  %v476 = vld [vmem:[%s2 + $0x18] sm:$0xff]
  %v477 = vld [vmem:[%s2 + $0x20] sm:$0xff]
  %v478 = vld [vmem:[%s2 + $0x28] sm:$0xff]
  %v479 = vld [vmem:[%s2 + $0x30] sm:$0xff]
  %v480 = vld [vmem:[%s2 + $0x38] sm:$0xff]
  %v481 = vld [vmem:[%s2 + $0x40] sm:$0xff]
  %v482 = vld [vmem:[%s2 + $0x48] sm:$0xff]
  %s483 = scalar_lea.vmem %s1, 128
  %v484 = vld [vmem:[%s483] sm:$0xf]
  %v485 = vld [vmem:[%s483 + $0x4] sm:$0xf]
  %v486 = vld [vmem:[%s483 + $0x8] sm:$0xf]
  %v487 = vld [vmem:[%s483 + $0xc] sm:$0xf]
  %v488 = vld [vmem:[%s483 + $0x10] sm:$0xf]
  %v489 = vld [vmem:[%s483 + $0x14] sm:$0xf]
  %v490 = vld [vmem:[%s483 + $0x18] sm:$0xf]
  %v491 = vld [vmem:[%s483 + $0x1c] sm:$0xf]
  %v492 = vld [vmem:[%s483 + $0x20] sm:$0xf]
  %v493 = vld [vmem:[%s483 + $0x24] sm:$0xf]
  %v494 = vld [vmem:[%s483 + $0x28] sm:$0xf]
  %v495 = vld [vmem:[%s483 + $0x2c] sm:$0xf]
  %v496 = vld [vmem:[%s483 + $0x30] sm:$0xf]
  %v497 = vld [vmem:[%s483 + $0x34] sm:$0xf]
  %v498 = vld [vmem:[%s483 + $0x38] sm:$0xf]
  %v499 = vld [vmem:[%s483 + $0x3c] sm:$0xf]
  %v516 = vunpack.c.l.b16 %v484
  %v517 = vunpack.c.l.b16 %v485
  %v518 = vunpack.c.l.b16 %v486
  %v519 = vunpack.c.l.b16 %v487
  %v520 = vunpack.c.l.b16 %v488
  %v521 = vunpack.c.l.b16 %v489
  %v522 = vunpack.c.l.b16 %v490
  %v523 = vunpack.c.l.b16 %v491
  %v524 = vunpack.c.l.b16 %v492
  %v525 = vunpack.c.l.b16 %v493
  %v526 = vunpack.c.l.b16 %v494
  %v527 = vunpack.c.l.b16 %v495
  %v528 = vunpack.c.l.b16 %v496
  %v529 = vunpack.c.l.b16 %v497
  %v530 = vunpack.c.l.b16 %v498
  %v531 = vunpack.c.l.b16 %v499
  %v532 = vpack.c.b16 %v517, %v516
  %v533 = vpack.c.b16 %v519, %v518
  %v534 = vpack.c.b16 %v521, %v520
  %v535 = vpack.c.b16 %v523, %v522
  %v536 = vpack.c.b16 %v525, %v524
  %v537 = vpack.c.b16 %v527, %v526
  %v538 = vpack.c.b16 %v529, %v528
  %v539 = vpack.c.b16 %v531, %v530
  %548 = vmatprep.subr.bf16.mxu0 0
  %549 = vmatpush1.bf16.msra.mxu0 %v532
  %550 = vmatprep.subr.bf16.mxu0 0
  %551 = vmatpush1.bf16.msra.mxu0 %v533
  %552 = vmatprep.subr.bf16.mxu0 0
  %553 = vmatpush1.bf16.msra.mxu0 %v534
  %554 = vmatprep.subr.bf16.mxu0 0
  %555 = vmatpush1.bf16.msra.mxu0 %v535
  %556 = vmatprep.subr.bf16.mxu0 0
  %557 = vmatpush1.bf16.msra.mxu0 %v536
  %558 = vmatprep.subr.bf16.mxu0 0
  %559 = vmatpush1.bf16.msra.mxu0 %v537
  %560 = vmatprep.subr.bf16.mxu0 0
  %561 = vmatpush1.bf16.msra.mxu0 %v538
  %562 = vmatprep.subr.bf16.mxu0 0
  %563 = vmatpush1.bf16.msra.mxu0 %v539
  %564 = vmatprep.subr.bf16.mxu0 0
  %565 = vmatpush1.bf16.msra.mxu0 0
  %566 = vmatprep.subr.bf16.mxu0 0
  %567 = vmatpush1.bf16.msra.mxu0 0
  %568 = vmatprep.subr.bf16.mxu0 0
  %569 = vmatpush1.bf16.msra.mxu0 0
  %570 = vmatprep.subr.bf16.mxu0 0
  %571 = vmatpush1.bf16.msra.mxu0 0
  %572 = vmatprep.subr.bf16.mxu0 0
  %573 = vmatpush1.bf16.msra.mxu0 0
  %574 = vmatprep.subr.bf16.mxu0 0
  %575 = vmatpush1.bf16.msra.mxu0 0
  %576 = vmatprep.subr.bf16.mxu0 0
  %577 = vmatpush1.bf16.msra.mxu0 0
  %578 = vmatprep.subr.bf16.mxu0 0
  %579 = vmatpush1.bf16.msra.mxu0 0
  %580 = vmatprep.mubr.bf16.mxu0 0
  %581 = vmatmul.mubr.bf16.gmra.mrb[0].mxu0 %v468
  %v582 = vpop.f32.mrb[0].mxu0
  %v583 = vadd.f32 0.0, %v582
  %v584 = vpop.f32.mrb[0].mxu0
  %v585 = vpop.f32.mrb[0].mxu0
  %v586 = vadd.f32 0.0, %v585
  %v587 = vpop.f32.mrb[0].mxu0
  %588 = vmatprep.mubr.bf16.mxu0 0
  %589 = vmatmul.mubr.bf16.gmra.mrb[0].mxu0 %v469
  %v590 = vpop.f32.mrb[0].mxu0
  %v591 = vadd.f32 0.0, %v590
  %v592 = vpop.f32.mrb[0].mxu0
  %v593 = vpop.f32.mrb[0].mxu0
  %v594 = vadd.f32 0.0, %v593
  %v595 = vpop.f32.mrb[0].mxu0
  %596 = vmatprep.mubr.bf16.mxu0 0
  %597 = vmatmul.mubr.bf16.gmra.mrb[0].mxu0 %v470
  %v598 = vpop.f32.mrb[0].mxu0
  %v599 = vadd.f32 0.0, %v598
  %v600 = vpop.f32.mrb[0].mxu0
  %v601 = vpop.f32.mrb[0].mxu0
  %v602 = vadd.f32 0.0, %v601
  %v603 = vpop.f32.mrb[0].mxu0
  %604 = vmatprep.mubr.bf16.mxu0 0
  %605 = vmatmul.mubr.bf16.gmra.mrb[0].mxu0 %v471
  %v606 = vpop.f32.mrb[0].mxu0
  %v607 = vadd.f32 0.0, %v606
  %v608 = vpop.f32.mrb[0].mxu0
  %v609 = vpop.f32.mrb[0].mxu0
  %v610 = vadd.f32 0.0, %v609
  %v611 = vpop.f32.mrb[0].mxu0
  %612 = vmatprep.mubr.bf16.mxu0 0
  %613 = vmatmul.mubr.bf16.gmra.mrb[0].mxu0 %v472
  %v614 = vpop.f32.mrb[0].mxu0
  %v615 = vadd.f32 0.0, %v614
  %v616 = vpop.f32.mrb[0].mxu0
  %v617 = vpop.f32.mrb[0].mxu0
  %v618 = vadd.f32 0.0, %v617
  %v619 = vpop.f32.mrb[0].mxu0
  %620 = vdwg.mxu0
  %v621 = vadd.f32 %v473, %v583
  %v622 = vadd.f32 %v474, %v586
  %v623 = vadd.f32 %v475, %v591
  %v624 = vadd.f32 %v476, %v594
  %v625 = vadd.f32 %v477, %v599
  %v626 = vadd.f32 %v478, %v602
  %v627 = vadd.f32 %v479, %v607
  %v628 = vadd.f32 %v480, %v610
  %v629 = vadd.f32 %v481, %v615
  %v630 = vadd.f32 %v482, %v618
  %631 = vst [vmem:[%s2] sm:$0xff] %v621
  %632 = vst [vmem:[%s2 + $0x8] sm:$0xff] %v622
  %633 = vst [vmem:[%s2 + $0x10] sm:$0xff] %v623
  %634 = vst [vmem:[%s2 + $0x18] sm:$0xff] %v624
  %635 = vst [vmem:[%s2 + $0x20] sm:$0xff] %v625
  %636 = vst [vmem:[%s2 + $0x28] sm:$0xff] %v626
  %637 = vst [vmem:[%s2 + $0x30] sm:$0xff] %v627
  %638 = vst [vmem:[%s2 + $0x38] sm:$0xff] %v628
  %639 = vst [vmem:[%s2 + $0x40] sm:$0xff] %v629
  %640 = vst [vmem:[%s2 + $0x48] sm:$0xff] %v630
  %v641 = vld [vmem:[#allocation2 + $0x6] sm:$0xff]
  %v642 = vld [vmem:[#allocation2 + $0xe] sm:$0xff]
  %v643 = vld [vmem:[#allocation2 + $0x16] sm:$0xff]
  %v644 = vld [vmem:[#allocation2 + $0x1e] sm:$0xff]
  %v645 = vld [vmem:[#allocation2 + $0x26] sm:$0xff]
  %v646 = vld [vmem:[#allocation2 + $0x2e] sm:$0xff]
  %v647 = vld [vmem:[#allocation2 + $0x36] sm:$0xff]
  %v648 = vld [vmem:[#allocation2 + $0x3e] sm:$0xff]
  %v649 = vld [vmem:[#allocation2 + $0x46] sm:$0xff]
  %v650 = vld [vmem:[#allocation2 + $0x4e] sm:$0xff]
  %v651 = vpack.c.bf16 %v642, %v641
  %v652 = vpack.c.bf16 %v644, %v643
  %v653 = vpack.c.bf16 %v646, %v645
  %v654 = vpack.c.bf16 %v648, %v647
  %v655 = vpack.c.bf16 %v650, %v649
  %v656 = vld [vmem:[%s2] sm:$0xff]
  %v657 = vld [vmem:[%s2 + $0x8] sm:$0xff]
  %v658 = vld [vmem:[%s2 + $0x10] sm:$0xff]
  %v659 = vld [vmem:[%s2 + $0x18] sm:$0xff]
  %v660 = vld [vmem:[%s2 + $0x20] sm:$0xff]
  %v661 = vld [vmem:[%s2 + $0x28] sm:$0xff]
  %v662 = vld [vmem:[%s2 + $0x30] sm:$0xff]
  %v663 = vld [vmem:[%s2 + $0x38] sm:$0xff]
  %v664 = vld [vmem:[%s2 + $0x40] sm:$0xff]
  %v665 = vld [vmem:[%s2 + $0x48] sm:$0xff]
  %s666 = scalar_lea.vmem %s1, 192
  %v667 = vld [vmem:[%s666] sm:$0xf]
  %v668 = vld [vmem:[%s666 + $0x4] sm:$0xf]
  %v669 = vld [vmem:[%s666 + $0x8] sm:$0xf]
  %v670 = vld [vmem:[%s666 + $0xc] sm:$0xf]
  %v671 = vld [vmem:[%s666 + $0x10] sm:$0xf]
  %v672 = vld [vmem:[%s666 + $0x14] sm:$0xf]
  %v673 = vld [vmem:[%s666 + $0x18] sm:$0xf]
  %v674 = vld [vmem:[%s666 + $0x1c] sm:$0xf]
  %v675 = vld [vmem:[%s666 + $0x20] sm:$0xf]
  %v676 = vld [vmem:[%s666 + $0x24] sm:$0xf]
  %v677 = vld [vmem:[%s666 + $0x28] sm:$0xf]
  %v678 = vld [vmem:[%s666 + $0x2c] sm:$0xf]
  %v679 = vld [vmem:[%s666 + $0x30] sm:$0xf]
  %v680 = vld [vmem:[%s666 + $0x34] sm:$0xf]
  %v681 = vld [vmem:[%s666 + $0x38] sm:$0xf]
  %v682 = vld [vmem:[%s666 + $0x3c] sm:$0xf]
  %v699 = vunpack.c.l.b16 %v667
  %v700 = vunpack.c.l.b16 %v668
  %v701 = vunpack.c.l.b16 %v669
  %v702 = vunpack.c.l.b16 %v670
  %v703 = vunpack.c.l.b16 %v671
  %v704 = vunpack.c.l.b16 %v672
  %v705 = vunpack.c.l.b16 %v673
  %v706 = vunpack.c.l.b16 %v674
  %v707 = vunpack.c.l.b16 %v675
  %v708 = vunpack.c.l.b16 %v676
  %v709 = vunpack.c.l.b16 %v677
  %v710 = vunpack.c.l.b16 %v678
  %v711 = vunpack.c.l.b16 %v679
  %v712 = vunpack.c.l.b16 %v680
  %v713 = vunpack.c.l.b16 %v681
  %v714 = vunpack.c.l.b16 %v682
  %v715 = vpack.c.b16 %v700, %v699
  %v716 = vpack.c.b16 %v702, %v701
  %v717 = vpack.c.b16 %v704, %v703
  %v718 = vpack.c.b16 %v706, %v705
  %v719 = vpack.c.b16 %v708, %v707
  %v720 = vpack.c.b16 %v710, %v709
  %v721 = vpack.c.b16 %v712, %v711
  %v722 = vpack.c.b16 %v714, %v713
  %731 = vmatprep.subr.bf16.mxu0 0
  %732 = vmatpush1.bf16.msra.mxu0 %v715
  %733 = vmatprep.subr.bf16.mxu0 0
  %734 = vmatpush1.bf16.msra.mxu0 %v716
  %735 = vmatprep.subr.bf16.mxu0 0
  %736 = vmatpush1.bf16.msra.mxu0 %v717
  %737 = vmatprep.subr.bf16.mxu0 0
  %738 = vmatpush1.bf16.msra.mxu0 %v718
  %739 = vmatprep.subr.bf16.mxu0 0
  %740 = vmatpush1.bf16.msra.mxu0 %v719
  %741 = vmatprep.subr.bf16.mxu0 0
  %742 = vmatpush1.bf16.msra.mxu0 %v720
  %743 = vmatprep.subr.bf16.mxu0 0
  %744 = vmatpush1.bf16.msra.mxu0 %v721
  %745 = vmatprep.subr.bf16.mxu0 0
  %746 = vmatpush1.bf16.msra.mxu0 %v722
  %747 = vmatprep.subr.bf16.mxu0 0
  %748 = vmatpush1.bf16.msra.mxu0 0
  %749 = vmatprep.subr.bf16.mxu0 0
  %750 = vmatpush1.bf16.msra.mxu0 0
  %751 = vmatprep.subr.bf16.mxu0 0
  %752 = vmatpush1.bf16.msra.mxu0 0
  %753 = vmatprep.subr.bf16.mxu0 0
  %754 = vmatpush1.bf16.msra.mxu0 0
  %755 = vmatprep.subr.bf16.mxu0 0
  %756 = vmatpush1.bf16.msra.mxu0 0
  %757 = vmatprep.subr.bf16.mxu0 0
  %758 = vmatpush1.bf16.msra.mxu0 0
  %759 = vmatprep.subr.bf16.mxu0 0
  %760 = vmatpush1.bf16.msra.mxu0 0
  %761 = vmatprep.subr.bf16.mxu0 0
  %762 = vmatpush1.bf16.msra.mxu0 0
  %763 = vmatprep.mubr.bf16.mxu0 0
  %764 = vmatmul.mubr.bf16.gmra.mrb[0].mxu0 %v651
  %v765 = vpop.f32.mrb[0].mxu0
  %v766 = vadd.f32 0.0, %v765
  %v767 = vpop.f32.mrb[0].mxu0
  %v768 = vpop.f32.mrb[0].mxu0
  %v769 = vadd.f32 0.0, %v768
  %v770 = vpop.f32.mrb[0].mxu0
  %771 = vmatprep.mubr.bf16.mxu0 0
  %772 = vmatmul.mubr.bf16.gmra.mrb[0].mxu0 %v652
  %v773 = vpop.f32.mrb[0].mxu0
  %v774 = vadd.f32 0.0, %v773
  %v775 = vpop.f32.mrb[0].mxu0
  %v776 = vpop.f32.mrb[0].mxu0
  %v777 = vadd.f32 0.0, %v776
  %v778 = vpop.f32.mrb[0].mxu0
  %779 = vmatprep.mubr.bf16.mxu0 0
  %780 = vmatmul.mubr.bf16.gmra.mrb[0].mxu0 %v653
  %v781 = vpop.f32.mrb[0].mxu0
  %v782 = vadd.f32 0.0, %v781
  %v783 = vpop.f32.mrb[0].mxu0
  %v784 = vpop.f32.mrb[0].mxu0
  %v785 = vadd.f32 0.0, %v784
  %v786 = vpop.f32.mrb[0].mxu0
  %787 = vmatprep.mubr.bf16.mxu0 0
  %788 = vmatmul.mubr.bf16.gmra.mrb[0].mxu0 %v654
  %v789 = vpop.f32.mrb[0].mxu0
  %v790 = vadd.f32 0.0, %v789
  %v791 = vpop.f32.mrb[0].mxu0
  %v792 = vpop.f32.mrb[0].mxu0
  %v793 = vadd.f32 0.0, %v792
  %v794 = vpop.f32.mrb[0].mxu0
  %795 = vmatprep.mubr.bf16.mxu0 0
  %796 = vmatmul.mubr.bf16.gmra.mrb[0].mxu0 %v655
  %v797 = vpop.f32.mrb[0].mxu0
  %v798 = vadd.f32 0.0, %v797
  %v799 = vpop.f32.mrb[0].mxu0
  %v800 = vpop.f32.mrb[0].mxu0
  %v801 = vadd.f32 0.0, %v800
  %v802 = vpop.f32.mrb[0].mxu0
  %803 = vdwg.mxu0
  %v804 = vadd.f32 %v656, %v766
  %v805 = vadd.f32 %v657, %v769
  %v806 = vadd.f32 %v658, %v774
  %v807 = vadd.f32 %v659, %v777
  %v808 = vadd.f32 %v660, %v782
  %v809 = vadd.f32 %v661, %v785
  %v810 = vadd.f32 %v662, %v790
  %v811 = vadd.f32 %v663, %v793
  %v812 = vadd.f32 %v664, %v798
  %v813 = vadd.f32 %v665, %v801
  %814 = vst [vmem:[%s2] sm:$0xff] %v804
  %815 = vst [vmem:[%s2 + $0x8] sm:$0xff] %v805
  %816 = vst [vmem:[%s2 + $0x10] sm:$0xff] %v806
  %817 = vst [vmem:[%s2 + $0x18] sm:$0xff] %v807
  %818 = vst [vmem:[%s2 + $0x20] sm:$0xff] %v808
  %819 = vst [vmem:[%s2 + $0x28] sm:$0xff] %v809
  %820 = vst [vmem:[%s2 + $0x30] sm:$0xff] %v810
  %821 = vst [vmem:[%s2 + $0x38] sm:$0xff] %v811
  %822 = vst [vmem:[%s2 + $0x40] sm:$0xff] %v812
  %823 = vst [vmem:[%s2 + $0x48] sm:$0xff] %v813
  %v824 = vld [vmem:[#allocation2 + $0x7] sm:$0xff]
  %v825 = vld [vmem:[#allocation2 + $0xf] sm:$0xff]
  %v826 = vld [vmem:[#allocation2 + $0x17] sm:$0xff]
  %v827 = vld [vmem:[#allocation2 + $0x1f] sm:$0xff]
  %v828 = vld [vmem:[#allocation2 + $0x27] sm:$0xff]
  %v829 = vld [vmem:[#allocation2 + $0x2f] sm:$0xff]
  %v830 = vld [vmem:[#allocation2 + $0x37] sm:$0xff]
  %v831 = vld [vmem:[#allocation2 + $0x3f] sm:$0xff]
  %v832 = vld [vmem:[#allocation2 + $0x47] sm:$0xff]
  %v833 = vld [vmem:[#allocation2 + $0x4f] sm:$0xff]
  %v834 = vpack.c.bf16 %v825, %v824
  %v835 = vpack.c.bf16 %v827, %v826
  %v836 = vpack.c.bf16 %v829, %v828
  %v837 = vpack.c.bf16 %v831, %v830
  %v838 = vpack.c.bf16 %v833, %v832
  %v839 = vld [vmem:[%s2] sm:$0xff]
  %v840 = vld [vmem:[%s2 + $0x8] sm:$0xff]
  %v841 = vld [vmem:[%s2 + $0x10] sm:$0xff]
  %v842 = vld [vmem:[%s2 + $0x18] sm:$0xff]
  %v843 = vld [vmem:[%s2 + $0x20] sm:$0xff]
  %v844 = vld [vmem:[%s2 + $0x28] sm:$0xff]
  %v845 = vld [vmem:[%s2 + $0x30] sm:$0xff]
  %v846 = vld [vmem:[%s2 + $0x38] sm:$0xff]
  %v847 = vld [vmem:[%s2 + $0x40] sm:$0xff]
  %v848 = vld [vmem:[%s2 + $0x48] sm:$0xff]
  %s849 = scalar_lea.vmem %s1, 256
  %v850 = vld [vmem:[%s849] sm:$0xf]
  %v851 = vld [vmem:[%s849 + $0x4] sm:$0xf]
  %v852 = vld [vmem:[%s849 + $0x8] sm:$0xf]
  %v853 = vld [vmem:[%s849 + $0xc] sm:$0xf]
  %v854 = vld [vmem:[%s849 + $0x10] sm:$0xf]
  %v855 = vld [vmem:[%s849 + $0x14] sm:$0xf]
  %v856 = vld [vmem:[%s849 + $0x18] sm:$0xf]
  %v857 = vld [vmem:[%s849 + $0x1c] sm:$0xf]
  %v858 = vld [vmem:[%s849 + $0x20] sm:$0xf]
  %v859 = vld [vmem:[%s849 + $0x24] sm:$0xf]
  %v860 = vld [vmem:[%s849 + $0x28] sm:$0xf]
  %v861 = vld [vmem:[%s849 + $0x2c] sm:$0xf]
  %v862 = vld [vmem:[%s849 + $0x30] sm:$0xf]
  %v863 = vld [vmem:[%s849 + $0x34] sm:$0xf]
  %v864 = vld [vmem:[%s849 + $0x38] sm:$0xf]
  %v865 = vld [vmem:[%s849 + $0x3c] sm:$0xf]
  %v882 = vunpack.c.l.b16 %v850
  %v883 = vunpack.c.l.b16 %v851
  %v884 = vunpack.c.l.b16 %v852
  %v885 = vunpack.c.l.b16 %v853
  %v886 = vunpack.c.l.b16 %v854
  %v887 = vunpack.c.l.b16 %v855
  %v888 = vunpack.c.l.b16 %v856
  %v889 = vunpack.c.l.b16 %v857
  %v890 = vunpack.c.l.b16 %v858
  %v891 = vunpack.c.l.b16 %v859
  %v892 = vunpack.c.l.b16 %v860
  %v893 = vunpack.c.l.b16 %v861
  %v894 = vunpack.c.l.b16 %v862
  %v895 = vunpack.c.l.b16 %v863
  %v896 = vunpack.c.l.b16 %v864
  %v897 = vunpack.c.l.b16 %v865
  %v898 = vpack.c.b16 %v883, %v882
  %v899 = vpack.c.b16 %v885, %v884
  %v900 = vpack.c.b16 %v887, %v886
  %v901 = vpack.c.b16 %v889, %v888
  %v902 = vpack.c.b16 %v891, %v890
  %v903 = vpack.c.b16 %v893, %v892
  %v904 = vpack.c.b16 %v895, %v894
  %v905 = vpack.c.b16 %v897, %v896
  %914 = vmatprep.subr.bf16.mxu0 0
  %915 = vmatpush1.bf16.msra.mxu0 %v898
  %916 = vmatprep.subr.bf16.mxu0 0
  %917 = vmatpush1.bf16.msra.mxu0 %v899
  %918 = vmatprep.subr.bf16.mxu0 0
  %919 = vmatpush1.bf16.msra.mxu0 %v900
  %920 = vmatprep.subr.bf16.mxu0 0
  %921 = vmatpush1.bf16.msra.mxu0 %v901
  %922 = vmatprep.subr.bf16.mxu0 0
  %923 = vmatpush1.bf16.msra.mxu0 %v902
  %924 = vmatprep.subr.bf16.mxu0 0
  %925 = vmatpush1.bf16.msra.mxu0 %v903
  %926 = vmatprep.subr.bf16.mxu0 0
  %927 = vmatpush1.bf16.msra.mxu0 %v904
  %928 = vmatprep.subr.bf16.mxu0 0
  %929 = vmatpush1.bf16.msra.mxu0 %v905
  %930 = vmatprep.subr.bf16.mxu0 0
  %931 = vmatpush1.bf16.msra.mxu0 0
  %932 = vmatprep.subr.bf16.mxu0 0
  %933 = vmatpush1.bf16.msra.mxu0 0
  %934 = vmatprep.subr.bf16.mxu0 0
  %935 = vmatpush1.bf16.msra.mxu0 0
  %936 = vmatprep.subr.bf16.mxu0 0
  %937 = vmatpush1.bf16.msra.mxu0 0
  %938 = vmatprep.subr.bf16.mxu0 0
  %939 = vmatpush1.bf16.msra.mxu0 0
  %940 = vmatprep.subr.bf16.mxu0 0
  %941 = vmatpush1.bf16.msra.mxu0 0
  %942 = vmatprep.subr.bf16.mxu0 0
  %943 = vmatpush1.bf16.msra.mxu0 0
  %944 = vmatprep.subr.bf16.mxu0 0
  %945 = vmatpush1.bf16.msra.mxu0 0
  %946 = vmatprep.mubr.bf16.mxu0 0
  %947 = vmatmul.mubr.bf16.gmra.mrb[0].mxu0 %v834
  %v948 = vpop.f32.mrb[0].mxu0
  %v949 = vadd.f32 0.0, %v948
  %v950 = vpop.f32.mrb[0].mxu0
  %v951 = vpop.f32.mrb[0].mxu0
  %v952 = vadd.f32 0.0, %v951
  %v953 = vpop.f32.mrb[0].mxu0
  %954 = vmatprep.mubr.bf16.mxu0 0
  %955 = vmatmul.mubr.bf16.gmra.mrb[0].mxu0 %v835
  %v956 = vpop.f32.mrb[0].mxu0
  %v957 = vadd.f32 0.0, %v956
  %v958 = vpop.f32.mrb[0].mxu0
  %v959 = vpop.f32.mrb[0].mxu0
  %v960 = vadd.f32 0.0, %v959
  %v961 = vpop.f32.mrb[0].mxu0
  %962 = vmatprep.mubr.bf16.mxu0 0
  %963 = vmatmul.mubr.bf16.gmra.mrb[0].mxu0 %v836
  %v964 = vpop.f32.mrb[0].mxu0
  %v965 = vadd.f32 0.0, %v964
  %v966 = vpop.f32.mrb[0].mxu0
  %v967 = vpop.f32.mrb[0].mxu0
  %v968 = vadd.f32 0.0, %v967
  %v969 = vpop.f32.mrb[0].mxu0
  %970 = vmatprep.mubr.bf16.mxu0 0
  %971 = vmatmul.mubr.bf16.gmra.mrb[0].mxu0 %v837
  %v972 = vpop.f32.mrb[0].mxu0
  %v973 = vadd.f32 0.0, %v972
  %v974 = vpop.f32.mrb[0].mxu0
  %v975 = vpop.f32.mrb[0].mxu0
  %v976 = vadd.f32 0.0, %v975
  %v977 = vpop.f32.mrb[0].mxu0
  %978 = vmatprep.mubr.bf16.mxu0 0
  %979 = vmatmul.mubr.bf16.gmra.mrb[0].mxu0 %v838
  %v980 = vpop.f32.mrb[0].mxu0
  %v981 = vadd.f32 0.0, %v980
  %v982 = vpop.f32.mrb[0].mxu0
  %v983 = vpop.f32.mrb[0].mxu0
  %v984 = vadd.f32 0.0, %v983
  %v985 = vpop.f32.mrb[0].mxu0
  %986 = vdwg.mxu0
  %v987 = vadd.f32 %v839, %v949
  %v988 = vadd.f32 %v840, %v952
  %v989 = vadd.f32 %v841, %v957
  %v990 = vadd.f32 %v842, %v960
  %v991 = vadd.f32 %v843, %v965
  %v992 = vadd.f32 %v844, %v968
  %v993 = vadd.f32 %v845, %v973
  %v994 = vadd.f32 %v846, %v976
  %v995 = vadd.f32 %v847, %v981
  %v996 = vadd.f32 %v848, %v984
  %997 = vst [vmem:[%s2] sm:$0xff] %v987
  %998 = vst [vmem:[%s2 + $0x8] sm:$0xff] %v988
  %999 = vst [vmem:[%s2 + $0x10] sm:$0xff] %v989
  %1000 = vst [vmem:[%s2 + $0x18] sm:$0xff] %v990
  %1001 = vst [vmem:[%s2 + $0x20] sm:$0xff] %v991
  %1002 = vst [vmem:[%s2 + $0x28] sm:$0xff] %v992
  %1003 = vst [vmem:[%s2 + $0x30] sm:$0xff] %v993
  %1004 = vst [vmem:[%s2 + $0x38] sm:$0xff] %v994
  %1005 = vst [vmem:[%s2 + $0x40] sm:$0xff] %v995
  %1006 = vst [vmem:[%s2 + $0x48] sm:$0xff] %v996
  %v1007 = vld [vmem:[#allocation2 + $0x8] sm:$0xff]
  %v1008 = vld [vmem:[#allocation2 + $0x10] sm:$0xff]
  %v1009 = vld [vmem:[#allocation2 + $0x18] sm:$0xff]
  %v1010 = vld [vmem:[#allocation2 + $0x20] sm:$0xff]
  %v1011 = vld [vmem:[#allocation2 + $0x28] sm:$0xff]
  %v1012 = vld [vmem:[#allocation2 + $0x30] sm:$0xff]
  %v1013 = vld [vmem:[#allocation2 + $0x38] sm:$0xff]
  %v1014 = vld [vmem:[#allocation2 + $0x40] sm:$0xff]
  %v1015 = vld [vmem:[#allocation2 + $0x48] sm:$0xff]
  %v1016 = vld [vmem:[#allocation2 + $0x50] sm:$0xff]
  %v1017 = vpack.c.bf16 %v1008, %v1007
  %v1018 = vpack.c.bf16 %v1010, %v1009
  %v1019 = vpack.c.bf16 %v1012, %v1011
  %v1020 = vpack.c.bf16 %v1014, %v1013
  %v1021 = vpack.c.bf16 %v1016, %v1015
  %v1022 = vld [vmem:[%s2] sm:$0xff]
  %v1023 = vld [vmem:[%s2 + $0x8] sm:$0xff]
  %v1024 = vld [vmem:[%s2 + $0x10] sm:$0xff]
  %v1025 = vld [vmem:[%s2 + $0x18] sm:$0xff]
  %v1026 = vld [vmem:[%s2 + $0x20] sm:$0xff]
  %v1027 = vld [vmem:[%s2 + $0x28] sm:$0xff]
  %v1028 = vld [vmem:[%s2 + $0x30] sm:$0xff]
  %v1029 = vld [vmem:[%s2 + $0x38] sm:$0xff]
  %v1030 = vld [vmem:[%s2 + $0x40] sm:$0xff]
  %v1031 = vld [vmem:[%s2 + $0x48] sm:$0xff]
  %s1032 = scalar_lea.vmem %s1, 320
  %v1033 = vld [vmem:[%s1032] sm:$0xf]
  %v1034 = vld [vmem:[%s1032 + $0x4] sm:$0xf]
  %v1035 = vld [vmem:[%s1032 + $0x8] sm:$0xf]
  %v1036 = vld [vmem:[%s1032 + $0xc] sm:$0xf]
  %v1037 = vld [vmem:[%s1032 + $0x10] sm:$0xf]
  %v1038 = vld [vmem:[%s1032 + $0x14] sm:$0xf]
  %v1039 = vld [vmem:[%s1032 + $0x18] sm:$0xf]
  %v1040 = vld [vmem:[%s1032 + $0x1c] sm:$0xf]
  %v1041 = vld [vmem:[%s1032 + $0x20] sm:$0xf]
  %v1042 = vld [vmem:[%s1032 + $0x24] sm:$0xf]
  %v1043 = vld [vmem:[%s1032 + $0x28] sm:$0xf]
  %v1044 = vld [vmem:[%s1032 + $0x2c] sm:$0xf]
  %v1045 = vld [vmem:[%s1032 + $0x30] sm:$0xf]
  %v1046 = vld [vmem:[%s1032 + $0x34] sm:$0xf]
  %v1047 = vld [vmem:[%s1032 + $0x38] sm:$0xf]
  %v1048 = vld [vmem:[%s1032 + $0x3c] sm:$0xf]
  %v1065 = vunpack.c.l.b16 %v1033
  %v1066 = vunpack.c.l.b16 %v1034
  %v1067 = vunpack.c.l.b16 %v1035
  %v1068 = vunpack.c.l.b16 %v1036
  %v1069 = vunpack.c.l.b16 %v1037
  %v1070 = vunpack.c.l.b16 %v1038
  %v1071 = vunpack.c.l.b16 %v1039
  %v1072 = vunpack.c.l.b16 %v1040
  %v1073 = vunpack.c.l.b16 %v1041
  %v1074 = vunpack.c.l.b16 %v1042
  %v1075 = vunpack.c.l.b16 %v1043
  %v1076 = vunpack.c.l.b16 %v1044
  %v1077 = vunpack.c.l.b16 %v1045
  %v1078 = vunpack.c.l.b16 %v1046
  %v1079 = vunpack.c.l.b16 %v1047
  %v1080 = vunpack.c.l.b16 %v1048
  %v1081 = vpack.c.b16 %v1066, %v1065
  %v1082 = vpack.c.b16 %v1068, %v1067
  %v1083 = vpack.c.b16 %v1070, %v1069
  %v1084 = vpack.c.b16 %v1072, %v1071
  %v1085 = vpack.c.b16 %v1074, %v1073
  %v1086 = vpack.c.b16 %v1076, %v1075
  %v1087 = vpack.c.b16 %v1078, %v1077
  %v1088 = vpack.c.b16 %v1080, %v1079
  %1097 = vmatprep.subr.bf16.mxu0 0
  %1098 = vmatpush1.bf16.msra.mxu0 %v1081
  %1099 = vmatprep.subr.bf16.mxu0 0
  %1100 = vmatpush1.bf16.msra.mxu0 %v1082
  %1101 = vmatprep.subr.bf16.mxu0 0
  %1102 = vmatpush1.bf16.msra.mxu0 %v1083
  %1103 = vmatprep.subr.bf16.mxu0 0
  %1104 = vmatpush1.bf16.msra.mxu0 %v1084
  %1105 = vmatprep.subr.bf16.mxu0 0
  %1106 = vmatpush1.bf16.msra.mxu0 %v1085
  %1107 = vmatprep.subr.bf16.mxu0 0
  %1108 = vmatpush1.bf16.msra.mxu0 %v1086
  %1109 = vmatprep.subr.bf16.mxu0 0
  %1110 = vmatpush1.bf16.msra.mxu0 %v1087
  %1111 = vmatprep.subr.bf16.mxu0 0
  %1112 = vmatpush1.bf16.msra.mxu0 %v1088
  %1113 = vmatprep.subr.bf16.mxu0 0
  %1114 = vmatpush1.bf16.msra.mxu0 0
  %1115 = vmatprep.subr.bf16.mxu0 0
  %1116 = vmatpush1.bf16.msra.mxu0 0
  %1117 = vmatprep.subr.bf16.mxu0 0
  %1118 = vmatpush1.bf16.msra.mxu0 0
  %1119 = vmatprep.subr.bf16.mxu0 0
  %1120 = vmatpush1.bf16.msra.mxu0 0
  %1121 = vmatprep.subr.bf16.mxu0 0
  %1122 = vmatpush1.bf16.msra.mxu0 0
  %1123 = vmatprep.subr.bf16.mxu0 0
  %1124 = vmatpush1.bf16.msra.mxu0 0
  %1125 = vmatprep.subr.bf16.mxu0 0
  %1126 = vmatpush1.bf16.msra.mxu0 0
  %1127 = vmatprep.subr.bf16.mxu0 0
  %1128 = vmatpush1.bf16.msra.mxu0 0
  %1129 = vmatprep.mubr.bf16.mxu0 0
  %1130 = vmatmul.mubr.bf16.gmra.mrb[0].mxu0 %v1017
  %v1131 = vpop.f32.mrb[0].mxu0
  %v1132 = vadd.f32 0.0, %v1131
  %v1133 = vpop.f32.mrb[0].mxu0
  %v1134 = vpop.f32.mrb[0].mxu0
  %v1135 = vadd.f32 0.0, %v1134
  %v1136 = vpop.f32.mrb[0].mxu0
  %1137 = vmatprep.mubr.bf16.mxu0 0
  %1138 = vmatmul.mubr.bf16.gmra.mrb[0].mxu0 %v1018
  %v1139 = vpop.f32.mrb[0].mxu0
  %v1140 = vadd.f32 0.0, %v1139
  %v1141 = vpop.f32.mrb[0].mxu0
  %v1142 = vpop.f32.mrb[0].mxu0
  %v1143 = vadd.f32 0.0, %v1142
  %v1144 = vpop.f32.mrb[0].mxu0
  %1145 = vmatprep.mubr.bf16.mxu0 0
  %1146 = vmatmul.mubr.bf16.gmra.mrb[0].mxu0 %v1019
  %v1147 = vpop.f32.mrb[0].mxu0
  %v1148 = vadd.f32 0.0, %v1147
  %v1149 = vpop.f32.mrb[0].mxu0
  %v1150 = vpop.f32.mrb[0].mxu0
  %v1151 = vadd.f32 0.0, %v1150
  %v1152 = vpop.f32.mrb[0].mxu0
  %1153 = vmatprep.mubr.bf16.mxu0 0
  %1154 = vmatmul.mubr.bf16.gmra.mrb[0].mxu0 %v1020
  %v1155 = vpop.f32.mrb[0].mxu0
  %v1156 = vadd.f32 0.0, %v1155
  %v1157 = vpop.f32.mrb[0].mxu0
  %v1158 = vpop.f32.mrb[0].mxu0
  %v1159 = vadd.f32 0.0, %v1158
  %v1160 = vpop.f32.mrb[0].mxu0
  %1161 = vmatprep.mubr.bf16.mxu0 0
  %1162 = vmatmul.mubr.bf16.gmra.mrb[0].mxu0 %v1021
  %v1163 = vpop.f32.mrb[0].mxu0
  %v1164 = vadd.f32 0.0, %v1163
  %v1165 = vpop.f32.mrb[0].mxu0
  %v1166 = vpop.f32.mrb[0].mxu0
  %v1167 = vadd.f32 0.0, %v1166
  %v1168 = vpop.f32.mrb[0].mxu0
  %1169 = vdwg.mxu0
  %v1170 = vadd.f32 %v1022, %v1132
  %v1171 = vadd.f32 %v1023, %v1135
  %v1172 = vadd.f32 %v1024, %v1140
  %v1173 = vadd.f32 %v1025, %v1143
  %v1174 = vadd.f32 %v1026, %v1148
  %v1175 = vadd.f32 %v1027, %v1151
  %v1176 = vadd.f32 %v1028, %v1156
  %v1177 = vadd.f32 %v1029, %v1159
  %v1178 = vadd.f32 %v1030, %v1164
  %v1179 = vadd.f32 %v1031, %v1167
  %1180 = vst [vmem:[%s2] sm:$0xff] %v1170
  %1181 = vst [vmem:[%s2 + $0x8] sm:$0xff] %v1171
  %1182 = vst [vmem:[%s2 + $0x10] sm:$0xff] %v1172
  %1183 = vst [vmem:[%s2 + $0x18] sm:$0xff] %v1173
  %1184 = vst [vmem:[%s2 + $0x20] sm:$0xff] %v1174
  %1185 = vst [vmem:[%s2 + $0x28] sm:$0xff] %v1175
  %1186 = vst [vmem:[%s2 + $0x30] sm:$0xff] %v1176
  %1187 = vst [vmem:[%s2 + $0x38] sm:$0xff] %v1177
  %1188 = vst [vmem:[%s2 + $0x40] sm:$0xff] %v1178
  %1189 = vst [vmem:[%s2 + $0x48] sm:$0xff] %v1179
  %v1190 = vld [vmem:[#allocation2 + $0xc] sm:$0xff]
  %v1191 = vld [vmem:[#allocation2 + $0x14] sm:$0xff]
  %v1192 = vld [vmem:[#allocation2 + $0x1c] sm:$0xff]
  %v1193 = vld [vmem:[#allocation2 + $0x24] sm:$0xff]
  %v1194 = vld [vmem:[#allocation2 + $0x2c] sm:$0xff]
  %v1195 = vld [vmem:[#allocation2 + $0x34] sm:$0xff]
  %v1196 = vld [vmem:[#allocation2 + $0x3c] sm:$0xff]
  %v1197 = vld [vmem:[#allocation2 + $0x44] sm:$0xff]
  %v1198 = vld [vmem:[#allocation2 + $0x4c] sm:$0xff]
  %v1199 = vld [vmem:[#allocation2 + $0x54] sm:$0xff]
  %v1200 = vpack.c.bf16 %v1191, %v1190
  %v1201 = vpack.c.bf16 %v1193, %v1192
  %v1202 = vpack.c.bf16 %v1195, %v1194
  %v1203 = vpack.c.bf16 %v1197, %v1196
  %v1204 = vpack.c.bf16 %v1199, %v1198
  %v1205 = vld [vmem:[%s2] sm:$0xff]
  %v1206 = vld [vmem:[%s2 + $0x8] sm:$0xff]
  %v1207 = vld [vmem:[%s2 + $0x10] sm:$0xff]
  %v1208 = vld [vmem:[%s2 + $0x18] sm:$0xff]
  %v1209 = vld [vmem:[%s2 + $0x20] sm:$0xff]
  %v1210 = vld [vmem:[%s2 + $0x28] sm:$0xff]
  %v1211 = vld [vmem:[%s2 + $0x30] sm:$0xff]
  %v1212 = vld [vmem:[%s2 + $0x38] sm:$0xff]
  %v1213 = vld [vmem:[%s2 + $0x40] sm:$0xff]
  %v1214 = vld [vmem:[%s2 + $0x48] sm:$0xff]
  %s1215 = scalar_lea.vmem %s1, 384
  %v1216 = vld [vmem:[%s1215] sm:$0xf]
  %v1217 = vld [vmem:[%s1215 + $0x4] sm:$0xf]
  %v1218 = vld [vmem:[%s1215 + $0x8] sm:$0xf]
  %v1219 = vld [vmem:[%s1215 + $0xc] sm:$0xf]
  %v1220 = vld [vmem:[%s1215 + $0x10] sm:$0xf]
  %v1221 = vld [vmem:[%s1215 + $0x14] sm:$0xf]
  %v1222 = vld [vmem:[%s1215 + $0x18] sm:$0xf]
  %v1223 = vld [vmem:[%s1215 + $0x1c] sm:$0xf]
  %v1224 = vld [vmem:[%s1215 + $0x20] sm:$0xf]
  %v1225 = vld [vmem:[%s1215 + $0x24] sm:$0xf]
  %v1226 = vld [vmem:[%s1215 + $0x28] sm:$0xf]
  %v1227 = vld [vmem:[%s1215 + $0x2c] sm:$0xf]
  %v1228 = vld [vmem:[%s1215 + $0x30] sm:$0xf]
  %v1229 = vld [vmem:[%s1215 + $0x34] sm:$0xf]
  %v1230 = vld [vmem:[%s1215 + $0x38] sm:$0xf]
  %v1231 = vld [vmem:[%s1215 + $0x3c] sm:$0xf]
  %v1248 = vunpack.c.l.b16 %v1216
  %v1249 = vunpack.c.l.b16 %v1217
  %v1250 = vunpack.c.l.b16 %v1218
  %v1251 = vunpack.c.l.b16 %v1219
  %v1252 = vunpack.c.l.b16 %v1220
  %v1253 = vunpack.c.l.b16 %v1221
  %v1254 = vunpack.c.l.b16 %v1222
  %v1255 = vunpack.c.l.b16 %v1223
  %v1256 = vunpack.c.l.b16 %v1224
  %v1257 = vunpack.c.l.b16 %v1225
  %v1258 = vunpack.c.l.b16 %v1226
  %v1259 = vunpack.c.l.b16 %v1227
  %v1260 = vunpack.c.l.b16 %v1228
  %v1261 = vunpack.c.l.b16 %v1229
  %v1262 = vunpack.c.l.b16 %v1230
  %v1263 = vunpack.c.l.b16 %v1231
  %v1264 = vpack.c.b16 %v1249, %v1248
  %v1265 = vpack.c.b16 %v1251, %v1250
  %v1266 = vpack.c.b16 %v1253, %v1252
  %v1267 = vpack.c.b16 %v1255, %v1254
  %v1268 = vpack.c.b16 %v1257, %v1256
  %v1269 = vpack.c.b16 %v1259, %v1258
  %v1270 = vpack.c.b16 %v1261, %v1260
  %v1271 = vpack.c.b16 %v1263, %v1262
  %1280 = vmatprep.subr.bf16.mxu0 0
  %1281 = vmatpush1.bf16.msra.mxu0 %v1264
  %1282 = vmatprep.subr.bf16.mxu0 0
  %1283 = vmatpush1.bf16.msra.mxu0 %v1265
  %1284 = vmatprep.subr.bf16.mxu0 0
  %1285 = vmatpush1.bf16.msra.mxu0 %v1266
  %1286 = vmatprep.subr.bf16.mxu0 0
  %1287 = vmatpush1.bf16.msra.mxu0 %v1267
  %1288 = vmatprep.subr.bf16.mxu0 0
  %1289 = vmatpush1.bf16.msra.mxu0 %v1268
  %1290 = vmatprep.subr.bf16.mxu0 0
  %1291 = vmatpush1.bf16.msra.mxu0 %v1269
  %1292 = vmatprep.subr.bf16.mxu0 0
  %1293 = vmatpush1.bf16.msra.mxu0 %v1270
  %1294 = vmatprep.subr.bf16.mxu0 0
  %1295 = vmatpush1.bf16.msra.mxu0 %v1271
  %1296 = vmatprep.subr.bf16.mxu0 0
  %1297 = vmatpush1.bf16.msra.mxu0 0
  %1298 = vmatprep.subr.bf16.mxu0 0
  %1299 = vmatpush1.bf16.msra.mxu0 0
  %1300 = vmatprep.subr.bf16.mxu0 0
  %1301 = vmatpush1.bf16.msra.mxu0 0
  %1302 = vmatprep.subr.bf16.mxu0 0
  %1303 = vmatpush1.bf16.msra.mxu0 0
  %1304 = vmatprep.subr.bf16.mxu0 0
  %1305 = vmatpush1.bf16.msra.mxu0 0
  %1306 = vmatprep.subr.bf16.mxu0 0
  %1307 = vmatpush1.bf16.msra.mxu0 0
  %1308 = vmatprep.subr.bf16.mxu0 0
  %1309 = vmatpush1.bf16.msra.mxu0 0
  %1310 = vmatprep.subr.bf16.mxu0 0
  %1311 = vmatpush1.bf16.msra.mxu0 0
  %1312 = vmatprep.mubr.bf16.mxu0 0
  %1313 = vmatmul.mubr.bf16.gmra.mrb[0].mxu0 %v1200
  %v1314 = vpop.f32.mrb[0].mxu0
  %v1315 = vadd.f32 0.0, %v1314
  %v1316 = vpop.f32.mrb[0].mxu0
  %v1317 = vpop.f32.mrb[0].mxu0
  %v1318 = vadd.f32 0.0, %v1317
  %v1319 = vpop.f32.mrb[0].mxu0
  %1320 = vmatprep.mubr.bf16.mxu0 0
  %1321 = vmatmul.mubr.bf16.gmra.mrb[0].mxu0 %v1201
  %v1322 = vpop.f32.mrb[0].mxu0
  %v1323 = vadd.f32 0.0, %v1322
  %v1324 = vpop.f32.mrb[0].mxu0
  %v1325 = vpop.f32.mrb[0].mxu0
  %v1326 = vadd.f32 0.0, %v1325
  %v1327 = vpop.f32.mrb[0].mxu0
  %1328 = vmatprep.mubr.bf16.mxu0 0
  %1329 = vmatmul.mubr.bf16.gmra.mrb[0].mxu0 %v1202
  %v1330 = vpop.f32.mrb[0].mxu0
  %v1331 = vadd.f32 0.0, %v1330
  %v1332 = vpop.f32.mrb[0].mxu0
  %v1333 = vpop.f32.mrb[0].mxu0
  %v1334 = vadd.f32 0.0, %v1333
  %v1335 = vpop.f32.mrb[0].mxu0
  %1336 = vmatprep.mubr.bf16.mxu0 0
  %1337 = vmatmul.mubr.bf16.gmra.mrb[0].mxu0 %v1203
  %v1338 = vpop.f32.mrb[0].mxu0
  %v1339 = vadd.f32 0.0, %v1338
  %v1340 = vpop.f32.mrb[0].mxu0
  %v1341 = vpop.f32.mrb[0].mxu0
  %v1342 = vadd.f32 0.0, %v1341
  %v1343 = vpop.f32.mrb[0].mxu0
  %1344 = vmatprep.mubr.bf16.mxu0 0
  %1345 = vmatmul.mubr.bf16.gmra.mrb[0].mxu0 %v1204
  %v1346 = vpop.f32.mrb[0].mxu0
  %v1347 = vadd.f32 0.0, %v1346
  %v1348 = vpop.f32.mrb[0].mxu0
  %v1349 = vpop.f32.mrb[0].mxu0
  %v1350 = vadd.f32 0.0, %v1349
  %v1351 = vpop.f32.mrb[0].mxu0
  %1352 = vdwg.mxu0
  %v1353 = vadd.f32 %v1205, %v1315
  %v1354 = vadd.f32 %v1206, %v1318
  %v1355 = vadd.f32 %v1207, %v1323
  %v1356 = vadd.f32 %v1208, %v1326
  %v1357 = vadd.f32 %v1209, %v1331
  %v1358 = vadd.f32 %v1210, %v1334
  %v1359 = vadd.f32 %v1211, %v1339
  %v1360 = vadd.f32 %v1212, %v1342
  %v1361 = vadd.f32 %v1213, %v1347
  %v1362 = vadd.f32 %v1214, %v1350
  %1363 = vst [vmem:[%s2] sm:$0xff] %v1353
  %1364 = vst [vmem:[%s2 + $0x8] sm:$0xff] %v1354
  %1365 = vst [vmem:[%s2 + $0x10] sm:$0xff] %v1355
  %1366 = vst [vmem:[%s2 + $0x18] sm:$0xff] %v1356
  %1367 = vst [vmem:[%s2 + $0x20] sm:$0xff] %v1357
  %1368 = vst [vmem:[%s2 + $0x28] sm:$0xff] %v1358
  %1369 = vst [vmem:[%s2 + $0x30] sm:$0xff] %v1359
  %1370 = vst [vmem:[%s2 + $0x38] sm:$0xff] %v1360
  %1371 = vst [vmem:[%s2 + $0x40] sm:$0xff] %v1361
  %1372 = vst [vmem:[%s2 + $0x48] sm:$0xff] %v1362
  %v1373 = vld [vmem:[#allocation2 + $0xd] sm:$0xff]
  %v1374 = vld [vmem:[#allocation2 + $0x15] sm:$0xff]
  %v1375 = vld [vmem:[#allocation2 + $0x1d] sm:$0xff]
  %v1376 = vld [vmem:[#allocation2 + $0x25] sm:$0xff]
  %v1377 = vld [vmem:[#allocation2 + $0x2d] sm:$0xff]
  %v1378 = vld [vmem:[#allocation2 + $0x35] sm:$0xff]
  %v1379 = vld [vmem:[#allocation2 + $0x3d] sm:$0xff]
  %v1380 = vld [vmem:[#allocation2 + $0x45] sm:$0xff]
  %v1381 = vld [vmem:[#allocation2 + $0x4d] sm:$0xff]
  %v1382 = vld [vmem:[#allocation2 + $0x55] sm:$0xff]
  %v1383 = vpack.c.bf16 %v1374, %v1373
  %v1384 = vpack.c.bf16 %v1376, %v1375
  %v1385 = vpack.c.bf16 %v1378, %v1377
  %v1386 = vpack.c.bf16 %v1380, %v1379
  %v1387 = vpack.c.bf16 %v1382, %v1381
  %v1388 = vld [vmem:[%s2] sm:$0xff]
  %v1389 = vld [vmem:[%s2 + $0x8] sm:$0xff]
  %v1390 = vld [vmem:[%s2 + $0x10] sm:$0xff]
  %v1391 = vld [vmem:[%s2 + $0x18] sm:$0xff]
  %v1392 = vld [vmem:[%s2 + $0x20] sm:$0xff]
  %v1393 = vld [vmem:[%s2 + $0x28] sm:$0xff]
  %v1394 = vld [vmem:[%s2 + $0x30] sm:$0xff]
  %v1395 = vld [vmem:[%s2 + $0x38] sm:$0xff]
  %v1396 = vld [vmem:[%s2 + $0x40] sm:$0xff]
  %v1397 = vld [vmem:[%s2 + $0x48] sm:$0xff]
  %s1398 = scalar_lea.vmem %s1, 448
  %v1399 = vld [vmem:[%s1398] sm:$0xf]
  %v1400 = vld [vmem:[%s1398 + $0x4] sm:$0xf]
  %v1401 = vld [vmem:[%s1398 + $0x8] sm:$0xf]
  %v1402 = vld [vmem:[%s1398 + $0xc] sm:$0xf]
  %v1403 = vld [vmem:[%s1398 + $0x10] sm:$0xf]
  %v1404 = vld [vmem:[%s1398 + $0x14] sm:$0xf]
  %v1405 = vld [vmem:[%s1398 + $0x18] sm:$0xf]
  %v1406 = vld [vmem:[%s1398 + $0x1c] sm:$0xf]
  %v1407 = vld [vmem:[%s1398 + $0x20] sm:$0xf]
  %v1408 = vld [vmem:[%s1398 + $0x24] sm:$0xf]
  %v1409 = vld [vmem:[%s1398 + $0x28] sm:$0xf]
  %v1410 = vld [vmem:[%s1398 + $0x2c] sm:$0xf]
  %v1411 = vld [vmem:[%s1398 + $0x30] sm:$0xf]
  %v1412 = vld [vmem:[%s1398 + $0x34] sm:$0xf]
  %v1413 = vld [vmem:[%s1398 + $0x38] sm:$0xf]
  %v1414 = vld [vmem:[%s1398 + $0x3c] sm:$0xf]
  %v1431 = vunpack.c.l.b16 %v1399
  %v1432 = vunpack.c.l.b16 %v1400
  %v1433 = vunpack.c.l.b16 %v1401
  %v1434 = vunpack.c.l.b16 %v1402
  %v1435 = vunpack.c.l.b16 %v1403
  %v1436 = vunpack.c.l.b16 %v1404
  %v1437 = vunpack.c.l.b16 %v1405
  %v1438 = vunpack.c.l.b16 %v1406
  %v1439 = vunpack.c.l.b16 %v1407
  %v1440 = vunpack.c.l.b16 %v1408
  %v1441 = vunpack.c.l.b16 %v1409
  %v1442 = vunpack.c.l.b16 %v1410
  %v1443 = vunpack.c.l.b16 %v1411
  %v1444 = vunpack.c.l.b16 %v1412
  %v1445 = vunpack.c.l.b16 %v1413
  %v1446 = vunpack.c.l.b16 %v1414
  %v1447 = vpack.c.b16 %v1432, %v1431
  %v1448 = vpack.c.b16 %v1434, %v1433
  %v1449 = vpack.c.b16 %v1436, %v1435
  %v1450 = vpack.c.b16 %v1438, %v1437
  %v1451 = vpack.c.b16 %v1440, %v1439
  %v1452 = vpack.c.b16 %v1442, %v1441
  %v1453 = vpack.c.b16 %v1444, %v1443
  %v1454 = vpack.c.b16 %v1446, %v1445
  %1463 = vmatprep.subr.bf16.mxu0 0
  %1464 = vmatpush1.bf16.msra.mxu0 %v1447
  %1465 = vmatprep.subr.bf16.mxu0 0
  %1466 = vmatpush1.bf16.msra.mxu0 %v1448
  %1467 = vmatprep.subr.bf16.mxu0 0
  %1468 = vmatpush1.bf16.msra.mxu0 %v1449
  %1469 = vmatprep.subr.bf16.mxu0 0
  %1470 = vmatpush1.bf16.msra.mxu0 %v1450
  %1471 = vmatprep.subr.bf16.mxu0 0
  %1472 = vmatpush1.bf16.msra.mxu0 %v1451
  %1473 = vmatprep.subr.bf16.mxu0 0
  %1474 = vmatpush1.bf16.msra.mxu0 %v1452
  %1475 = vmatprep.subr.bf16.mxu0 0
  %1476 = vmatpush1.bf16.msra.mxu0 %v1453
  %1477 = vmatprep.subr.bf16.mxu0 0
  %1478 = vmatpush1.bf16.msra.mxu0 %v1454
  %1479 = vmatprep.subr.bf16.mxu0 0
  %1480 = vmatpush1.bf16.msra.mxu0 0
  %1481 = vmatprep.subr.bf16.mxu0 0
  %1482 = vmatpush1.bf16.msra.mxu0 0
  %1483 = vmatprep.subr.bf16.mxu0 0
  %1484 = vmatpush1.bf16.msra.mxu0 0
  %1485 = vmatprep.subr.bf16.mxu0 0
  %1486 = vmatpush1.bf16.msra.mxu0 0
  %1487 = vmatprep.subr.bf16.mxu0 0
  %1488 = vmatpush1.bf16.msra.mxu0 0
  %1489 = vmatprep.subr.bf16.mxu0 0
  %1490 = vmatpush1.bf16.msra.mxu0 0
  %1491 = vmatprep.subr.bf16.mxu0 0
  %1492 = vmatpush1.bf16.msra.mxu0 0
  %1493 = vmatprep.subr.bf16.mxu0 0
  %1494 = vmatpush1.bf16.msra.mxu0 0
  %1495 = vmatprep.mubr.bf16.mxu0 0
  %1496 = vmatmul.mubr.bf16.gmra.mrb[0].mxu0 %v1383
  %v1497 = vpop.f32.mrb[0].mxu0
  %v1498 = vadd.f32 0.0, %v1497
  %v1499 = vpop.f32.mrb[0].mxu0
  %v1500 = vpop.f32.mrb[0].mxu0
  %v1501 = vadd.f32 0.0, %v1500
  %v1502 = vpop.f32.mrb[0].mxu0
  %1503 = vmatprep.mubr.bf16.mxu0 0
  %1504 = vmatmul.mubr.bf16.gmra.mrb[0].mxu0 %v1384
  %v1505 = vpop.f32.mrb[0].mxu0
  %v1506 = vadd.f32 0.0, %v1505
  %v1507 = vpop.f32.mrb[0].mxu0
  %v1508 = vpop.f32.mrb[0].mxu0
  %v1509 = vadd.f32 0.0, %v1508
  %v1510 = vpop.f32.mrb[0].mxu0
  %1511 = vmatprep.mubr.bf16.mxu0 0
  %1512 = vmatmul.mubr.bf16.gmra.mrb[0].mxu0 %v1385
  %v1513 = vpop.f32.mrb[0].mxu0
  %v1514 = vadd.f32 0.0, %v1513
  %v1515 = vpop.f32.mrb[0].mxu0
  %v1516 = vpop.f32.mrb[0].mxu0
  %v1517 = vadd.f32 0.0, %v1516
  %v1518 = vpop.f32.mrb[0].mxu0
  %1519 = vmatprep.mubr.bf16.mxu0 0
  %1520 = vmatmul.mubr.bf16.gmra.mrb[0].mxu0 %v1386
  %v1521 = vpop.f32.mrb[0].mxu0
  %v1522 = vadd.f32 0.0, %v1521
  %v1523 = vpop.f32.mrb[0].mxu0
  %v1524 = vpop.f32.mrb[0].mxu0
  %v1525 = vadd.f32 0.0, %v1524
  %v1526 = vpop.f32.mrb[0].mxu0
  %1527 = vmatprep.mubr.bf16.mxu0 0
  %1528 = vmatmul.mubr.bf16.gmra.mrb[0].mxu0 %v1387
  %v1529 = vpop.f32.mrb[0].mxu0
  %v1530 = vadd.f32 0.0, %v1529
  %v1531 = vpop.f32.mrb[0].mxu0
  %v1532 = vpop.f32.mrb[0].mxu0
  %v1533 = vadd.f32 0.0, %v1532
  %v1534 = vpop.f32.mrb[0].mxu0
  %1535 = vdwg.mxu0
  %v1536 = vadd.f32 %v1388, %v1498
  %v1537 = vadd.f32 %v1389, %v1501
  %v1538 = vadd.f32 %v1390, %v1506
  %v1539 = vadd.f32 %v1391, %v1509
  %v1540 = vadd.f32 %v1392, %v1514
  %v1541 = vadd.f32 %v1393, %v1517
  %v1542 = vadd.f32 %v1394, %v1522
  %v1543 = vadd.f32 %v1395, %v1525
  %v1544 = vadd.f32 %v1396, %v1530
  %v1545 = vadd.f32 %v1397, %v1533
  %1546 = vst [vmem:[%s2] sm:$0xff] %v1536
  %1547 = vst [vmem:[%s2 + $0x8] sm:$0xff] %v1537
  %1548 = vst [vmem:[%s2 + $0x10] sm:$0xff] %v1538
  %1549 = vst [vmem:[%s2 + $0x18] sm:$0xff] %v1539
  %1550 = vst [vmem:[%s2 + $0x20] sm:$0xff] %v1540
  %1551 = vst [vmem:[%s2 + $0x28] sm:$0xff] %v1541
  %1552 = vst [vmem:[%s2 + $0x30] sm:$0xff] %v1542
  %1553 = vst [vmem:[%s2 + $0x38] sm:$0xff] %v1543
  %1554 = vst [vmem:[%s2 + $0x40] sm:$0xff] %v1544
  %1555 = vst [vmem:[%s2 + $0x48] sm:$0xff] %v1545
  %v1556 = vld [vmem:[#allocation2 + $0xe] sm:$0xff]
  %v1557 = vld [vmem:[#allocation2 + $0x16] sm:$0xff]
  %v1558 = vld [vmem:[#allocation2 + $0x1e] sm:$0xff]
  %v1559 = vld [vmem:[#allocation2 + $0x26] sm:$0xff]
  %v1560 = vld [vmem:[#allocation2 + $0x2e] sm:$0xff]
  %v1561 = vld [vmem:[#allocation2 + $0x36] sm:$0xff]
  %v1562 = vld [vmem:[#allocation2 + $0x3e] sm:$0xff]
  %v1563 = vld [vmem:[#allocation2 + $0x46] sm:$0xff]
  %v1564 = vld [vmem:[#allocation2 + $0x4e] sm:$0xff]
  %v1565 = vld [vmem:[#allocation2 + $0x56] sm:$0xff]
  %v1566 = vpack.c.bf16 %v1557, %v1556
  %v1567 = vpack.c.bf16 %v1559, %v1558
  %v1568 = vpack.c.bf16 %v1561, %v1560
  %v1569 = vpack.c.bf16 %v1563, %v1562
  %v1570 = vpack.c.bf16 %v1565, %v1564
  %v1571 = vld [vmem:[%s2] sm:$0xff]
  %v1572 = vld [vmem:[%s2 + $0x8] sm:$0xff]
  %v1573 = vld [vmem:[%s2 + $0x10] sm:$0xff]
  %v1574 = vld [vmem:[%s2 + $0x18] sm:$0xff]
  %v1575 = vld [vmem:[%s2 + $0x20] sm:$0xff]
  %v1576 = vld [vmem:[%s2 + $0x28] sm:$0xff]
  %v1577 = vld [vmem:[%s2 + $0x30] sm:$0xff]
  %v1578 = vld [vmem:[%s2 + $0x38] sm:$0xff]
  %v1579 = vld [vmem:[%s2 + $0x40] sm:$0xff]
  %v1580 = vld [vmem:[%s2 + $0x48] sm:$0xff]
  %s1581 = scalar_lea.vmem %s1, 512
  %v1582 = vld [vmem:[%s1581] sm:$0xf]
  %v1583 = vld [vmem:[%s1581 + $0x4] sm:$0xf]
  %v1584 = vld [vmem:[%s1581 + $0x8] sm:$0xf]
  %v1585 = vld [vmem:[%s1581 + $0xc] sm:$0xf]
  %v1586 = vld [vmem:[%s1581 + $0x10] sm:$0xf]
  %v1587 = vld [vmem:[%s1581 + $0x14] sm:$0xf]
  %v1588 = vld [vmem:[%s1581 + $0x18] sm:$0xf]
  %v1589 = vld [vmem:[%s1581 + $0x1c] sm:$0xf]
  %v1590 = vld [vmem:[%s1581 + $0x20] sm:$0xf]
  %v1591 = vld [vmem:[%s1581 + $0x24] sm:$0xf]
  %v1592 = vld [vmem:[%s1581 + $0x28] sm:$0xf]
  %v1593 = vld [vmem:[%s1581 + $0x2c] sm:$0xf]
  %v1594 = vld [vmem:[%s1581 + $0x30] sm:$0xf]
  %v1595 = vld [vmem:[%s1581 + $0x34] sm:$0xf]
  %v1596 = vld [vmem:[%s1581 + $0x38] sm:$0xf]
  %v1597 = vld [vmem:[%s1581 + $0x3c] sm:$0xf]
  %v1614 = vunpack.c.l.b16 %v1582
  %v1615 = vunpack.c.l.b16 %v1583
  %v1616 = vunpack.c.l.b16 %v1584
  %v1617 = vunpack.c.l.b16 %v1585
  %v1618 = vunpack.c.l.b16 %v1586
  %v1619 = vunpack.c.l.b16 %v1587
  %v1620 = vunpack.c.l.b16 %v1588
  %v1621 = vunpack.c.l.b16 %v1589
  %v1622 = vunpack.c.l.b16 %v1590
  %v1623 = vunpack.c.l.b16 %v1591
  %v1624 = vunpack.c.l.b16 %v1592
  %v1625 = vunpack.c.l.b16 %v1593
  %v1626 = vunpack.c.l.b16 %v1594
  %v1627 = vunpack.c.l.b16 %v1595
  %v1628 = vunpack.c.l.b16 %v1596
  %v1629 = vunpack.c.l.b16 %v1597
  %v1630 = vpack.c.b16 %v1615, %v1614
  %v1631 = vpack.c.b16 %v1617, %v1616
  %v1632 = vpack.c.b16 %v1619, %v1618
  %v1633 = vpack.c.b16 %v1621, %v1620
  %v1634 = vpack.c.b16 %v1623, %v1622
  %v1635 = vpack.c.b16 %v1625, %v1624
  %v1636 = vpack.c.b16 %v1627, %v1626
  %v1637 = vpack.c.b16 %v1629, %v1628
  %1646 = vmatprep.subr.bf16.mxu0 0
  %1647 = vmatpush1.bf16.msra.mxu0 %v1630
  %1648 = vmatprep.subr.bf16.mxu0 0
  %1649 = vmatpush1.bf16.msra.mxu0 %v1631
  %1650 = vmatprep.subr.bf16.mxu0 0
  %1651 = vmatpush1.bf16.msra.mxu0 %v1632
  %1652 = vmatprep.subr.bf16.mxu0 0
  %1653 = vmatpush1.bf16.msra.mxu0 %v1633
  %1654 = vmatprep.subr.bf16.mxu0 0
  %1655 = vmatpush1.bf16.msra.mxu0 %v1634
  %1656 = vmatprep.subr.bf16.mxu0 0
  %1657 = vmatpush1.bf16.msra.mxu0 %v1635
  %1658 = vmatprep.subr.bf16.mxu0 0
  %1659 = vmatpush1.bf16.msra.mxu0 %v1636
  %1660 = vmatprep.subr.bf16.mxu0 0
  %1661 = vmatpush1.bf16.msra.mxu0 %v1637
  %1662 = vmatprep.subr.bf16.mxu0 0
  %1663 = vmatpush1.bf16.msra.mxu0 0
  %1664 = vmatprep.subr.bf16.mxu0 0
  %1665 = vmatpush1.bf16.msra.mxu0 0
  %1666 = vmatprep.subr.bf16.mxu0 0
  %1667 = vmatpush1.bf16.msra.mxu0 0
  %1668 = vmatprep.subr.bf16.mxu0 0
  %1669 = vmatpush1.bf16.msra.mxu0 0
  %1670 = vmatprep.subr.bf16.mxu0 0
  %1671 = vmatpush1.bf16.msra.mxu0 0
  %1672 = vmatprep.subr.bf16.mxu0 0
  %1673 = vmatpush1.bf16.msra.mxu0 0
  %1674 = vmatprep.subr.bf16.mxu0 0
  %1675 = vmatpush1.bf16.msra.mxu0 0
  %1676 = vmatprep.subr.bf16.mxu0 0
  %1677 = vmatpush1.bf16.msra.mxu0 0
  %1678 = vmatprep.mubr.bf16.mxu0 0
  %1679 = vmatmul.mubr.bf16.gmra.mrb[0].mxu0 %v1566
  %v1680 = vpop.f32.mrb[0].mxu0
  %v1681 = vadd.f32 0.0, %v1680
  %v1682 = vpop.f32.mrb[0].mxu0
  %v1683 = vpop.f32.mrb[0].mxu0
  %v1684 = vadd.f32 0.0, %v1683
  %v1685 = vpop.f32.mrb[0].mxu0
  %1686 = vmatprep.mubr.bf16.mxu0 0
  %1687 = vmatmul.mubr.bf16.gmra.mrb[0].mxu0 %v1567
  %v1688 = vpop.f32.mrb[0].mxu0
  %v1689 = vadd.f32 0.0, %v1688
  %v1690 = vpop.f32.mrb[0].mxu0
  %v1691 = vpop.f32.mrb[0].mxu0
  %v1692 = vadd.f32 0.0, %v1691
  %v1693 = vpop.f32.mrb[0].mxu0
  %1694 = vmatprep.mubr.bf16.mxu0 0
  %1695 = vmatmul.mubr.bf16.gmra.mrb[0].mxu0 %v1568
  %v1696 = vpop.f32.mrb[0].mxu0
  %v1697 = vadd.f32 0.0, %v1696
  %v1698 = vpop.f32.mrb[0].mxu0
  %v1699 = vpop.f32.mrb[0].mxu0
  %v1700 = vadd.f32 0.0, %v1699
  %v1701 = vpop.f32.mrb[0].mxu0
  %1702 = vmatprep.mubr.bf16.mxu0 0
  %1703 = vmatmul.mubr.bf16.gmra.mrb[0].mxu0 %v1569
  %v1704 = vpop.f32.mrb[0].mxu0
  %v1705 = vadd.f32 0.0, %v1704
  %v1706 = vpop.f32.mrb[0].mxu0
  %v1707 = vpop.f32.mrb[0].mxu0
  %v1708 = vadd.f32 0.0, %v1707
  %v1709 = vpop.f32.mrb[0].mxu0
  %1710 = vmatprep.mubr.bf16.mxu0 0
  %1711 = vmatmul.mubr.bf16.gmra.mrb[0].mxu0 %v1570
  %v1712 = vpop.f32.mrb[0].mxu0
  %v1713 = vadd.f32 0.0, %v1712
  %v1714 = vpop.f32.mrb[0].mxu0
  %v1715 = vpop.f32.mrb[0].mxu0
  %v1716 = vadd.f32 0.0, %v1715
  %v1717 = vpop.f32.mrb[0].mxu0
  %1718 = vdwg.mxu0
  %v1719 = vadd.f32 %v1571, %v1681
  %v1720 = vadd.f32 %v1572, %v1684
  %v1721 = vadd.f32 %v1573, %v1689
  %v1722 = vadd.f32 %v1574, %v1692
  %v1723 = vadd.f32 %v1575, %v1697
  %v1724 = vadd.f32 %v1576, %v1700
  %v1725 = vadd.f32 %v1577, %v1705
  %v1726 = vadd.f32 %v1578, %v1708
  %v1727 = vadd.f32 %v1579, %v1713
  %v1728 = vadd.f32 %v1580, %v1716
  %1729 = vst [vmem:[%s2] sm:$0xff] %v1719
  %1730 = vst [vmem:[%s2 + $0x8] sm:$0xff] %v1720
  %1731 = vst [vmem:[%s2 + $0x10] sm:$0xff] %v1721
  %1732 = vst [vmem:[%s2 + $0x18] sm:$0xff] %v1722
  %1733 = vst [vmem:[%s2 + $0x20] sm:$0xff] %v1723
  %1734 = vst [vmem:[%s2 + $0x28] sm:$0xff] %v1724
  %1735 = vst [vmem:[%s2 + $0x30] sm:$0xff] %v1725
  %1736 = vst [vmem:[%s2 + $0x38] sm:$0xff] %v1726
  %1737 = vst [vmem:[%s2 + $0x40] sm:$0xff] %v1727
  %1738 = vst [vmem:[%s2 + $0x48] sm:$0xff] %v1728
  // Predicated region
  $region44: #{_lambda_.44} parent=0 // pred_check
    _
  $region45: #{_lambda_.44} parent=0 // pred_check_branch
    %1740 = sbr.rel (0) target = $region47
  $region46: #{_lambda_.44} parent=0 // pred_region
    _
  $region47: #{_lambda_.44} parent=0 // pred_fallthru
    _
  // Predicated region
  $region48: #{_lambda_.44} parent=0 // pred_check
    _
  $region49: #{_lambda_.44} parent=0 // pred_check_branch
    %1742 = sbr.rel (0) target = $region51
  $region50: #{_lambda_.44} parent=0 // pred_region
    _
  $region51: #{_lambda_.44} parent=0 // pred_fallthru
    _
  %1743 = vsyncmov [#allocation3]
  %s1744 = vpop.sfrf %1743
  %p1745 = scmp.eq.s32.totalorder %s1744, 0
  %p1746 = pneg %p1745
  %1748 = shalt.err (%p1746)

</llo_original>
